<compile_context>
chip_gen: v7x
topology: tpu7x:2x2x1
jax: 0.10.0
libtpu: 0.0.40
codegen_flags: <defaults>
</compile_context>

<pallas_src>
import functools

import jax
import jax.numpy as jnp
from jax import lax
from jax.experimental import pallas as pl
from jax.experimental.pallas import tpu as pltpu


def _round_up(v, m):
    return ((v + m - 1) // m) * m


def _choose_tm(n_rows):
    """Adaptive M tile: large tiles amortize the ~0.35us per-grid-step cost,
    but keep >=2 tiles when possible so v7x's two TensorCores both get work."""
    n8 = _round_up(n_rows, 8)
    if n8 <= 256:
        return n8
    return min(512, _round_up((n8 + 1) // 2, 8))


def _l2norm_rows(v):
    # matches F.normalize(v, dim=1): v / max(||v||_2, 1e-12)
    return v / jnp.maximum(jnp.sqrt(jnp.sum(v * v, axis=1, keepdims=True)), 1e-12)


# ----------------------------------------------------------------------------
# Pass 1: hard assignment statistics (fused normalize + score + argmax one-hot
#         + onehot^T @ x accumulation over the row grid)
# ----------------------------------------------------------------------------
def _assign_kernel(n_valid, x_ref, mnt_ref, esum_ref, osum_ref):
    i = pl.program_id(0)

    @pl.when(i == 0)
    def _():
        esum_ref[...] = jnp.zeros_like(esum_ref)
        osum_ref[...] = jnp.zeros_like(osum_ref)

    x = x_ref[...]                                                  # (tm, c) f32
    tm = x.shape[0]
    k = osum_ref.shape[1]

    # row-wise L2 normalization in f32
    inv = 1.0 / jnp.maximum(jnp.sqrt(jnp.sum(x * x, axis=1, keepdims=True)), 1e-12)
    xn = x * inv

    # cosine scores on the MXU: bf16 inputs, f32 accumulation
    score = jnp.dot(xn.astype(jnp.bfloat16), mnt_ref[...],
                    preferred_element_type=jnp.float32)             # (tm, k)

    # first-occurrence argmax -> one-hot (max + masked min-index, all f32)
    mx = jnp.max(score, axis=1, keepdims=True)                      # (tm, 1)
    col = lax.broadcasted_iota(jnp.int32, score.shape, 1).astype(jnp.float32)
    first = jnp.min(jnp.where(score == mx, col, float(k)),
                    axis=1, keepdims=True)                          # (tm, 1)
    row = i * tm + lax.broadcasted_iota(jnp.int32, (tm, 1), 0)
    valid = row < n_valid                                           # mask padded M rows
    onehot = ((col == first) & valid).astype(jnp.float32)           # (tm, k)

    # accumulate onehot^T @ x on the MXU (contract over the row-tile axis)
    esum_ref[...] += lax.dot_general(
        onehot.astype(jnp.bfloat16), x.astype(jnp.bfloat16),
        dimension_numbers=(((0,), (0,)), ((), ())),
        preferred_element_type=jnp.float32)                         # (k, c)
    osum_ref[...] += jnp.sum(onehot, axis=0, keepdims=True)         # (1, k)


# ----------------------------------------------------------------------------
# Pass 2: readout (fused normalize + score + row softmax + soft @ new_m)
# ----------------------------------------------------------------------------
def _readout_kernel(x_ref, mnt_ref, m_ref, out_ref, score_ref):
    x = x_ref[...]                                                  # (tm, c) f32
    inv = 1.0 / jnp.maximum(jnp.sqrt(jnp.sum(x * x, axis=1, keepdims=True)), 1e-12)
    xn = x * inv

    score = jnp.dot(xn.astype(jnp.bfloat16), mnt_ref[...],
                    preferred_element_type=jnp.float32)             # (tm, k)
    score_ref[...] = score

    # row softmax in f32 (k is full-extent, never padded -> no column mask)
    mx = jnp.max(score, axis=1, keepdims=True)
    e = jnp.exp(score - mx)
    soft = e / jnp.sum(e, axis=1, keepdims=True)

    out_ref[...] = jnp.dot(soft.astype(jnp.bfloat16), m_ref[...],
                           preferred_element_type=jnp.float32)      # (tm, c)


# ----------------------------------------------------------------------------
# Forward wrapper (matches _Memory_Block.forward in eval mode)
# ----------------------------------------------------------------------------
def memory_block_forward(x_nchw, m, moving_average_rate=0.999, update_flag=True):
    """x_nchw: (b, c, h, w) f32, m: (k, c) f32 (nn.Embedding weight).
    Returns (out (b, c, h, w), score (b*h*w, k))."""
    b, c, h, w = x_nchw.shape
    k = m.shape[0]
    n = b * h * w

    xf = jnp.transpose(x_nchw, (0, 2, 3, 1)).reshape(n, c).astype(jnp.float32)

    tm = _choose_tm(n)
    mp = _round_up(n, tm)
    xf_p = xf if mp == n else jnp.pad(xf, ((0, mp - n), (0, 0)))
    grid = (mp // tm,)

    m = m.astype(jnp.float32)

    if update_flag:
        mn_t = _l2norm_rows(m).T.astype(jnp.bfloat16)               # (c, k), tiny
        esum, osum = pl.pallas_call(
            functools.partial(_assign_kernel, n),
            grid=grid,
            in_specs=[
                pl.BlockSpec((tm, c), lambda i: (i, 0)),            # row tile, full c (no K pad)
                pl.BlockSpec((c, k), lambda i: (0, 0)),             # grid-invariant codebook
            ],
            out_specs=(
                pl.BlockSpec((k, c), lambda i: (0, 0)),             # grid-resident accumulator
                pl.BlockSpec((1, k), lambda i: (0, 0)),             # grid-resident accumulator
            ),
            out_shape=(
                jax.ShapeDtypeStruct((k, c), jnp.float32),
                jax.ShapeDtypeStruct((1, k), jnp.float32),
            ),
            compiler_params=pltpu.CompilerParams(
                dimension_semantics=("arbitrary",)),                # M axis is a reduction here
        )(xf_p, mn_t)

        # EMA update of the tiny (k, c) codebook -- plain-JAX glue.
        # TODO(synk): persisting new_m into nn.Embedding.weight is a training-mode
        #             side effect; this stateless forward only uses new_m (as PyTorch does).
        embed_mean_t = esum / (jnp.reshape(osum, (k, 1)) + 1e-6)    # (k, c)
        m_used = m * moving_average_rate + embed_mean_t * (1.0 - moving_average_rate)
    else:
        m_used = m

    mn2_t = _l2norm_rows(m_used).T.astype(jnp.bfloat16)             # (c, k)
    m_bf16 = m_used.astype(jnp.bfloat16)                            # (k, c)

    out_p, score_p = pl.pallas_call(
        _readout_kernel,
        grid=grid,
        in_specs=[
            pl.BlockSpec((tm, c), lambda i: (i, 0)),
            pl.BlockSpec((c, k), lambda i: (0, 0)),
            pl.BlockSpec((k, c), lambda i: (0, 0)),
        ],
        out_specs=(
            pl.BlockSpec((tm, c), lambda i: (i, 0)),
            pl.BlockSpec((tm, k), lambda i: (i, 0)),
        ),
        out_shape=(
            jax.ShapeDtypeStruct((mp, c), jnp.float32),
            jax.ShapeDtypeStruct((mp, k), jnp.float32),
        ),
        compiler_params=pltpu.CompilerParams(
            dimension_semantics=("parallel",)),                     # independent row tiles
    )(xf_p, mn2_t, m_bf16)

    out = out_p[:n].reshape(b, h, w, c).transpose(0, 3, 1, 2)
    score = score_p[:n]
    return out, score


# ----------------------------------------------------------------------------
# Pure-JAX f32 reference (mirrors the PyTorch module) for a sanity check.
# ----------------------------------------------------------------------------
def _reference(x_nchw, m, rate):
    b, c, h, w = x_nchw.shape
    k = m.shape[0]
    xf = jnp.transpose(x_nchw, (0, 2, 3, 1)).reshape(-1, c)
    xn = _l2norm_rows(xf)
    mn = _l2norm_rows(m)
    score1 = xn @ mn.T
    ind = jnp.argmax(score1, axis=1)
    onehot = jax.nn.one_hot(ind, k, dtype=xf.dtype)
    esum = xf.T @ onehot
    emean = esum / (onehot.sum(axis=0) + 1e-6)
    new_m = m * rate + emean.T * (1.0 - rate)
    mn2 = _l2norm_rows(new_m)
    score = xn @ mn2.T
    soft = jax.nn.softmax(score, axis=1)
    out = (soft @ new_m).reshape(b, h, w, c).transpose(0, 3, 1, 2)
    return out, score


if __name__ == "__main__":
    hdim, kdim = 32, 128
    b, h, w = 2, 16, 16
    rate = 0.999

    key = jax.random.PRNGKey(0)
    kx, km = jax.random.split(key)
    x = jax.random.normal(kx, (b, hdim, h, w), jnp.float32)       # NCHW like the PyTorch input
    m = jax.random.normal(km, (kdim, hdim), jnp.float32)          # nn.Embedding default init

    fwd = jax.jit(functools.partial(memory_block_forward,
                                    moving_average_rate=rate, update_flag=True))
    out, score = jax.block_until_ready(fwd(x, m))

    assert out.shape == (b, hdim, h, w)
    assert score.shape == (b * h * w, kdim)
    assert bool(jnp.all(jnp.isfinite(out))) and bool(jnp.all(jnp.isfinite(score)))

    # generous tolerances cover the bf16 MXU inputs (accumulation is f32)
    out_ref, score_ref = _reference(x, m, rate)
    assert bool(jnp.max(jnp.abs(score - score_ref)) < 5e-2)
    assert bool(jnp.max(jnp.abs(out - out_ref)) < 2e-1)

    print("KERNEL_OK")
</pallas_src>

<mosaic_0001>
module attributes {stable_mosaic.version = 11 : i64} {
  func.func @_assign_kernel(%arg0: i32, %arg1: memref<256x32xf32, #tpu.memory_space<vmem>>, %arg2: memref<32x128xbf16, #tpu.memory_space<vmem>>, %arg3: memref<128x32xf32, #tpu.memory_space<vmem>>, %arg4: memref<1x128xf32, #tpu.memory_space<vmem>>) attributes {dimension_semantics = [#tpu.dimension_semantics<arbitrary>], iteration_bounds = array<i64: 2>, scalar_prefetch = 0 : i64, scratch_operands = 0 : i64, tpu.core_type = #tpu.core_type<tc>, window_params = [{transform_indices = @transform_0, window_bounds = array<i64: 256, 32>}, {pipeline_mode = #tpu.pipeline_mode<synchronous>, transform_indices = @transform_1, window_bounds = array<i64: 32, 128>}, {pipeline_mode = #tpu.pipeline_mode<synchronous>, transform_indices = @transform_2, window_bounds = array<i64: 128, 32>}, {pipeline_mode = #tpu.pipeline_mode<synchronous>, transform_indices = @transform_3, window_bounds = array<i64: 1, 128>}]} {
    %c0_i32 = arith.constant 0 : i32
    %0 = arith.cmpi eq, %arg0, %c0_i32 : i32
    %1 = arith.extui %0 : i1 to i32
    %c0_i32_0 = arith.constant 0 : i32
    %2 = arith.cmpi ne, %1, %c0_i32_0 : i32
    scf.if %2 {
      %cst_20 = arith.constant 0.000000e+00 : f32
      %50 = vector.broadcast %cst_20 : f32 to vector<128x32xf32>
      %c0_21 = arith.constant 0 : index
      %c0_22 = arith.constant 0 : index
      %51 = vector.load %arg3[%c0_21, %c0_22] : memref<128x32xf32, #tpu.memory_space<vmem>>, vector<128x32xf32>
      tpu.vector_store %arg3[%c0_21, %c0_22], %50 {strides = array<i32>} : memref<128x32xf32, #tpu.memory_space<vmem>>, vector<128x32xf32>,
      %cst_23 = arith.constant 0.000000e+00 : f32
      %52 = vector.broadcast %cst_23 : f32 to vector<1x128xf32>
      %c0_24 = arith.constant 0 : index
      %c0_25 = arith.constant 0 : index
      %53 = vector.load %arg4[%c0_24, %c0_25] : memref<1x128xf32, #tpu.memory_space<vmem>>, vector<1x128xf32>
      tpu.vector_store %arg4[%c0_24, %c0_25], %52 {strides = array<i32>} : memref<1x128xf32, #tpu.memory_space<vmem>>, vector<1x128xf32>,
    } else {
    }
    %c0 = arith.constant 0 : index
    %c0_1 = arith.constant 0 : index
    %3 = vector.load %arg1[%c0, %c0_1] : memref<256x32xf32, #tpu.memory_space<vmem>>, vector<256x32xf32>
    %4 = arith.mulf %3, %3 : vector<256x32xf32>
    %cst = arith.constant dense<0.000000e+00> : vector<256xf32>
    %5 = vector.multi_reduction <add>, %4, %cst [1] : vector<256x32xf32> to vector<256xf32>
    %6 = vector.shape_cast %5 : vector<256xf32> to vector<256x1xf32>
    %7 = math.sqrt %6 : vector<256x1xf32>
    %cst_2 = arith.constant 9.99999996E-13 : f32
    %8 = vector.broadcast %cst_2 : f32 to vector<256x1xf32>
    %9 = arith.maximumf %7, %8 : vector<256x1xf32>
    %cst_3 = arith.constant 1.000000e+00 : f32
    %10 = vector.broadcast %cst_3 : f32 to vector<256x1xf32>
    %11 = arith.divf %10, %9 : vector<256x1xf32>
    %12 = vector.broadcast %11 : vector<256x1xf32> to vector<256x32xf32>
    %13 = arith.mulf %3, %12 : vector<256x32xf32>
    %14 = arith.truncf %13 : vector<256x32xf32> to vector<256x32xbf16>
    %c0_4 = arith.constant 0 : index
    %c0_5 = arith.constant 0 : index
    %15 = vector.load %arg2[%c0_4, %c0_5] : memref<32x128xbf16, #tpu.memory_space<vmem>>, vector<32x128xbf16>
    %cst_6 = arith.constant dense<0.000000e+00> : vector<256x128xf32>
    %16 = tpu.matmul %14, %15, %cst_6 {dimension_numbers = #tpu.dot_dimension_numbers<[1], [0], [0], [1], [0, 0, 1, 1], [], []>} : vector<256x32xbf16>, vector<32x128xbf16>, vector<256x128xf32> -> vector<256x128xf32>
    %cst_7 = arith.constant dense<0xFF800000> : vector<256xf32>
    %17 = vector.multi_reduction <maximumf>, %16, %cst_7 [1] : vector<256x128xf32> to vector<256xf32>
    %18 = vector.shape_cast %17 : vector<256xf32> to vector<256x1xf32>
    %19 = tpu.iota {dimensions = array<i32: 1>} : vector<256x128xi32>
    %20 = arith.sitofp %19 : vector<256x128xi32> to vector<256x128xf32>
    %21 = vector.broadcast %18 : vector<256x1xf32> to vector<256x128xf32>
    %22 = arith.cmpf oeq, %16, %21 : vector<256x128xf32>
    %cst_8 = arith.constant 1.280000e+02 : f32
    %23 = vector.broadcast %cst_8 : f32 to vector<256x128xf32>
    %24 = arith.select %22, %20, %23 : vector<256x128xi1>, vector<256x128xf32>
    %cst_9 = arith.constant dense<0x7F800000> : vector<256xf32>
    %25 = vector.multi_reduction <minimumf>, %24, %cst_9 [1] : vector<256x128xf32> to vector<256xf32>
    %26 = vector.shape_cast %25 : vector<256xf32> to vector<256x1xf32>
    %c256_i32 = arith.constant 256 : i32
    %27 = arith.muli %arg0, %c256_i32 : i32
    %28 = tpu.iota {dimensions = array<i32: 0>} : vector<256x1xi32>
    %29 = vector.broadcast %27 : i32 to vector<256x1xi32>
    %30 = arith.addi %29, %28 : vector<256x1xi32>
    %c512_i32 = arith.constant 512 : i32
    %31 = vector.broadcast %c512_i32 : i32 to vector<256x1xi32>
    %32 = arith.cmpi slt, %30, %31 : vector<256x1xi32>
    %33 = vector.broadcast %26 : vector<256x1xf32> to vector<256x128xf32>
    %34 = arith.cmpf oeq, %20, %33 : vector<256x128xf32>
    %35 = vector.broadcast %32 : vector<256x1xi1> to vector<256x128xi1>
    %36 = arith.andi %34, %35 : vector<256x128xi1>
    %37 = arith.extui %36 : vector<256x128xi1> to vector<256x128xi32>
    %38 = arith.sitofp %37 : vector<256x128xi32> to vector<256x128xf32>
    %c0_10 = arith.constant 0 : index
    %c0_11 = arith.constant 0 : index
    %39 = vector.load %arg3[%c0_10, %c0_11] : memref<128x32xf32, #tpu.memory_space<vmem>>, vector<128x32xf32>
    %40 = arith.truncf %38 : vector<256x128xf32> to vector<256x128xbf16>
    %41 = arith.truncf %3 : vector<256x32xf32> to vector<256x32xbf16>
    %cst_12 = arith.constant dense<0.000000e+00> : vector<128x32xf32>
    %42 = tpu.matmul %40, %41, %cst_12 {dimension_numbers = #tpu.dot_dimension_numbers<[0], [0], [1], [1], [0, 1, 1, 1], [], []>} : vector<256x128xbf16>, vector<256x32xbf16>, vector<128x32xf32> -> vector<128x32xf32>
    %43 = arith.addf %39, %42 : vector<128x32xf32>
    %c0_13 = arith.constant 0 : index
    %c0_14 = arith.constant 0 : index
    %44 = vector.load %arg3[%c0_13, %c0_14] : memref<128x32xf32, #tpu.memory_space<vmem>>, vector<128x32xf32>
    tpu.vector_store %arg3[%c0_13, %c0_14], %43 {strides = array<i32>} : memref<128x32xf32, #tpu.memory_space<vmem>>, vector<128x32xf32>,
    %c0_15 = arith.constant 0 : index
    %c0_16 = arith.constant 0 : index
    %45 = vector.load %arg4[%c0_15, %c0_16] : memref<1x128xf32, #tpu.memory_space<vmem>>, vector<1x128xf32>
    %cst_17 = arith.constant dense<0.000000e+00> : vector<128xf32>
    %46 = vector.multi_reduction <add>, %38, %cst_17 [0] : vector<256x128xf32> to vector<128xf32>
    %47 = vector.shape_cast %46 : vector<128xf32> to vector<1x128xf32>
    %48 = arith.addf %45, %47 : vector<1x128xf32>
    %c0_18 = arith.constant 0 : index
    %c0_19 = arith.constant 0 : index
    %49 = vector.load %arg4[%c0_18, %c0_19] : memref<1x128xf32, #tpu.memory_space<vmem>>, vector<1x128xf32>
    tpu.vector_store %arg4[%c0_18, %c0_19], %48 {strides = array<i32>} : memref<1x128xf32, #tpu.memory_space<vmem>>, vector<1x128xf32>,
    return
  }
  func.func @transform_0(%arg0: i32) -> (i32, i32) {
    %c0_i32 = arith.constant 0 : i32
    %c0_i32_0 = arith.constant 0 : i32
    return %arg0, %c0_i32 : i32, i32
  }
  func.func @transform_1(%arg0: i32) -> (i32, i32) {
    %c0_i32 = arith.constant 0 : i32
    %c0_i32_0 = arith.constant 0 : i32
    %c0_i32_1 = arith.constant 0 : i32
    return %c0_i32, %c0_i32_0 : i32, i32
  }
  func.func @transform_2(%arg0: i32) -> (i32, i32) {
    %c0_i32 = arith.constant 0 : i32
    %c0_i32_0 = arith.constant 0 : i32
    %c0_i32_1 = arith.constant 0 : i32
    return %c0_i32, %c0_i32_0 : i32, i32
  }
  func.func @transform_3(%arg0: i32) -> (i32, i32) {
    %c0_i32 = arith.constant 0 : i32
    %c0_i32_0 = arith.constant 0 : i32
    %c0_i32_1 = arith.constant 0 : i32
    return %c0_i32, %c0_i32_0 : i32, i32
  }
}

module attributes {stable_mosaic.version = 11 : i64} {
  func.func @_readout_kernel(%arg0: i32, %arg1: memref<256x32xf32, #tpu.memory_space<vmem>>, %arg2: memref<32x128xbf16, #tpu.memory_space<vmem>>, %arg3: memref<128x32xbf16, #tpu.memory_space<vmem>>, %arg4: memref<256x32xf32, #tpu.memory_space<vmem>>, %arg5: memref<256x128xf32, #tpu.memory_space<vmem>>) attributes {dimension_semantics = [#tpu.dimension_semantics<parallel>], iteration_bounds = array<i64: 2>, scalar_prefetch = 0 : i64, scratch_operands = 0 : i64, tpu.core_type = #tpu.core_type<tc>, window_params = [{transform_indices = @transform_0, window_bounds = array<i64: 256, 32>}, {pipeline_mode = #tpu.pipeline_mode<synchronous>, transform_indices = @transform_1, window_bounds = array<i64: 32, 128>}, {pipeline_mode = #tpu.pipeline_mode<synchronous>, transform_indices = @transform_2, window_bounds = array<i64: 128, 32>}, {transform_indices = @transform_3, window_bounds = array<i64: 256, 32>}, {transform_indices = @transform_4, window_bounds = array<i64: 256, 128>}]} {
    %c0 = arith.constant 0 : index
    %c0_0 = arith.constant 0 : index
    %0 = vector.load %arg1[%c0, %c0_0] : memref<256x32xf32, #tpu.memory_space<vmem>>, vector<256x32xf32>
    %1 = arith.mulf %0, %0 : vector<256x32xf32>
    %cst = arith.constant dense<0.000000e+00> : vector<256xf32>
    %2 = vector.multi_reduction <add>, %1, %cst [1] : vector<256x32xf32> to vector<256xf32>
    %3 = vector.shape_cast %2 : vector<256xf32> to vector<256x1xf32>
    %4 = math.sqrt %3 : vector<256x1xf32>
    %cst_1 = arith.constant 9.99999996E-13 : f32
    %5 = vector.broadcast %cst_1 : f32 to vector<256x1xf32>
    %6 = arith.maximumf %4, %5 : vector<256x1xf32>
    %cst_2 = arith.constant 1.000000e+00 : f32
    %7 = vector.broadcast %cst_2 : f32 to vector<256x1xf32>
    %8 = arith.divf %7, %6 : vector<256x1xf32>
    %9 = vector.broadcast %8 : vector<256x1xf32> to vector<256x32xf32>
    %10 = arith.mulf %0, %9 : vector<256x32xf32>
    %11 = arith.truncf %10 : vector<256x32xf32> to vector<256x32xbf16>
    %c0_3 = arith.constant 0 : index
    %c0_4 = arith.constant 0 : index
    %12 = vector.load %arg2[%c0_3, %c0_4] : memref<32x128xbf16, #tpu.memory_space<vmem>>, vector<32x128xbf16>
    %cst_5 = arith.constant dense<0.000000e+00> : vector<256x128xf32>
    %13 = tpu.matmul %11, %12, %cst_5 {dimension_numbers = #tpu.dot_dimension_numbers<[1], [0], [0], [1], [0, 0, 1, 1], [], []>} : vector<256x32xbf16>, vector<32x128xbf16>, vector<256x128xf32> -> vector<256x128xf32>
    %c0_6 = arith.constant 0 : index
    %c0_7 = arith.constant 0 : index
    %14 = vector.load %arg5[%c0_6, %c0_7] : memref<256x128xf32, #tpu.memory_space<vmem>>, vector<256x128xf32>
    tpu.vector_store %arg5[%c0_6, %c0_7], %13 {strides = array<i32>} : memref<256x128xf32, #tpu.memory_space<vmem>>, vector<256x128xf32>,
    %cst_8 = arith.constant dense<0xFF800000> : vector<256xf32>
    %15 = vector.multi_reduction <maximumf>, %13, %cst_8 [1] : vector<256x128xf32> to vector<256xf32>
    %16 = vector.shape_cast %15 : vector<256xf32> to vector<256x1xf32>
    %17 = vector.broadcast %16 : vector<256x1xf32> to vector<256x128xf32>
    %18 = arith.subf %13, %17 : vector<256x128xf32>
    %19 = math.exp %18 : vector<256x128xf32>
    %cst_9 = arith.constant dense<0.000000e+00> : vector<256xf32>
    %20 = vector.multi_reduction <add>, %19, %cst_9 [1] : vector<256x128xf32> to vector<256xf32>
    %21 = vector.shape_cast %20 : vector<256xf32> to vector<256x1xf32>
    %22 = vector.broadcast %21 : vector<256x1xf32> to vector<256x128xf32>
    %23 = arith.divf %19, %22 : vector<256x128xf32>
    %24 = arith.truncf %23 : vector<256x128xf32> to vector<256x128xbf16>
    %c0_10 = arith.constant 0 : index
    %c0_11 = arith.constant 0 : index
    %25 = vector.load %arg3[%c0_10, %c0_11] : memref<128x32xbf16, #tpu.memory_space<vmem>>, vector<128x32xbf16>
    %cst_12 = arith.constant dense<0.000000e+00> : vector<256x32xf32>
    %26 = tpu.matmul %24, %25, %cst_12 {dimension_numbers = #tpu.dot_dimension_numbers<[1], [0], [0], [1], [0, 0, 1, 1], [], []>} : vector<256x128xbf16>, vector<128x32xbf16>, vector<256x32xf32> -> vector<256x32xf32>
    %c0_13 = arith.constant 0 : index
    %c0_14 = arith.constant 0 : index
    %27 = vector.load %arg4[%c0_13, %c0_14] : memref<256x32xf32, #tpu.memory_space<vmem>>, vector<256x32xf32>
    tpu.vector_store %arg4[%c0_13, %c0_14], %26 {strides = array<i32>} : memref<256x32xf32, #tpu.memory_space<vmem>>, vector<256x32xf32>,
    return
  }
  func.func @transform_0(%arg0: i32) -> (i32, i32) {
    %c0_i32 = arith.constant 0 : i32
    %c0_i32_0 = arith.constant 0 : i32
    return %arg0, %c0_i32 : i32, i32
  }
  func.func @transform_1(%arg0: i32) -> (i32, i32) {
    %c0_i32 = arith.constant 0 : i32
    %c0_i32_0 = arith.constant 0 : i32
    %c0_i32_1 = arith.constant 0 : i32
    return %c0_i32, %c0_i32_0 : i32, i32
  }
  func.func @transform_2(%arg0: i32) -> (i32, i32) {
    %c0_i32 = arith.constant 0 : i32
    %c0_i32_0 = arith.constant 0 : i32
    %c0_i32_1 = arith.constant 0 : i32
    return %c0_i32, %c0_i32_0 : i32, i32
  }
  func.func @transform_3(%arg0: i32) -> (i32, i32) {
    %c0_i32 = arith.constant 0 : i32
    %c0_i32_0 = arith.constant 0 : i32
    return %arg0, %c0_i32 : i32, i32
  }
  func.func @transform_4(%arg0: i32) -> (i32, i32) {
    %c0_i32 = arith.constant 0 : i32
    %c0_i32_0 = arith.constant 0 : i32
    return %arg0, %c0_i32 : i32, i32
  }
}

</mosaic_0001>

<llo_original>
// kernel: memory_block_forward.2
$region0: #{memory_block_forward.2}
  #allocation0 [shape = 'u32[]', space=smem, size = 0x4, offset = 0x4, fixed_abs, tag = 'smem constant byte address 0x4 - core index']
  #allocation1 [shape = 'u32[144,128]{1,0:T(1,128)}', space=vmem, size = 0x12000, scoped, tag = 'internal scratch']
  %s0 = inlined_call_operand.hbm [shape: f32[512,32], index: 0, kind: input, shape index: {}]
  %s1 = inlined_call_operand.vmem [shape: bf16[32,128], index: 1, kind: input, shape index: {}]
  %s2 = inlined_call_operand.vmem [shape: f32[128,32], index: 2, kind: output, shape index: {0}]
  %s3 = inlined_call_operand.vmem [shape: f32[1,128], index: 3, kind: output, shape index: {1}]
  %4 = xla_tuple %s2, %s3
  %s5 = sld [smem:[#allocation0]]
  $region57: #{memory_block_forward.2} parent=0
    _
  %s7 = ssub.s32 1, %s5
  %s8 = scalar_select 0, %s7, %s5
  $region1: #{memory_block_forward.2} parent=0
    #allocation2 [shape = 'u8[262144]{0}', space=vmem, size = 0x40000, scoped, tag = 'input window, operand 0']
    #allocation3 [shape = 's32[2]{0}', space=sflag, size = 0x8, scoped, tag = 'scoped memory for memory_block_forward.2']
    %9 = vsyncpa [#allocation3], 0
    %s10 = scalar_lea.sflag [#allocation3], 1
    %11 = vsyncpa %s10, 0
    loop: start=0, step=1, limit=4
    $region2: #{memory_block_forward.2} parent=1 // loop_pre_header
      _
    $region3: #{memory_block_forward.2} parent=1 // loop_header
      %s13 = sphi 0, %s17
      %p14 = scmp.ge.s32.totalorder %s13, 4
      %s23 = sphi 0, %s25
      %s26 = sphi 0, %s23
      %s27 = sphi 0, %s26
      %s43 = sphi 0, %s27
      %s47 = sphi 0, %s47
      %s49 = sphi 0, %s47
      %s50 = sphi 0, %s49
      %s64 = sphi 0, %s50
      %s68 = sphi 0, %s68
      %s70 = sphi 0, %s68
      %s71 = sphi 0, %s70
      %s85 = sphi 0, %s71
      %s89 = sphi 0, %s89
      %s91 = sphi 0, %s89
      %s92 = sphi 0, %s91
      %s106 = sphi 0, %s92
    $region4: #{memory_block_forward.2} parent=1 // loop_header_branch
      %16 = sbr.rel (%p14) target = $region8
    $region5: #{memory_block_forward.2} parent=1 // loop_body
      %s18 = ssub.s32 %s13, 1
      %s19 = ssub.s32 %s13, 2
      %s20 = sadd.s32 %s13, 1
      %s21 = ssub.s32 %s13, %s20
      %p22 = scmp.eq.s32.totalorder %s21, 0
      %s24 = sadd.s32 %s23, 1
      %s25 = scalar_select %p22, %s23, %s24
      %p28 = pneg %p22
      %p29 = scmp.eq.s32.totalorder %s13, 1
      %p30 = por %p28, %p29
      %p31 = scmp.ne.s32.totalorder %s23, %s26
      %p32 = scmp.eq.s32.totalorder %s13, 0
      %p33 = por %p31, %p32
      %p34 = scmp.ne.s32.totalorder %s23, %s26
      %p35 = scmp.eq.s32.totalorder %s18, 1
      %p36 = por %p34, %p35
      %p37 = scmp.ne.s32.totalorder %s26, %s27
      %p38 = scmp.eq.s32.totalorder %s18, 0
      %p39 = por %p37, %p38
      %p40 = scmp.ne.s32.totalorder %s26, %s27
      %p41 = scmp.eq.s32.totalorder %s19, 1
      %p42 = por %p40, %p41
      %p44 = scmp.ne.s32.totalorder %s27, %s43
      %p45 = scmp.eq.s32.totalorder %s19, 0
      %p46 = por %p44, %p45
      %s48 = sadd.s32 %s47, 1
      %p51 = scmp.eq.s32.totalorder %s13, 1
      %p52 = scmp.ne.s32.totalorder %s47, %s49
      %p53 = scmp.eq.s32.totalorder %s13, 0
      %p54 = por %p52, %p53
      %p55 = scmp.ne.s32.totalorder %s47, %s49
      %p56 = scmp.eq.s32.totalorder %s18, 1
      %p57 = por %p55, %p56
      %p58 = scmp.ne.s32.totalorder %s49, %s50
      %p59 = scmp.eq.s32.totalorder %s18, 0
      %p60 = por %p58, %p59
      %p61 = scmp.ne.s32.totalorder %s49, %s50
      %p62 = scmp.eq.s32.totalorder %s19, 1
      %p63 = por %p61, %p62
      %p65 = scmp.ne.s32.totalorder %s50, %s64
      %p66 = scmp.eq.s32.totalorder %s19, 0
      %p67 = por %p65, %p66
      %s69 = sadd.s32 %s68, 1
      %p72 = scmp.eq.s32.totalorder %s13, 1
      %p73 = scmp.ne.s32.totalorder %s68, %s70
      %p74 = scmp.eq.s32.totalorder %s13, 0
      %p75 = por %p73, %p74
      %p76 = scmp.ne.s32.totalorder %s68, %s70
      %p77 = scmp.eq.s32.totalorder %s18, 1
      %p78 = por %p76, %p77
      %p79 = scmp.ne.s32.totalorder %s70, %s71
      %p80 = scmp.eq.s32.totalorder %s18, 0
      %p81 = por %p79, %p80
      %p82 = scmp.ne.s32.totalorder %s70, %s71
      %p83 = scmp.eq.s32.totalorder %s19, 1
      %p84 = por %p82, %p83
      %p86 = scmp.ne.s32.totalorder %s71, %s85
      %p87 = scmp.eq.s32.totalorder %s19, 0
      %p88 = por %p86, %p87
      %s90 = sadd.s32 %s89, 1
      %p93 = scmp.eq.s32.totalorder %s13, 1
      %p94 = scmp.ne.s32.totalorder %s89, %s91
      %p95 = scmp.eq.s32.totalorder %s13, 0
      %p96 = por %p94, %p95
      %p97 = scmp.ne.s32.totalorder %s89, %s91
      %p98 = scmp.eq.s32.totalorder %s18, 1
      %p99 = por %p97, %p98
      %p100 = scmp.ne.s32.totalorder %s91, %s92
      %p101 = scmp.eq.s32.totalorder %s18, 0
      %p102 = por %p100, %p101
      %p103 = scmp.ne.s32.totalorder %s91, %s92
      %p104 = scmp.eq.s32.totalorder %s19, 1
      %p105 = por %p103, %p104
      %p107 = scmp.ne.s32.totalorder %s92, %s106
      %p108 = scmp.eq.s32.totalorder %s19, 0
      %p109 = por %p107, %p108
      %p110 = scmp.le.s32.totalorder 1, %s13
      %p111 = scmp.lt.s32.totalorder %s13, 3
      %p112 = pnand %p110, %p111
      %p113 = pneg %p112
      // Predicated region
      $region9: #{memory_block_forward.2} parent=5 // pred_check
        _
      $region10: #{memory_block_forward.2} parent=5 // pred_check_branch
        %115 = sbr.rel (%p112) target = $region12
      $region11: #{memory_block_forward.2} parent=5 // pred_region
        %s116 = ssub.s32 %s13, 1
        // Predicated region
        $region13: #{memory_block_forward.2} parent=11 // pred_check
          %p117 = pneg %p60
        $region14: #{memory_block_forward.2} parent=11 // pred_check_branch
          %119 = sbr.rel (%p117) target = $region16
        $region15: #{memory_block_forward.2} parent=11 // pred_region
          _
        $region16: #{memory_block_forward.2} parent=11 // pred_fallthru
          _
      $region12: #{memory_block_forward.2} parent=5 // pred_fallthru
        _
      %p120 = scmp.lt.s32.totalorder %s13, 2
      // Predicated region
      $region17: #{memory_block_forward.2} parent=5 // pred_check
        %p121 = pneg %p120
      $region18: #{memory_block_forward.2} parent=5 // pred_check_branch
        %123 = sbr.rel (%p121) target = $region20
      $region19: #{memory_block_forward.2} parent=5 // pred_region
        // Predicated region
        $region21: #{memory_block_forward.2} parent=19 // pred_check
          %p124 = pneg %p33
        $region22: #{memory_block_forward.2} parent=19 // pred_check_branch
          %126 = sbr.rel (%p124) target = $region24
        $region23: #{memory_block_forward.2} parent=19 // pred_region
          %s127 = sand.u32 %s23, 1
          %s128 = scalar_lea.sflag [#allocation3], %s127
          %s129 = sand.u32 %s23, 1
          %s130 = smul.addr %s129, 256
          %s131 = scalar_lea.vmem [#allocation2], %s130
          %s132 = smul.u32 32, %s13
          %s134 = ssub.s32 4096, 4096
          %135 = vsyncadd %s128, %s134
          %s136 = smul.addr %s132, 128
          %s137 = scalar_lea.hbm %s0, %s136
          %s138 = sshll.u32 %s131, 4
          %s139 = int_to_ptr.vmem [resolvable:$true] %s138
          %144 = dma.hbm_to_vmem [thread:$0]  %s137, 4096, %s139, %s128, 128, 128, 8
        $region24: #{memory_block_forward.2} parent=19 // pred_fallthru
          _
      $region20: #{memory_block_forward.2} parent=5 // pred_fallthru
        _
      %p145 = scmp.le.s32.totalorder 1, %s13
      %p146 = scmp.lt.s32.totalorder %s13, 3
      %p147 = pnand %p145, %p146
      %p148 = pneg %p147
      // Predicated region
      $region25: #{memory_block_forward.2} parent=5 // pred_check
        _
      $region26: #{memory_block_forward.2} parent=5 // pred_check_branch
        %150 = sbr.rel (%p147) target = $region28
      $region27: #{memory_block_forward.2} parent=5 // pred_region
        %s151 = ssub.s32 %s13, 1
        %s152 = sand.u32 %s26, 1
        %s153 = scalar_lea.sflag [#allocation3], %s152
        %s154 = sand.u32 %s26, 1
        %s155 = smul.addr %s154, 256
        %s156 = scalar_lea.vmem [#allocation2], %s155
        // Predicated region
        $region29: #{memory_block_forward.2} parent=27 // pred_check
          %p157 = pneg %p39
        $region30: #{memory_block_forward.2} parent=27 // pred_check_branch
          %159 = sbr.rel (%p157) target = $region32
        $region31: #{memory_block_forward.2} parent=27 // pred_region
          %160 = dma.done %s153, 4096
        $region32: #{memory_block_forward.2} parent=27 // pred_fallthru
          _
        %s161 = sand.u32 %s26, 1
        %s162 = scalar_lea.sflag [#allocation3], %s161
        %s163 = sand.u32 %s26, 1
        %s164 = smul.addr %s163, 256
        %s165 = scalar_lea.vmem [#allocation2], %s164
        %p166 = pneg %p39
        %p167 = pneg %p36
        %p168 = pneg %p60
        %p169 = pneg %p57
        %p170 = pneg %p81
        %p171 = pneg %p78
        %p172 = pneg %p102
        %p173 = pneg %p99
        %s174 = smul.u32 32, %s18
        %p176 = scmp.eq.s32.totalorder %s18, 0
        // Predicated region
        $region33: #{memory_block_forward.2} parent=27 // pred_check
          %p177 = pneg %p176
        $region34: #{memory_block_forward.2} parent=27 // pred_check_branch
          %179 = sbr.rel (%p177) target = $region36
        $region35: #{memory_block_forward.2} parent=27 // pred_region
          %vm180 = vcmask 261120
          %181 = vst.msk [vmem:[%s2] sm:$0xff] %vm180, 0.0
          %182 = vst.msk [vmem:[%s2 + $0x8] sm:$0xff] %vm180, 0.0
          %183 = vst.msk [vmem:[%s2 + $0x10] sm:$0xff] %vm180, 0.0
          %184 = vst.msk [vmem:[%s2 + $0x18] sm:$0xff] %vm180, 0.0
          %185 = vst.msk [vmem:[%s2 + $0x20] sm:$0xff] %vm180, 0.0
          %186 = vst.msk [vmem:[%s2 + $0x28] sm:$0xff] %vm180, 0.0
          %187 = vst.msk [vmem:[%s2 + $0x30] sm:$0xff] %vm180, 0.0
          %188 = vst.msk [vmem:[%s2 + $0x38] sm:$0xff] %vm180, 0.0
          %189 = vst.msk [vmem:[%s2 + $0x40] sm:$0xff] %vm180, 0.0
          %190 = vst.msk [vmem:[%s2 + $0x48] sm:$0xff] %vm180, 0.0
          %191 = vst.msk [vmem:[%s2 + $0x50] sm:$0xff] %vm180, 0.0
          %192 = vst.msk [vmem:[%s2 + $0x58] sm:$0xff] %vm180, 0.0
          %193 = vst.msk [vmem:[%s2 + $0x60] sm:$0xff] %vm180, 0.0
          %194 = vst.msk [vmem:[%s2 + $0x68] sm:$0xff] %vm180, 0.0
          %195 = vst.msk [vmem:[%s2 + $0x70] sm:$0xff] %vm180, 0.0
          %196 = vst.msk [vmem:[%s2 + $0x78] sm:$0xff] %vm180, 0.0
          %197 = vst [vmem:[%s3] sm:$0x1] 0.0
        $region36: #{memory_block_forward.2} parent=27 // pred_fallthru
          _
        %v198 = vld [vmem:[%s156] sm:$0xff]
        %v199 = vld [vmem:[%s156 + $0x8] sm:$0xff]
        %v200 = vld [vmem:[%s156 + $0x10] sm:$0xff]
        %v201 = vld [vmem:[%s156 + $0x18] sm:$0xff]
        %v202 = vld [vmem:[%s156 + $0x20] sm:$0xff]
        %v203 = vld [vmem:[%s156 + $0x28] sm:$0xff]
        %v204 = vld [vmem:[%s156 + $0x30] sm:$0xff]
        %v205 = vld [vmem:[%s156 + $0x38] sm:$0xff]
        %v206 = vld [vmem:[%s156 + $0x40] sm:$0xff]
        %v207 = vld [vmem:[%s156 + $0x48] sm:$0xff]
        %v208 = vld [vmem:[%s156 + $0x50] sm:$0xff]
        %v209 = vld [vmem:[%s156 + $0x58] sm:$0xff]
        %v210 = vld [vmem:[%s156 + $0x60] sm:$0xff]
        %v211 = vld [vmem:[%s156 + $0x68] sm:$0xff]
        %v212 = vld [vmem:[%s156 + $0x70] sm:$0xff]
        %v213 = vld [vmem:[%s156 + $0x78] sm:$0xff]
        %v214 = vld [vmem:[%s156 + $0x80] sm:$0xff]
        %v215 = vld [vmem:[%s156 + $0x88] sm:$0xff]
        %v216 = vld [vmem:[%s156 + $0x90] sm:$0xff]
        %v217 = vld [vmem:[%s156 + $0x98] sm:$0xff]
        %v218 = vld [vmem:[%s156 + $0xa0] sm:$0xff]
        %v219 = vld [vmem:[%s156 + $0xa8] sm:$0xff]
        %v220 = vld [vmem:[%s156 + $0xb0] sm:$0xff]
        %v221 = vld [vmem:[%s156 + $0xb8] sm:$0xff]
        %v222 = vld [vmem:[%s156 + $0xc0] sm:$0xff]
        %v223 = vld [vmem:[%s156 + $0xc8] sm:$0xff]
        %v224 = vld [vmem:[%s156 + $0xd0] sm:$0xff]
        %v225 = vld [vmem:[%s156 + $0xd8] sm:$0xff]
        %v226 = vld [vmem:[%s156 + $0xe0] sm:$0xff]
        %v227 = vld [vmem:[%s156 + $0xe8] sm:$0xff]
        %v228 = vld [vmem:[%s156 + $0xf0] sm:$0xff]
        %v229 = vld [vmem:[%s156 + $0xf8] sm:$0xff]
        %v230 = vmul.f32 %v198, %v198
        %v231 = vmul.f32 %v199, %v199
        %v232 = vmul.f32 %v200, %v200
        %v233 = vmul.f32 %v201, %v201
        %v234 = vmul.f32 %v202, %v202
        %v235 = vmul.f32 %v203, %v203
        %v236 = vmul.f32 %v204, %v204
        %v237 = vmul.f32 %v205, %v205
        %v238 = vmul.f32 %v206, %v206
        %v239 = vmul.f32 %v207, %v207
        %v240 = vmul.f32 %v208, %v208
        %v241 = vmul.f32 %v209, %v209
        %v242 = vmul.f32 %v210, %v210
        %v243 = vmul.f32 %v211, %v211
        %v244 = vmul.f32 %v212, %v212
        %v245 = vmul.f32 %v213, %v213
        %v246 = vmul.f32 %v214, %v214
        %v247 = vmul.f32 %v215, %v215
        %v248 = vmul.f32 %v216, %v216
        %v249 = vmul.f32 %v217, %v217
        %v250 = vmul.f32 %v218, %v218
        %v251 = vmul.f32 %v219, %v219
        %v252 = vmul.f32 %v220, %v220
        %v253 = vmul.f32 %v221, %v221
        %v254 = vmul.f32 %v222, %v222
        %v255 = vmul.f32 %v223, %v223
        %v256 = vmul.f32 %v224, %v224
        %v257 = vmul.f32 %v225, %v225
        %v258 = vmul.f32 %v226, %v226
        %v259 = vmul.f32 %v227, %v227
        %v260 = vmul.f32 %v228, %v228
        %v261 = vmul.f32 %v229, %v229
        %vm262 = vcmask 261120
        %v263 = vsel %vm262, %v230, 0.0
        %264 = vadd.xlane.f32.xlu0 %v263
        %v265 = vpop.xlane.xlu0 %264
        %v266 = vsel %vm262, %v231, 0.0
        %267 = vadd.xlane.f32.xlu0 %v266
        %v268 = vpop.xlane.xlu0 %267
        %v269 = vsel %vm262, %v232, 0.0
        %270 = vadd.xlane.f32.xlu0 %v269
        %v271 = vpop.xlane.xlu0 %270
        %v272 = vsel %vm262, %v233, 0.0
        %273 = vadd.xlane.f32.xlu0 %v272
        %v274 = vpop.xlane.xlu0 %273
        %v275 = vsel %vm262, %v234, 0.0
        %276 = vadd.xlane.f32.xlu0 %v275
        %v277 = vpop.xlane.xlu0 %276
        %v278 = vsel %vm262, %v235, 0.0
        %279 = vadd.xlane.f32.xlu0 %v278
        %v280 = vpop.xlane.xlu0 %279
        %v281 = vsel %vm262, %v236, 0.0
        %282 = vadd.xlane.f32.xlu0 %v281
        %v283 = vpop.xlane.xlu0 %282
        %v284 = vsel %vm262, %v237, 0.0
        %285 = vadd.xlane.f32.xlu0 %v284
        %v286 = vpop.xlane.xlu0 %285
        %v287 = vsel %vm262, %v238, 0.0
        %288 = vadd.xlane.f32.xlu0 %v287
        %v289 = vpop.xlane.xlu0 %288
        %v290 = vsel %vm262, %v239, 0.0
        %291 = vadd.xlane.f32.xlu0 %v290
        %v292 = vpop.xlane.xlu0 %291
        %v293 = vsel %vm262, %v240, 0.0
        %294 = vadd.xlane.f32.xlu0 %v293
        %v295 = vpop.xlane.xlu0 %294
        %v296 = vsel %vm262, %v241, 0.0
        %297 = vadd.xlane.f32.xlu0 %v296
        %v298 = vpop.xlane.xlu0 %297
        %v299 = vsel %vm262, %v242, 0.0
        %300 = vadd.xlane.f32.xlu0 %v299
        %v301 = vpop.xlane.xlu0 %300
        %v302 = vsel %vm262, %v243, 0.0
        %303 = vadd.xlane.f32.xlu0 %v302
        %v304 = vpop.xlane.xlu0 %303
        %v305 = vsel %vm262, %v244, 0.0
        %306 = vadd.xlane.f32.xlu0 %v305
        %v307 = vpop.xlane.xlu0 %306
        %v308 = vsel %vm262, %v245, 0.0
        %309 = vadd.xlane.f32.xlu0 %v308
        %v310 = vpop.xlane.xlu0 %309
        %v311 = vsel %vm262, %v246, 0.0
        %312 = vadd.xlane.f32.xlu0 %v311
        %v313 = vpop.xlane.xlu0 %312
        %v314 = vsel %vm262, %v247, 0.0
        %315 = vadd.xlane.f32.xlu0 %v314
        %v316 = vpop.xlane.xlu0 %315
        %v317 = vsel %vm262, %v248, 0.0
        %318 = vadd.xlane.f32.xlu0 %v317
        %v319 = vpop.xlane.xlu0 %318
        %v320 = vsel %vm262, %v249, 0.0
        %321 = vadd.xlane.f32.xlu0 %v320
        %v322 = vpop.xlane.xlu0 %321
        %v323 = vsel %vm262, %v250, 0.0
        %324 = vadd.xlane.f32.xlu0 %v323
        %v325 = vpop.xlane.xlu0 %324
        %v326 = vsel %vm262, %v251, 0.0
        %327 = vadd.xlane.f32.xlu0 %v326
        %v328 = vpop.xlane.xlu0 %327
        %v329 = vsel %vm262, %v252, 0.0
        %330 = vadd.xlane.f32.xlu0 %v329
        %v331 = vpop.xlane.xlu0 %330
        %v332 = vsel %vm262, %v253, 0.0
        %333 = vadd.xlane.f32.xlu0 %v332
        %v334 = vpop.xlane.xlu0 %333
        %v335 = vsel %vm262, %v254, 0.0
        %336 = vadd.xlane.f32.xlu0 %v335
        %v337 = vpop.xlane.xlu0 %336
        %v338 = vsel %vm262, %v255, 0.0
        %339 = vadd.xlane.f32.xlu0 %v338
        %v340 = vpop.xlane.xlu0 %339
        %v341 = vsel %vm262, %v256, 0.0
        %342 = vadd.xlane.f32.xlu0 %v341
        %v343 = vpop.xlane.xlu0 %342
        %v344 = vsel %vm262, %v257, 0.0
        %345 = vadd.xlane.f32.xlu0 %v344
        %v346 = vpop.xlane.xlu0 %345
        %v347 = vsel %vm262, %v258, 0.0
        %348 = vadd.xlane.f32.xlu0 %v347
        %v349 = vpop.xlane.xlu0 %348
        %v350 = vsel %vm262, %v259, 0.0
        %351 = vadd.xlane.f32.xlu0 %v350
        %v352 = vpop.xlane.xlu0 %351
        %v353 = vsel %vm262, %v260, 0.0
        %354 = vadd.xlane.f32.xlu0 %v353
        %v355 = vpop.xlane.xlu0 %354
        %v356 = vsel %vm262, %v261, 0.0
        %357 = vadd.xlane.f32.xlu0 %v356
        %v358 = vpop.xlane.xlu0 %357
        %v359 = vrsqrt.pop %v265
        %v360 = vmul.f32 %v265, %v359
        %vm361 = vcmp.eq.f32.partialorder %v265, inf
        %v362 = vsel %vm361, %v265, %v360
        %vm363 = vcmp.eq.f32.partialorder %v265, 0.0
        %v364 = vand.u32 %v265, 2147483648
        %v365 = vsel %vm363, %v364, %v362
        %v366 = vrsqrt.pop %v268
        %v367 = vmul.f32 %v268, %v366
        %vm368 = vcmp.eq.f32.partialorder %v268, inf
        %v369 = vsel %vm368, %v268, %v367
        %vm370 = vcmp.eq.f32.partialorder %v268, 0.0
        %v371 = vand.u32 %v268, 2147483648
        %v372 = vsel %vm370, %v371, %v369
        %v373 = vrsqrt.pop %v271
        %v374 = vmul.f32 %v271, %v373
        %vm375 = vcmp.eq.f32.partialorder %v271, inf
        %v376 = vsel %vm375, %v271, %v374
        %vm377 = vcmp.eq.f32.partialorder %v271, 0.0
        %v378 = vand.u32 %v271, 2147483648
        %v379 = vsel %vm377, %v378, %v376
        %v380 = vrsqrt.pop %v274
        %v381 = vmul.f32 %v274, %v380
        %vm382 = vcmp.eq.f32.partialorder %v274, inf
        %v383 = vsel %vm382, %v274, %v381
        %vm384 = vcmp.eq.f32.partialorder %v274, 0.0
        %v385 = vand.u32 %v274, 2147483648
        %v386 = vsel %vm384, %v385, %v383
        %v387 = vrsqrt.pop %v277
        %v388 = vmul.f32 %v277, %v387
        %vm389 = vcmp.eq.f32.partialorder %v277, inf
        %v390 = vsel %vm389, %v277, %v388
        %vm391 = vcmp.eq.f32.partialorder %v277, 0.0
        %v392 = vand.u32 %v277, 2147483648
        %v393 = vsel %vm391, %v392, %v390
        %v394 = vrsqrt.pop %v280
        %v395 = vmul.f32 %v280, %v394
        %vm396 = vcmp.eq.f32.partialorder %v280, inf
        %v397 = vsel %vm396, %v280, %v395
        %vm398 = vcmp.eq.f32.partialorder %v280, 0.0
        %v399 = vand.u32 %v280, 2147483648
        %v400 = vsel %vm398, %v399, %v397
        %v401 = vrsqrt.pop %v283
        %v402 = vmul.f32 %v283, %v401
        %vm403 = vcmp.eq.f32.partialorder %v283, inf
        %v404 = vsel %vm403, %v283, %v402
        %vm405 = vcmp.eq.f32.partialorder %v283, 0.0
        %v406 = vand.u32 %v283, 2147483648
        %v407 = vsel %vm405, %v406, %v404
        %v408 = vrsqrt.pop %v286
        %v409 = vmul.f32 %v286, %v408
        %vm410 = vcmp.eq.f32.partialorder %v286, inf
        %v411 = vsel %vm410, %v286, %v409
        %vm412 = vcmp.eq.f32.partialorder %v286, 0.0
        %v413 = vand.u32 %v286, 2147483648
        %v414 = vsel %vm412, %v413, %v411
        %v415 = vrsqrt.pop %v289
        %v416 = vmul.f32 %v289, %v415
        %vm417 = vcmp.eq.f32.partialorder %v289, inf
        %v418 = vsel %vm417, %v289, %v416
        %vm419 = vcmp.eq.f32.partialorder %v289, 0.0
        %v420 = vand.u32 %v289, 2147483648
        %v421 = vsel %vm419, %v420, %v418
        %v422 = vrsqrt.pop %v292
        %v423 = vmul.f32 %v292, %v422
        %vm424 = vcmp.eq.f32.partialorder %v292, inf
        %v425 = vsel %vm424, %v292, %v423
        %vm426 = vcmp.eq.f32.partialorder %v292, 0.0
        %v427 = vand.u32 %v292, 2147483648
        %v428 = vsel %vm426, %v427, %v425
        %v429 = vrsqrt.pop %v295
        %v430 = vmul.f32 %v295, %v429
        %vm431 = vcmp.eq.f32.partialorder %v295, inf
        %v432 = vsel %vm431, %v295, %v430
        %vm433 = vcmp.eq.f32.partialorder %v295, 0.0
        %v434 = vand.u32 %v295, 2147483648
        %v435 = vsel %vm433, %v434, %v432
        %v436 = vrsqrt.pop %v298
        %v437 = vmul.f32 %v298, %v436
        %vm438 = vcmp.eq.f32.partialorder %v298, inf
        %v439 = vsel %vm438, %v298, %v437
        %vm440 = vcmp.eq.f32.partialorder %v298, 0.0
        %v441 = vand.u32 %v298, 2147483648
        %v442 = vsel %vm440, %v441, %v439
        %v443 = vrsqrt.pop %v301
        %v444 = vmul.f32 %v301, %v443
        %vm445 = vcmp.eq.f32.partialorder %v301, inf
        %v446 = vsel %vm445, %v301, %v444
        %vm447 = vcmp.eq.f32.partialorder %v301, 0.0
        %v448 = vand.u32 %v301, 2147483648
        %v449 = vsel %vm447, %v448, %v446
        %v450 = vrsqrt.pop %v304
        %v451 = vmul.f32 %v304, %v450
        %vm452 = vcmp.eq.f32.partialorder %v304, inf
        %v453 = vsel %vm452, %v304, %v451
        %vm454 = vcmp.eq.f32.partialorder %v304, 0.0
        %v455 = vand.u32 %v304, 2147483648
        %v456 = vsel %vm454, %v455, %v453
        %v457 = vrsqrt.pop %v307
        %v458 = vmul.f32 %v307, %v457
        %vm459 = vcmp.eq.f32.partialorder %v307, inf
        %v460 = vsel %vm459, %v307, %v458
        %vm461 = vcmp.eq.f32.partialorder %v307, 0.0
        %v462 = vand.u32 %v307, 2147483648
        %v463 = vsel %vm461, %v462, %v460
        %v464 = vrsqrt.pop %v310
        %v465 = vmul.f32 %v310, %v464
        %vm466 = vcmp.eq.f32.partialorder %v310, inf
        %v467 = vsel %vm466, %v310, %v465
        %vm468 = vcmp.eq.f32.partialorder %v310, 0.0
        %v469 = vand.u32 %v310, 2147483648
        %v470 = vsel %vm468, %v469, %v467
        %v471 = vrsqrt.pop %v313
        %v472 = vmul.f32 %v313, %v471
        %vm473 = vcmp.eq.f32.partialorder %v313, inf
        %v474 = vsel %vm473, %v313, %v472
        %vm475 = vcmp.eq.f32.partialorder %v313, 0.0
        %v476 = vand.u32 %v313, 2147483648
        %v477 = vsel %vm475, %v476, %v474
        %v478 = vrsqrt.pop %v316
        %v479 = vmul.f32 %v316, %v478
        %vm480 = vcmp.eq.f32.partialorder %v316, inf
        %v481 = vsel %vm480, %v316, %v479
        %vm482 = vcmp.eq.f32.partialorder %v316, 0.0
        %v483 = vand.u32 %v316, 2147483648
        %v484 = vsel %vm482, %v483, %v481
        %v485 = vrsqrt.pop %v319
        %v486 = vmul.f32 %v319, %v485
        %vm487 = vcmp.eq.f32.partialorder %v319, inf
        %v488 = vsel %vm487, %v319, %v486
        %vm489 = vcmp.eq.f32.partialorder %v319, 0.0
        %v490 = vand.u32 %v319, 2147483648
        %v491 = vsel %vm489, %v490, %v488
        %v492 = vrsqrt.pop %v322
        %v493 = vmul.f32 %v322, %v492
        %vm494 = vcmp.eq.f32.partialorder %v322, inf
        %v495 = vsel %vm494, %v322, %v493
        %vm496 = vcmp.eq.f32.partialorder %v322, 0.0
        %v497 = vand.u32 %v322, 2147483648
        %v498 = vsel %vm496, %v497, %v495
        %v499 = vrsqrt.pop %v325
        %v500 = vmul.f32 %v325, %v499
        %vm501 = vcmp.eq.f32.partialorder %v325, inf
        %v502 = vsel %vm501, %v325, %v500
        %vm503 = vcmp.eq.f32.partialorder %v325, 0.0
        %v504 = vand.u32 %v325, 2147483648
        %v505 = vsel %vm503, %v504, %v502
        %v506 = vrsqrt.pop %v328
        %v507 = vmul.f32 %v328, %v506
        %vm508 = vcmp.eq.f32.partialorder %v328, inf
        %v509 = vsel %vm508, %v328, %v507
        %vm510 = vcmp.eq.f32.partialorder %v328, 0.0
        %v511 = vand.u32 %v328, 2147483648
        %v512 = vsel %vm510, %v511, %v509
        %v513 = vrsqrt.pop %v331
        %v514 = vmul.f32 %v331, %v513
        %vm515 = vcmp.eq.f32.partialorder %v331, inf
        %v516 = vsel %vm515, %v331, %v514
        %vm517 = vcmp.eq.f32.partialorder %v331, 0.0
        %v518 = vand.u32 %v331, 2147483648
        %v519 = vsel %vm517, %v518, %v516
        %v520 = vrsqrt.pop %v334
        %v521 = vmul.f32 %v334, %v520
        %vm522 = vcmp.eq.f32.partialorder %v334, inf
        %v523 = vsel %vm522, %v334, %v521
        %vm524 = vcmp.eq.f32.partialorder %v334, 0.0
        %v525 = vand.u32 %v334, 2147483648
        %v526 = vsel %vm524, %v525, %v523
        %v527 = vrsqrt.pop %v337
        %v528 = vmul.f32 %v337, %v527
        %vm529 = vcmp.eq.f32.partialorder %v337, inf
        %v530 = vsel %vm529, %v337, %v528
        %vm531 = vcmp.eq.f32.partialorder %v337, 0.0
        %v532 = vand.u32 %v337, 2147483648
        %v533 = vsel %vm531, %v532, %v530
        %v534 = vrsqrt.pop %v340
        %v535 = vmul.f32 %v340, %v534
        %vm536 = vcmp.eq.f32.partialorder %v340, inf
        %v537 = vsel %vm536, %v340, %v535
        %vm538 = vcmp.eq.f32.partialorder %v340, 0.0
        %v539 = vand.u32 %v340, 2147483648
        %v540 = vsel %vm538, %v539, %v537
        %v541 = vrsqrt.pop %v343
        %v542 = vmul.f32 %v343, %v541
        %vm543 = vcmp.eq.f32.partialorder %v343, inf
        %v544 = vsel %vm543, %v343, %v542
        %vm545 = vcmp.eq.f32.partialorder %v343, 0.0
        %v546 = vand.u32 %v343, 2147483648
        %v547 = vsel %vm545, %v546, %v544
        %v548 = vrsqrt.pop %v346
        %v549 = vmul.f32 %v346, %v548
        %vm550 = vcmp.eq.f32.partialorder %v346, inf
        %v551 = vsel %vm550, %v346, %v549
        %vm552 = vcmp.eq.f32.partialorder %v346, 0.0
        %v553 = vand.u32 %v346, 2147483648
        %v554 = vsel %vm552, %v553, %v551
        %v555 = vrsqrt.pop %v349
        %v556 = vmul.f32 %v349, %v555
        %vm557 = vcmp.eq.f32.partialorder %v349, inf
        %v558 = vsel %vm557, %v349, %v556
        %vm559 = vcmp.eq.f32.partialorder %v349, 0.0
        %v560 = vand.u32 %v349, 2147483648
        %v561 = vsel %vm559, %v560, %v558
        %v562 = vrsqrt.pop %v352
        %v563 = vmul.f32 %v352, %v562
        %vm564 = vcmp.eq.f32.partialorder %v352, inf
        %v565 = vsel %vm564, %v352, %v563
        %vm566 = vcmp.eq.f32.partialorder %v352, 0.0
        %v567 = vand.u32 %v352, 2147483648
        %v568 = vsel %vm566, %v567, %v565
        %v569 = vrsqrt.pop %v355
        %v570 = vmul.f32 %v355, %v569
        %vm571 = vcmp.eq.f32.partialorder %v355, inf
        %v572 = vsel %vm571, %v355, %v570
        %vm573 = vcmp.eq.f32.partialorder %v355, 0.0
        %v574 = vand.u32 %v355, 2147483648
        %v575 = vsel %vm573, %v574, %v572
        %v576 = vrsqrt.pop %v358
        %v577 = vmul.f32 %v358, %v576
        %vm578 = vcmp.eq.f32.partialorder %v358, inf
        %v579 = vsel %vm578, %v358, %v577
        %vm580 = vcmp.eq.f32.partialorder %v358, 0.0
        %v581 = vand.u32 %v358, 2147483648
        %v582 = vsel %vm580, %v581, %v579
        %v583 = vmax.f32 %v365, 1e-12
        %v584 = vmax.f32 %v372, 1e-12
        %v585 = vmax.f32 %v379, 1e-12
        %v586 = vmax.f32 %v386, 1e-12
        %v587 = vmax.f32 %v393, 1e-12
        %v588 = vmax.f32 %v400, 1e-12
        %v589 = vmax.f32 %v407, 1e-12
        %v590 = vmax.f32 %v414, 1e-12
        %v591 = vmax.f32 %v421, 1e-12
        %v592 = vmax.f32 %v428, 1e-12
        %v593 = vmax.f32 %v435, 1e-12
        %v594 = vmax.f32 %v442, 1e-12
        %v595 = vmax.f32 %v449, 1e-12
        %v596 = vmax.f32 %v456, 1e-12
        %v597 = vmax.f32 %v463, 1e-12
        %v598 = vmax.f32 %v470, 1e-12
        %v599 = vmax.f32 %v477, 1e-12
        %v600 = vmax.f32 %v484, 1e-12
        %v601 = vmax.f32 %v491, 1e-12
        %v602 = vmax.f32 %v498, 1e-12
        %v603 = vmax.f32 %v505, 1e-12
        %v604 = vmax.f32 %v512, 1e-12
        %v605 = vmax.f32 %v519, 1e-12
        %v606 = vmax.f32 %v526, 1e-12
        %v607 = vmax.f32 %v533, 1e-12
        %v608 = vmax.f32 %v540, 1e-12
        %v609 = vmax.f32 %v547, 1e-12
        %v610 = vmax.f32 %v554, 1e-12
        %v611 = vmax.f32 %v561, 1e-12
        %v612 = vmax.f32 %v568, 1e-12
        %v613 = vmax.f32 %v575, 1e-12
        %v614 = vmax.f32 %v582, 1e-12
        %v615 = vrcp.pop %v583
        %v616 = vmul.f32 1.0, %v615
        %v617 = vrcp.pop %v584
        %v618 = vmul.f32 1.0, %v617
        %v619 = vrcp.pop %v585
        %v620 = vmul.f32 1.0, %v619
        %v621 = vrcp.pop %v586
        %v622 = vmul.f32 1.0, %v621
        %v623 = vrcp.pop %v587
        %v624 = vmul.f32 1.0, %v623
        %v625 = vrcp.pop %v588
        %v626 = vmul.f32 1.0, %v625
        %v627 = vrcp.pop %v589
        %v628 = vmul.f32 1.0, %v627
        %v629 = vrcp.pop %v590
        %v630 = vmul.f32 1.0, %v629
        %v631 = vrcp.pop %v591
        %v632 = vmul.f32 1.0, %v631
        %v633 = vrcp.pop %v592
        %v634 = vmul.f32 1.0, %v633
        %v635 = vrcp.pop %v593
        %v636 = vmul.f32 1.0, %v635
        %v637 = vrcp.pop %v594
        %v638 = vmul.f32 1.0, %v637
        %v639 = vrcp.pop %v595
        %v640 = vmul.f32 1.0, %v639
        %v641 = vrcp.pop %v596
        %v642 = vmul.f32 1.0, %v641
        %v643 = vrcp.pop %v597
        %v644 = vmul.f32 1.0, %v643
        %v645 = vrcp.pop %v598
        %v646 = vmul.f32 1.0, %v645
        %v647 = vrcp.pop %v599
        %v648 = vmul.f32 1.0, %v647
        %v649 = vrcp.pop %v600
        %v650 = vmul.f32 1.0, %v649
        %v651 = vrcp.pop %v601
        %v652 = vmul.f32 1.0, %v651
        %v653 = vrcp.pop %v602
        %v654 = vmul.f32 1.0, %v653
        %v655 = vrcp.pop %v603
        %v656 = vmul.f32 1.0, %v655
        %v657 = vrcp.pop %v604
        %v658 = vmul.f32 1.0, %v657
        %v659 = vrcp.pop %v605
        %v660 = vmul.f32 1.0, %v659
        %v661 = vrcp.pop %v606
        %v662 = vmul.f32 1.0, %v661
        %v663 = vrcp.pop %v607
        %v664 = vmul.f32 1.0, %v663
        %v665 = vrcp.pop %v608
        %v666 = vmul.f32 1.0, %v665
        %v667 = vrcp.pop %v609
        %v668 = vmul.f32 1.0, %v667
        %v669 = vrcp.pop %v610
        %v670 = vmul.f32 1.0, %v669
        %v671 = vrcp.pop %v611
        %v672 = vmul.f32 1.0, %v671
        %v673 = vrcp.pop %v612
        %v674 = vmul.f32 1.0, %v673
        %v675 = vrcp.pop %v613
        %v676 = vmul.f32 1.0, %v675
        %v677 = vrcp.pop %v614
        %v678 = vmul.f32 1.0, %v677
        %v679 = vmul.f32 %v198, %v616
        %v680 = vmul.f32 %v199, %v618
        %v681 = vmul.f32 %v200, %v620
        %v682 = vmul.f32 %v201, %v622
        %v683 = vmul.f32 %v202, %v624
        %v684 = vmul.f32 %v203, %v626
        %v685 = vmul.f32 %v204, %v628
        %v686 = vmul.f32 %v205, %v630
        %v687 = vmul.f32 %v206, %v632
        %v688 = vmul.f32 %v207, %v634
        %v689 = vmul.f32 %v208, %v636
        %v690 = vmul.f32 %v209, %v638
        %v691 = vmul.f32 %v210, %v640
        %v692 = vmul.f32 %v211, %v642
        %v693 = vmul.f32 %v212, %v644
        %v694 = vmul.f32 %v213, %v646
        %v695 = vmul.f32 %v214, %v648
        %v696 = vmul.f32 %v215, %v650
        %v697 = vmul.f32 %v216, %v652
        %v698 = vmul.f32 %v217, %v654
        %v699 = vmul.f32 %v218, %v656
        %v700 = vmul.f32 %v219, %v658
        %v701 = vmul.f32 %v220, %v660
        %v702 = vmul.f32 %v221, %v662
        %v703 = vmul.f32 %v222, %v664
        %v704 = vmul.f32 %v223, %v666
        %v705 = vmul.f32 %v224, %v668
        %v706 = vmul.f32 %v225, %v670
        %v707 = vmul.f32 %v226, %v672
        %v708 = vmul.f32 %v227, %v674
        %v709 = vmul.f32 %v228, %v676
        %v710 = vmul.f32 %v229, %v678
        %v711 = vpack.c.bf16 %v680, %v679
        %v712 = vpack.c.bf16 %v682, %v681
        %v713 = vpack.c.bf16 %v684, %v683
        %v714 = vpack.c.bf16 %v686, %v685
        %v715 = vpack.c.bf16 %v688, %v687
        %v716 = vpack.c.bf16 %v690, %v689
        %v717 = vpack.c.bf16 %v692, %v691
        %v718 = vpack.c.bf16 %v694, %v693
        %v719 = vpack.c.bf16 %v696, %v695
        %v720 = vpack.c.bf16 %v698, %v697
        %v721 = vpack.c.bf16 %v700, %v699
        %v722 = vpack.c.bf16 %v702, %v701
        %v723 = vpack.c.bf16 %v704, %v703
        %v724 = vpack.c.bf16 %v706, %v705
        %v725 = vpack.c.bf16 %v708, %v707
        %v726 = vpack.c.bf16 %v710, %v709
        %v727 = vld [vmem:[%s1] sm:$0xf]
        %v728 = vld [vmem:[%s1 + $0x4] sm:$0xf]
        %v729 = vld [vmem:[%s1 + $0x8] sm:$0xf]
        %v730 = vld [vmem:[%s1 + $0xc] sm:$0xf]
        %v735 = vunpack.c.l.b16 %v727
        %v736 = vunpack.c.l.b16 %v728
        %v737 = vunpack.c.l.b16 %v729
        %v738 = vunpack.c.l.b16 %v730
        %v739 = vpack.c.b16 %v736, %v735
        %v740 = vpack.c.b16 %v738, %v737
        %v744 = vsel %vm262, %v711, 0
        %v747 = vsel %vm262, %v712, 0
        %v750 = vsel %vm262, %v713, 0
        %v753 = vsel %vm262, %v714, 0
        %v756 = vsel %vm262, %v715, 0
        %v759 = vsel %vm262, %v716, 0
        %v762 = vsel %vm262, %v717, 0
        %v765 = vsel %vm262, %v718, 0
        %v768 = vsel %vm262, %v719, 0
        %v771 = vsel %vm262, %v720, 0
        %v774 = vsel %vm262, %v721, 0
        %v777 = vsel %vm262, %v722, 0
        %v780 = vsel %vm262, %v723, 0
        %v783 = vsel %vm262, %v724, 0
        %v786 = vsel %vm262, %v725, 0
        %v789 = vsel %vm262, %v726, 0
        %791 = vmatprep.subr.bf16.mxu0 0
        %792 = vmatpush1.bf16.msra.mxu0 %v739
        %793 = vmatprep.subr.bf16.mxu0 0
        %794 = vmatpush1.bf16.msra.mxu0 %v740
        %795 = vmatprep.subr.bf16.mxu0 0
        %796 = vmatpush1.bf16.msra.mxu0 0
        %797 = vmatprep.subr.bf16.mxu0 0
        %798 = vmatpush1.bf16.msra.mxu0 0
        %799 = vmatprep.subr.bf16.mxu0 0
        %800 = vmatpush1.bf16.msra.mxu0 0
        %801 = vmatprep.subr.bf16.mxu0 0
        %802 = vmatpush1.bf16.msra.mxu0 0
        %803 = vmatprep.subr.bf16.mxu0 0
        %804 = vmatpush1.bf16.msra.mxu0 0
        %805 = vmatprep.subr.bf16.mxu0 0
        %806 = vmatpush1.bf16.msra.mxu0 0
        %807 = vmatprep.subr.bf16.mxu0 0
        %808 = vmatpush1.bf16.msra.mxu0 0
        %809 = vmatprep.subr.bf16.mxu0 0
        %810 = vmatpush1.bf16.msra.mxu0 0
        %811 = vmatprep.subr.bf16.mxu0 0
        %812 = vmatpush1.bf16.msra.mxu0 0
        %813 = vmatprep.subr.bf16.mxu0 0
        %814 = vmatpush1.bf16.msra.mxu0 0
        %815 = vmatprep.subr.bf16.mxu0 0
        %816 = vmatpush1.bf16.msra.mxu0 0
        %817 = vmatprep.subr.bf16.mxu0 0
        %818 = vmatpush1.bf16.msra.mxu0 0
        %819 = vmatprep.subr.bf16.mxu0 0
        %820 = vmatpush1.bf16.msra.mxu0 0
        %821 = vmatprep.subr.bf16.mxu0 0
        %822 = vmatpush1.bf16.msra.mxu0 0
        %823 = vmatprep.mubr.bf16.mxu0 0
        %824 = vmatmul.mubr.bf16.gmra.mrb[0].mxu0 %v744
        %v825 = vpop.f32.mrb[0].mxu0
        %v826 = vadd.f32 0.0, %v825
        %v827 = vpop.f32.mrb[0].mxu0
        %v828 = vpop.f32.mrb[0].mxu0
        %v829 = vadd.f32 0.0, %v828
        %v830 = vpop.f32.mrb[0].mxu0
        %831 = vmatprep.mubr.bf16.mxu0 0
        %832 = vmatmul.mubr.bf16.gmra.mrb[0].mxu0 %v747
        %v833 = vpop.f32.mrb[0].mxu0
        %v834 = vadd.f32 0.0, %v833
        %v835 = vpop.f32.mrb[0].mxu0
        %v836 = vpop.f32.mrb[0].mxu0
        %v837 = vadd.f32 0.0, %v836
        %v838 = vpop.f32.mrb[0].mxu0
        %839 = vmatprep.mubr.bf16.mxu0 0
        %840 = vmatmul.mubr.bf16.gmra.mrb[0].mxu0 %v750
        %v841 = vpop.f32.mrb[0].mxu0
        %v842 = vadd.f32 0.0, %v841
        %v843 = vpop.f32.mrb[0].mxu0
        %v844 = vpop.f32.mrb[0].mxu0
        %v845 = vadd.f32 0.0, %v844
        %v846 = vpop.f32.mrb[0].mxu0
        %847 = vmatprep.mubr.bf16.mxu0 0
        %848 = vmatmul.mubr.bf16.gmra.mrb[0].mxu0 %v753
        %v849 = vpop.f32.mrb[0].mxu0
        %v850 = vadd.f32 0.0, %v849
        %v851 = vpop.f32.mrb[0].mxu0
        %v852 = vpop.f32.mrb[0].mxu0
        %v853 = vadd.f32 0.0, %v852
        %v854 = vpop.f32.mrb[0].mxu0
        %855 = vmatprep.mubr.bf16.mxu0 0
        %856 = vmatmul.mubr.bf16.gmra.mrb[0].mxu0 %v756
        %v857 = vpop.f32.mrb[0].mxu0
        %v858 = vadd.f32 0.0, %v857
        %v859 = vpop.f32.mrb[0].mxu0
        %v860 = vpop.f32.mrb[0].mxu0
        %v861 = vadd.f32 0.0, %v860
        %v862 = vpop.f32.mrb[0].mxu0
        %863 = vmatprep.mubr.bf16.mxu0 0
        %864 = vmatmul.mubr.bf16.gmra.mrb[0].mxu0 %v759
        %v865 = vpop.f32.mrb[0].mxu0
        %v866 = vadd.f32 0.0, %v865
        %v867 = vpop.f32.mrb[0].mxu0
        %v868 = vpop.f32.mrb[0].mxu0
        %v869 = vadd.f32 0.0, %v868
        %v870 = vpop.f32.mrb[0].mxu0
        %871 = vmatprep.mubr.bf16.mxu0 0
        %872 = vmatmul.mubr.bf16.gmra.mrb[0].mxu0 %v762
        %v873 = vpop.f32.mrb[0].mxu0
        %v874 = vadd.f32 0.0, %v873
        %v875 = vpop.f32.mrb[0].mxu0
        %v876 = vpop.f32.mrb[0].mxu0
        %v877 = vadd.f32 0.0, %v876
        %v878 = vpop.f32.mrb[0].mxu0
        %879 = vmatprep.mubr.bf16.mxu0 0
        %880 = vmatmul.mubr.bf16.gmra.mrb[0].mxu0 %v765
        %v881 = vpop.f32.mrb[0].mxu0
        %v882 = vadd.f32 0.0, %v881
        %v883 = vpop.f32.mrb[0].mxu0
        %v884 = vpop.f32.mrb[0].mxu0
        %v885 = vadd.f32 0.0, %v884
        %v886 = vpop.f32.mrb[0].mxu0
        %887 = vmatprep.mubr.bf16.mxu0 0
        %888 = vmatmul.mubr.bf16.gmra.mrb[0].mxu0 %v768
        %v889 = vpop.f32.mrb[0].mxu0
        %v890 = vadd.f32 0.0, %v889
        %v891 = vpop.f32.mrb[0].mxu0
        %v892 = vpop.f32.mrb[0].mxu0
        %v893 = vadd.f32 0.0, %v892
        %v894 = vpop.f32.mrb[0].mxu0
        %895 = vmatprep.mubr.bf16.mxu0 0
        %896 = vmatmul.mubr.bf16.gmra.mrb[0].mxu0 %v771
        %v897 = vpop.f32.mrb[0].mxu0
        %v898 = vadd.f32 0.0, %v897
        %v899 = vpop.f32.mrb[0].mxu0
        %v900 = vpop.f32.mrb[0].mxu0
        %v901 = vadd.f32 0.0, %v900
        %v902 = vpop.f32.mrb[0].mxu0
        %903 = vmatprep.mubr.bf16.mxu0 0
        %904 = vmatmul.mubr.bf16.gmra.mrb[0].mxu0 %v774
        %v905 = vpop.f32.mrb[0].mxu0
        %v906 = vadd.f32 0.0, %v905
        %v907 = vpop.f32.mrb[0].mxu0
        %v908 = vpop.f32.mrb[0].mxu0
        %v909 = vadd.f32 0.0, %v908
        %v910 = vpop.f32.mrb[0].mxu0
        %911 = vmatprep.mubr.bf16.mxu0 0
        %912 = vmatmul.mubr.bf16.gmra.mrb[0].mxu0 %v777
        %v913 = vpop.f32.mrb[0].mxu0
        %v914 = vadd.f32 0.0, %v913
        %v915 = vpop.f32.mrb[0].mxu0
        %v916 = vpop.f32.mrb[0].mxu0
        %v917 = vadd.f32 0.0, %v916
        %v918 = vpop.f32.mrb[0].mxu0
        %919 = vmatprep.mubr.bf16.mxu0 0
        %920 = vmatmul.mubr.bf16.gmra.mrb[0].mxu0 %v780
        %v921 = vpop.f32.mrb[0].mxu0
        %v922 = vadd.f32 0.0, %v921
        %v923 = vpop.f32.mrb[0].mxu0
        %v924 = vpop.f32.mrb[0].mxu0
        %v925 = vadd.f32 0.0, %v924
        %v926 = vpop.f32.mrb[0].mxu0
        %927 = vmatprep.mubr.bf16.mxu0 0
        %928 = vmatmul.mubr.bf16.gmra.mrb[0].mxu0 %v783
        %v929 = vpop.f32.mrb[0].mxu0
        %v930 = vadd.f32 0.0, %v929
        %v931 = vpop.f32.mrb[0].mxu0
        %v932 = vpop.f32.mrb[0].mxu0
        %v933 = vadd.f32 0.0, %v932
        %v934 = vpop.f32.mrb[0].mxu0
        %935 = vmatprep.mubr.bf16.mxu0 0
        %936 = vmatmul.mubr.bf16.gmra.mrb[0].mxu0 %v786
        %v937 = vpop.f32.mrb[0].mxu0
        %v938 = vadd.f32 0.0, %v937
        %v939 = vpop.f32.mrb[0].mxu0
        %v940 = vpop.f32.mrb[0].mxu0
        %v941 = vadd.f32 0.0, %v940
        %v942 = vpop.f32.mrb[0].mxu0
        %943 = vmatprep.mubr.bf16.mxu0 0
        %944 = vmatmul.mubr.bf16.gmra.mrb[0].mxu0 %v789
        %v945 = vpop.f32.mrb[0].mxu0
        %v946 = vadd.f32 0.0, %v945
        %v947 = vpop.f32.mrb[0].mxu0
        %v948 = vpop.f32.mrb[0].mxu0
        %v949 = vadd.f32 0.0, %v948
        %v950 = vpop.f32.mrb[0].mxu0
        %951 = vdwg.mxu0
        %952 = vmax.xlane.f32.xlu0 %v826
        %v953 = vpop.xlane.xlu0 %952
        %954 = vmax.xlane.f32.xlu0 %v829
        %v955 = vpop.xlane.xlu0 %954
        %956 = vmax.xlane.f32.xlu0 %v834
        %v957 = vpop.xlane.xlu0 %956
        %958 = vmax.xlane.f32.xlu0 %v837
        %v959 = vpop.xlane.xlu0 %958
        %960 = vmax.xlane.f32.xlu0 %v842
        %v961 = vpop.xlane.xlu0 %960
        %962 = vmax.xlane.f32.xlu0 %v845
        %v963 = vpop.xlane.xlu0 %962
        %964 = vmax.xlane.f32.xlu0 %v850
        %v965 = vpop.xlane.xlu0 %964
        %966 = vmax.xlane.f32.xlu0 %v853
        %v967 = vpop.xlane.xlu0 %966
        %968 = vmax.xlane.f32.xlu0 %v858
        %v969 = vpop.xlane.xlu0 %968
        %970 = vmax.xlane.f32.xlu0 %v861
        %v971 = vpop.xlane.xlu0 %970
        %972 = vmax.xlane.f32.xlu0 %v866
        %v973 = vpop.xlane.xlu0 %972
        %974 = vmax.xlane.f32.xlu0 %v869
        %v975 = vpop.xlane.xlu0 %974
        %976 = vmax.xlane.f32.xlu0 %v874
        %v977 = vpop.xlane.xlu0 %976
        %978 = vmax.xlane.f32.xlu0 %v877
        %v979 = vpop.xlane.xlu0 %978
        %980 = vmax.xlane.f32.xlu0 %v882
        %v981 = vpop.xlane.xlu0 %980
        %982 = vmax.xlane.f32.xlu0 %v885
        %v983 = vpop.xlane.xlu0 %982
        %984 = vmax.xlane.f32.xlu0 %v890
        %v985 = vpop.xlane.xlu0 %984
        %986 = vmax.xlane.f32.xlu0 %v893
        %v987 = vpop.xlane.xlu0 %986
        %988 = vmax.xlane.f32.xlu0 %v898
        %v989 = vpop.xlane.xlu0 %988
        %990 = vmax.xlane.f32.xlu0 %v901
        %v991 = vpop.xlane.xlu0 %990
        %992 = vmax.xlane.f32.xlu0 %v906
        %v993 = vpop.xlane.xlu0 %992
        %994 = vmax.xlane.f32.xlu0 %v909
        %v995 = vpop.xlane.xlu0 %994
        %996 = vmax.xlane.f32.xlu0 %v914
        %v997 = vpop.xlane.xlu0 %996
        %998 = vmax.xlane.f32.xlu0 %v917
        %v999 = vpop.xlane.xlu0 %998
        %1000 = vmax.xlane.f32.xlu0 %v922
        %v1001 = vpop.xlane.xlu0 %1000
        %1002 = vmax.xlane.f32.xlu0 %v925
        %v1003 = vpop.xlane.xlu0 %1002
        %1004 = vmax.xlane.f32.xlu0 %v930
        %v1005 = vpop.xlane.xlu0 %1004
        %1006 = vmax.xlane.f32.xlu0 %v933
        %v1007 = vpop.xlane.xlu0 %1006
        %1008 = vmax.xlane.f32.xlu0 %v938
        %v1009 = vpop.xlane.xlu0 %1008
        %1010 = vmax.xlane.f32.xlu0 %v941
        %v1011 = vpop.xlane.xlu0 %1010
        %1012 = vmax.xlane.f32.xlu0 %v946
        %v1013 = vpop.xlane.xlu0 %1012
        %1014 = vmax.xlane.f32.xlu0 %v949
        %v1015 = vpop.xlane.xlu0 %1014
        %v1016 = vlaneseq
        %v1017 = vand.u32 %v1016, 127
        %v1018 = vcvt.s32.f32 %v1017
        %vm1019 = vcmp.eq.f32.partialorder %v826, %v953
        %vm1020 = vcmp.eq.f32.partialorder %v829, %v955
        %vm1021 = vcmp.eq.f32.partialorder %v834, %v957
        %vm1022 = vcmp.eq.f32.partialorder %v837, %v959
        %vm1023 = vcmp.eq.f32.partialorder %v842, %v961
        %vm1024 = vcmp.eq.f32.partialorder %v845, %v963
        %vm1025 = vcmp.eq.f32.partialorder %v850, %v965
        %vm1026 = vcmp.eq.f32.partialorder %v853, %v967
        %vm1027 = vcmp.eq.f32.partialorder %v858, %v969
        %vm1028 = vcmp.eq.f32.partialorder %v861, %v971
        %vm1029 = vcmp.eq.f32.partialorder %v866, %v973
        %vm1030 = vcmp.eq.f32.partialorder %v869, %v975
        %vm1031 = vcmp.eq.f32.partialorder %v874, %v977
        %vm1032 = vcmp.eq.f32.partialorder %v877, %v979
        %vm1033 = vcmp.eq.f32.partialorder %v882, %v981
        %vm1034 = vcmp.eq.f32.partialorder %v885, %v983
        %vm1035 = vcmp.eq.f32.partialorder %v890, %v985
        %vm1036 = vcmp.eq.f32.partialorder %v893, %v987
        %vm1037 = vcmp.eq.f32.partialorder %v898, %v989
        %vm1038 = vcmp.eq.f32.partialorder %v901, %v991
        %vm1039 = vcmp.eq.f32.partialorder %v906, %v993
        %vm1040 = vcmp.eq.f32.partialorder %v909, %v995
        %vm1041 = vcmp.eq.f32.partialorder %v914, %v997
        %vm1042 = vcmp.eq.f32.partialorder %v917, %v999
        %vm1043 = vcmp.eq.f32.partialorder %v922, %v1001
        %vm1044 = vcmp.eq.f32.partialorder %v925, %v1003
        %vm1045 = vcmp.eq.f32.partialorder %v930, %v1005
        %vm1046 = vcmp.eq.f32.partialorder %v933, %v1007
        %vm1047 = vcmp.eq.f32.partialorder %v938, %v1009
        %vm1048 = vcmp.eq.f32.partialorder %v941, %v1011
        %vm1049 = vcmp.eq.f32.partialorder %v946, %v1013
        %vm1050 = vcmp.eq.f32.partialorder %v949, %v1015
        %v1051 = vsel %vm1019, %v1018, 128.0
        %v1052 = vsel %vm1020, %v1018, 128.0
        %v1053 = vsel %vm1021, %v1018, 128.0
        %v1054 = vsel %vm1022, %v1018, 128.0
        %v1055 = vsel %vm1023, %v1018, 128.0
        %v1056 = vsel %vm1024, %v1018, 128.0
        %v1057 = vsel %vm1025, %v1018, 128.0
        %v1058 = vsel %vm1026, %v1018, 128.0
        %v1059 = vsel %vm1027, %v1018, 128.0
        %v1060 = vsel %vm1028, %v1018, 128.0
        %v1061 = vsel %vm1029, %v1018, 128.0
        %v1062 = vsel %vm1030, %v1018, 128.0
        %v1063 = vsel %vm1031, %v1018, 128.0
        %v1064 = vsel %vm1032, %v1018, 128.0
        %v1065 = vsel %vm1033, %v1018, 128.0
        %v1066 = vsel %vm1034, %v1018, 128.0
        %v1067 = vsel %vm1035, %v1018, 128.0
        %v1068 = vsel %vm1036, %v1018, 128.0
        %v1069 = vsel %vm1037, %v1018, 128.0
        %v1070 = vsel %vm1038, %v1018, 128.0
        %v1071 = vsel %vm1039, %v1018, 128.0
        %v1072 = vsel %vm1040, %v1018, 128.0
        %v1073 = vsel %vm1041, %v1018, 128.0
        %v1074 = vsel %vm1042, %v1018, 128.0
        %v1075 = vsel %vm1043, %v1018, 128.0
        %v1076 = vsel %vm1044, %v1018, 128.0
        %v1077 = vsel %vm1045, %v1018, 128.0
        %v1078 = vsel %vm1046, %v1018, 128.0
        %v1079 = vsel %vm1047, %v1018, 128.0
        %v1080 = vsel %vm1048, %v1018, 128.0
        %v1081 = vsel %vm1049, %v1018, 128.0
        %v1082 = vsel %vm1050, %v1018, 128.0
        %1083 = vmin.xlane.f32.xlu0 %v1051
        %v1084 = vpop.xlane.xlu0 %1083
        %1085 = vmin.xlane.f32.xlu0 %v1052
        %v1086 = vpop.xlane.xlu0 %1085
        %1087 = vmin.xlane.f32.xlu0 %v1053
        %v1088 = vpop.xlane.xlu0 %1087
        %1089 = vmin.xlane.f32.xlu0 %v1054
        %v1090 = vpop.xlane.xlu0 %1089
        %1091 = vmin.xlane.f32.xlu0 %v1055
        %v1092 = vpop.xlane.xlu0 %1091
        %1093 = vmin.xlane.f32.xlu0 %v1056
        %v1094 = vpop.xlane.xlu0 %1093
        %1095 = vmin.xlane.f32.xlu0 %v1057
        %v1096 = vpop.xlane.xlu0 %1095
        %1097 = vmin.xlane.f32.xlu0 %v1058
        %v1098 = vpop.xlane.xlu0 %1097
        %1099 = vmin.xlane.f32.xlu0 %v1059
        %v1100 = vpop.xlane.xlu0 %1099
        %1101 = vmin.xlane.f32.xlu0 %v1060
        %v1102 = vpop.xlane.xlu0 %1101
        %1103 = vmin.xlane.f32.xlu0 %v1061
        %v1104 = vpop.xlane.xlu0 %1103
        %1105 = vmin.xlane.f32.xlu0 %v1062
        %v1106 = vpop.xlane.xlu0 %1105
        %1107 = vmin.xlane.f32.xlu0 %v1063
        %v1108 = vpop.xlane.xlu0 %1107
        %1109 = vmin.xlane.f32.xlu0 %v1064
        %v1110 = vpop.xlane.xlu0 %1109
        %1111 = vmin.xlane.f32.xlu0 %v1065
        %v1112 = vpop.xlane.xlu0 %1111
        %1113 = vmin.xlane.f32.xlu0 %v1066
        %v1114 = vpop.xlane.xlu0 %1113
        %1115 = vmin.xlane.f32.xlu0 %v1067
        %v1116 = vpop.xlane.xlu0 %1115
        %1117 = vmin.xlane.f32.xlu0 %v1068
        %v1118 = vpop.xlane.xlu0 %1117
        %1119 = vmin.xlane.f32.xlu0 %v1069
        %v1120 = vpop.xlane.xlu0 %1119
        %1121 = vmin.xlane.f32.xlu0 %v1070
        %v1122 = vpop.xlane.xlu0 %1121
        %1123 = vmin.xlane.f32.xlu0 %v1071
        %v1124 = vpop.xlane.xlu0 %1123
        %1125 = vmin.xlane.f32.xlu0 %v1072
        %v1126 = vpop.xlane.xlu0 %1125
        %1127 = vmin.xlane.f32.xlu0 %v1073
        %v1128 = vpop.xlane.xlu0 %1127
        %1129 = vmin.xlane.f32.xlu0 %v1074
        %v1130 = vpop.xlane.xlu0 %1129
        %1131 = vmin.xlane.f32.xlu0 %v1075
        %v1132 = vpop.xlane.xlu0 %1131
        %1133 = vmin.xlane.f32.xlu0 %v1076
        %v1134 = vpop.xlane.xlu0 %1133
        %1135 = vmin.xlane.f32.xlu0 %v1077
        %v1136 = vpop.xlane.xlu0 %1135
        %1137 = vmin.xlane.f32.xlu0 %v1078
        %v1138 = vpop.xlane.xlu0 %1137
        %1139 = vmin.xlane.f32.xlu0 %v1079
        %v1140 = vpop.xlane.xlu0 %1139
        %1141 = vmin.xlane.f32.xlu0 %v1080
        %v1142 = vpop.xlane.xlu0 %1141
        %1143 = vmin.xlane.f32.xlu0 %v1081
        %v1144 = vpop.xlane.xlu0 %1143
        %1145 = vmin.xlane.f32.xlu0 %v1082
        %v1146 = vpop.xlane.xlu0 %1145
        %s1147 = smul.u32 %s18, 256
        %v1148 = vlaneseq
        %v1149 = vshrl.u32 %v1148, 7
        %v1150 = vadd.s32 %v1149, 8
        %v1151 = vadd.s32 %v1149, 16
        %v1152 = vadd.s32 %v1149, 24
        %v1153 = vadd.s32 %v1149, 32
        %v1154 = vadd.s32 %v1149, 40
        %v1155 = vadd.s32 %v1149, 48
        %v1156 = vadd.s32 %v1149, 56
        %v1157 = vadd.s32 %v1149, 64
        %v1158 = vadd.s32 %v1149, 72
        %v1159 = vadd.s32 %v1149, 80
        %v1160 = vadd.s32 %v1149, 88
        %v1161 = vadd.s32 %v1149, 96
        %v1162 = vadd.s32 %v1149, 104
        %v1163 = vadd.s32 %v1149, 112
        %v1164 = vadd.s32 %v1149, 120
        %v1165 = vadd.s32 %v1149, 128
        %v1166 = vadd.s32 %v1149, 136
        %v1167 = vadd.s32 %v1149, 144
        %v1168 = vadd.s32 %v1149, 152
        %v1169 = vadd.s32 %v1149, 160
        %v1170 = vadd.s32 %v1149, 168
        %v1171 = vadd.s32 %v1149, 176
        %v1172 = vadd.s32 %v1149, 184
        %v1173 = vadd.s32 %v1149, 192
        %v1174 = vadd.s32 %v1149, 200
        %v1175 = vadd.s32 %v1149, 208
        %v1176 = vadd.s32 %v1149, 216
        %v1177 = vadd.s32 %v1149, 224
        %v1178 = vadd.s32 %v1149, 232
        %v1179 = vadd.s32 %v1149, 240
        %v1180 = vadd.s32 %v1149, 248
        %v1181 = vstv %s1147
        %v1182 = vadd.s32 %v1181, %v1149
        %v1183 = vadd.s32 %v1181, %v1150
        %v1184 = vadd.s32 %v1181, %v1151
        %v1185 = vadd.s32 %v1181, %v1152
        %v1186 = vadd.s32 %v1181, %v1153
        %v1187 = vadd.s32 %v1181, %v1154
        %v1188 = vadd.s32 %v1181, %v1155
        %v1189 = vadd.s32 %v1181, %v1156
        %v1190 = vadd.s32 %v1181, %v1157
        %v1191 = vadd.s32 %v1181, %v1158
        %v1192 = vadd.s32 %v1181, %v1159
        %v1193 = vadd.s32 %v1181, %v1160
        %v1194 = vadd.s32 %v1181, %v1161
        %v1195 = vadd.s32 %v1181, %v1162
        %v1196 = vadd.s32 %v1181, %v1163
        %v1197 = vadd.s32 %v1181, %v1164
        %v1198 = vadd.s32 %v1181, %v1165
        %v1199 = vadd.s32 %v1181, %v1166
        %v1200 = vadd.s32 %v1181, %v1167
        %v1201 = vadd.s32 %v1181, %v1168
        %v1202 = vadd.s32 %v1181, %v1169
        %v1203 = vadd.s32 %v1181, %v1170
        %v1204 = vadd.s32 %v1181, %v1171
        %v1205 = vadd.s32 %v1181, %v1172
        %v1206 = vadd.s32 %v1181, %v1173
        %v1207 = vadd.s32 %v1181, %v1174
        %v1208 = vadd.s32 %v1181, %v1175
        %v1209 = vadd.s32 %v1181, %v1176
        %v1210 = vadd.s32 %v1181, %v1177
        %v1211 = vadd.s32 %v1181, %v1178
        %v1212 = vadd.s32 %v1181, %v1179
        %v1213 = vadd.s32 %v1181, %v1180
        %vm1214 = vcmp.lt.s32.totalorder %v1182, 512
        %vm1215 = vcmp.lt.s32.totalorder %v1183, 512
        %vm1216 = vcmp.lt.s32.totalorder %v1184, 512
        %vm1217 = vcmp.lt.s32.totalorder %v1185, 512
        %vm1218 = vcmp.lt.s32.totalorder %v1186, 512
        %vm1219 = vcmp.lt.s32.totalorder %v1187, 512
        %vm1220 = vcmp.lt.s32.totalorder %v1188, 512
        %vm1221 = vcmp.lt.s32.totalorder %v1189, 512
        %vm1222 = vcmp.lt.s32.totalorder %v1190, 512
        %vm1223 = vcmp.lt.s32.totalorder %v1191, 512
        %vm1224 = vcmp.lt.s32.totalorder %v1192, 512
        %vm1225 = vcmp.lt.s32.totalorder %v1193, 512
        %vm1226 = vcmp.lt.s32.totalorder %v1194, 512
        %vm1227 = vcmp.lt.s32.totalorder %v1195, 512
        %vm1228 = vcmp.lt.s32.totalorder %v1196, 512
        %vm1229 = vcmp.lt.s32.totalorder %v1197, 512
        %vm1230 = vcmp.lt.s32.totalorder %v1198, 512
        %vm1231 = vcmp.lt.s32.totalorder %v1199, 512
        %vm1232 = vcmp.lt.s32.totalorder %v1200, 512
        %vm1233 = vcmp.lt.s32.totalorder %v1201, 512
        %vm1234 = vcmp.lt.s32.totalorder %v1202, 512
        %vm1235 = vcmp.lt.s32.totalorder %v1203, 512
        %vm1236 = vcmp.lt.s32.totalorder %v1204, 512
        %vm1237 = vcmp.lt.s32.totalorder %v1205, 512
        %vm1238 = vcmp.lt.s32.totalorder %v1206, 512
        %vm1239 = vcmp.lt.s32.totalorder %v1207, 512
        %vm1240 = vcmp.lt.s32.totalorder %v1208, 512
        %vm1241 = vcmp.lt.s32.totalorder %v1209, 512
        %vm1242 = vcmp.lt.s32.totalorder %v1210, 512
        %vm1243 = vcmp.lt.s32.totalorder %v1211, 512
        %vm1244 = vcmp.lt.s32.totalorder %v1212, 512
        %vm1245 = vcmp.lt.s32.totalorder %v1213, 512
        %vm1246 = vcmp.eq.f32.partialorder %v1018, %v1084
        %vm1247 = vcmp.eq.f32.partialorder %v1018, %v1086
        %vm1248 = vcmp.eq.f32.partialorder %v1018, %v1088
        %vm1249 = vcmp.eq.f32.partialorder %v1018, %v1090
        %vm1250 = vcmp.eq.f32.partialorder %v1018, %v1092
        %vm1251 = vcmp.eq.f32.partialorder %v1018, %v1094
        %vm1252 = vcmp.eq.f32.partialorder %v1018, %v1096
        %vm1253 = vcmp.eq.f32.partialorder %v1018, %v1098
        %vm1254 = vcmp.eq.f32.partialorder %v1018, %v1100
        %vm1255 = vcmp.eq.f32.partialorder %v1018, %v1102
        %vm1256 = vcmp.eq.f32.partialorder %v1018, %v1104
        %vm1257 = vcmp.eq.f32.partialorder %v1018, %v1106
        %vm1258 = vcmp.eq.f32.partialorder %v1018, %v1108
        %vm1259 = vcmp.eq.f32.partialorder %v1018, %v1110
        %vm1260 = vcmp.eq.f32.partialorder %v1018, %v1112
        %vm1261 = vcmp.eq.f32.partialorder %v1018, %v1114
        %vm1262 = vcmp.eq.f32.partialorder %v1018, %v1116
        %vm1263 = vcmp.eq.f32.partialorder %v1018, %v1118
        %vm1264 = vcmp.eq.f32.partialorder %v1018, %v1120
        %vm1265 = vcmp.eq.f32.partialorder %v1018, %v1122
        %vm1266 = vcmp.eq.f32.partialorder %v1018, %v1124
        %vm1267 = vcmp.eq.f32.partialorder %v1018, %v1126
        %vm1268 = vcmp.eq.f32.partialorder %v1018, %v1128
        %vm1269 = vcmp.eq.f32.partialorder %v1018, %v1130
        %vm1270 = vcmp.eq.f32.partialorder %v1018, %v1132
        %vm1271 = vcmp.eq.f32.partialorder %v1018, %v1134
        %vm1272 = vcmp.eq.f32.partialorder %v1018, %v1136
        %vm1273 = vcmp.eq.f32.partialorder %v1018, %v1138
        %vm1274 = vcmp.eq.f32.partialorder %v1018, %v1140
        %vm1275 = vcmp.eq.f32.partialorder %v1018, %v1142
        %vm1276 = vcmp.eq.f32.partialorder %v1018, %v1144
        %vm1277 = vcmp.eq.f32.partialorder %v1018, %v1146
        %v1278 = vsel %vm1214, 1, 0
        %v1279 = vsel %vm1215, 1, 0
        %v1280 = vsel %vm1216, 1, 0
        %v1281 = vsel %vm1217, 1, 0
        %v1282 = vsel %vm1218, 1, 0
        %v1283 = vsel %vm1219, 1, 0
        %v1284 = vsel %vm1220, 1, 0
        %v1285 = vsel %vm1221, 1, 0
        %v1286 = vsel %vm1222, 1, 0
        %v1287 = vsel %vm1223, 1, 0
        %v1288 = vsel %vm1224, 1, 0
        %v1289 = vsel %vm1225, 1, 0
        %v1290 = vsel %vm1226, 1, 0
        %v1291 = vsel %vm1227, 1, 0
        %v1292 = vsel %vm1228, 1, 0
        %v1293 = vsel %vm1229, 1, 0
        %v1294 = vsel %vm1230, 1, 0
        %v1295 = vsel %vm1231, 1, 0
        %v1296 = vsel %vm1232, 1, 0
        %v1297 = vsel %vm1233, 1, 0
        %v1298 = vsel %vm1234, 1, 0
        %v1299 = vsel %vm1235, 1, 0
        %v1300 = vsel %vm1236, 1, 0
        %v1301 = vsel %vm1237, 1, 0
        %v1302 = vsel %vm1238, 1, 0
        %v1303 = vsel %vm1239, 1, 0
        %v1304 = vsel %vm1240, 1, 0
        %v1305 = vsel %vm1241, 1, 0
        %v1306 = vsel %vm1242, 1, 0
        %v1307 = vsel %vm1243, 1, 0
        %v1308 = vsel %vm1244, 1, 0
        %v1309 = vsel %vm1245, 1, 0
        %vm1310 = vcmp.eq.s32.totalorder %v1278, 1
        %vm1311 = vcmp.eq.s32.totalorder %v1279, 1
        %vm1312 = vcmp.eq.s32.totalorder %v1280, 1
        %vm1313 = vcmp.eq.s32.totalorder %v1281, 1
        %vm1314 = vcmp.eq.s32.totalorder %v1282, 1
        %vm1315 = vcmp.eq.s32.totalorder %v1283, 1
        %vm1316 = vcmp.eq.s32.totalorder %v1284, 1
        %vm1317 = vcmp.eq.s32.totalorder %v1285, 1
        %vm1318 = vcmp.eq.s32.totalorder %v1286, 1
        %vm1319 = vcmp.eq.s32.totalorder %v1287, 1
        %vm1320 = vcmp.eq.s32.totalorder %v1288, 1
        %vm1321 = vcmp.eq.s32.totalorder %v1289, 1
        %vm1322 = vcmp.eq.s32.totalorder %v1290, 1
        %vm1323 = vcmp.eq.s32.totalorder %v1291, 1
        %vm1324 = vcmp.eq.s32.totalorder %v1292, 1
        %vm1325 = vcmp.eq.s32.totalorder %v1293, 1
        %vm1326 = vcmp.eq.s32.totalorder %v1294, 1
        %vm1327 = vcmp.eq.s32.totalorder %v1295, 1
        %vm1328 = vcmp.eq.s32.totalorder %v1296, 1
        %vm1329 = vcmp.eq.s32.totalorder %v1297, 1
        %vm1330 = vcmp.eq.s32.totalorder %v1298, 1
        %vm1331 = vcmp.eq.s32.totalorder %v1299, 1
        %vm1332 = vcmp.eq.s32.totalorder %v1300, 1
        %vm1333 = vcmp.eq.s32.totalorder %v1301, 1
        %vm1334 = vcmp.eq.s32.totalorder %v1302, 1
        %vm1335 = vcmp.eq.s32.totalorder %v1303, 1
        %vm1336 = vcmp.eq.s32.totalorder %v1304, 1
        %vm1337 = vcmp.eq.s32.totalorder %v1305, 1
        %vm1338 = vcmp.eq.s32.totalorder %v1306, 1
        %vm1339 = vcmp.eq.s32.totalorder %v1307, 1
        %vm1340 = vcmp.eq.s32.totalorder %v1308, 1
        %vm1341 = vcmp.eq.s32.totalorder %v1309, 1
        %vm1342 = vmand %vm1246, %vm1310
        %vm1343 = vmand %vm1247, %vm1311
        %vm1344 = vmand %vm1248, %vm1312
        %vm1345 = vmand %vm1249, %vm1313
        %vm1346 = vmand %vm1250, %vm1314
        %vm1347 = vmand %vm1251, %vm1315
        %vm1348 = vmand %vm1252, %vm1316
        %vm1349 = vmand %vm1253, %vm1317
        %vm1350 = vmand %vm1254, %vm1318
        %vm1351 = vmand %vm1255, %vm1319
        %vm1352 = vmand %vm1256, %vm1320
        %vm1353 = vmand %vm1257, %vm1321
        %vm1354 = vmand %vm1258, %vm1322
        %vm1355 = vmand %vm1259, %vm1323
        %vm1356 = vmand %vm1260, %vm1324
        %vm1357 = vmand %vm1261, %vm1325
        %vm1358 = vmand %vm1262, %vm1326
        %vm1359 = vmand %vm1263, %vm1327
        %vm1360 = vmand %vm1264, %vm1328
        %vm1361 = vmand %vm1265, %vm1329
        %vm1362 = vmand %vm1266, %vm1330
        %vm1363 = vmand %vm1267, %vm1331
        %vm1364 = vmand %vm1268, %vm1332
        %vm1365 = vmand %vm1269, %vm1333
        %vm1366 = vmand %vm1270, %vm1334
        %vm1367 = vmand %vm1271, %vm1335
        %vm1368 = vmand %vm1272, %vm1336
        %vm1369 = vmand %vm1273, %vm1337
        %vm1370 = vmand %vm1274, %vm1338
        %vm1371 = vmand %vm1275, %vm1339
        %vm1372 = vmand %vm1276, %vm1340
        %vm1373 = vmand %vm1277, %vm1341
        %v1374 = vsel %vm1342, 1, 0
        %v1375 = vsel %vm1343, 1, 0
        %v1376 = vsel %vm1344, 1, 0
        %v1377 = vsel %vm1345, 1, 0
        %v1378 = vsel %vm1346, 1, 0
        %v1379 = vsel %vm1347, 1, 0
        %v1380 = vsel %vm1348, 1, 0
        %v1381 = vsel %vm1349, 1, 0
        %v1382 = vsel %vm1350, 1, 0
        %v1383 = vsel %vm1351, 1, 0
        %v1384 = vsel %vm1352, 1, 0
        %v1385 = vsel %vm1353, 1, 0
        %v1386 = vsel %vm1354, 1, 0
        %v1387 = vsel %vm1355, 1, 0
        %v1388 = vsel %vm1356, 1, 0
        %v1389 = vsel %vm1357, 1, 0
        %v1390 = vsel %vm1358, 1, 0
        %v1391 = vsel %vm1359, 1, 0
        %v1392 = vsel %vm1360, 1, 0
        %v1393 = vsel %vm1361, 1, 0
        %v1394 = vsel %vm1362, 1, 0
        %v1395 = vsel %vm1363, 1, 0
        %v1396 = vsel %vm1364, 1, 0
        %v1397 = vsel %vm1365, 1, 0
        %v1398 = vsel %vm1366, 1, 0
        %v1399 = vsel %vm1367, 1, 0
        %v1400 = vsel %vm1368, 1, 0
        %v1401 = vsel %vm1369, 1, 0
        %v1402 = vsel %vm1370, 1, 0
        %v1403 = vsel %vm1371, 1, 0
        %v1404 = vsel %vm1372, 1, 0
        %v1405 = vsel %vm1373, 1, 0
        %v1406 = vcvt.s32.f32 %v1374
        %v1407 = vcvt.s32.f32 %v1375
        %v1408 = vcvt.s32.f32 %v1376
        %v1409 = vcvt.s32.f32 %v1377
        %v1410 = vcvt.s32.f32 %v1378
        %v1411 = vcvt.s32.f32 %v1379
        %v1412 = vcvt.s32.f32 %v1380
        %v1413 = vcvt.s32.f32 %v1381
        %v1414 = vcvt.s32.f32 %v1382
        %v1415 = vcvt.s32.f32 %v1383
        %v1416 = vcvt.s32.f32 %v1384
        %v1417 = vcvt.s32.f32 %v1385
        %v1418 = vcvt.s32.f32 %v1386
        %v1419 = vcvt.s32.f32 %v1387
        %v1420 = vcvt.s32.f32 %v1388
        %v1421 = vcvt.s32.f32 %v1389
        %v1422 = vcvt.s32.f32 %v1390
        %v1423 = vcvt.s32.f32 %v1391
        %v1424 = vcvt.s32.f32 %v1392
        %v1425 = vcvt.s32.f32 %v1393
        %v1426 = vcvt.s32.f32 %v1394
        %v1427 = vcvt.s32.f32 %v1395
        %v1428 = vcvt.s32.f32 %v1396
        %v1429 = vcvt.s32.f32 %v1397
        %v1430 = vcvt.s32.f32 %v1398
        %v1431 = vcvt.s32.f32 %v1399
        %v1432 = vcvt.s32.f32 %v1400
        %v1433 = vcvt.s32.f32 %v1401
        %v1434 = vcvt.s32.f32 %v1402
        %v1435 = vcvt.s32.f32 %v1403
        %v1436 = vcvt.s32.f32 %v1404
        %v1437 = vcvt.s32.f32 %v1405
        %v1438 = vld [vmem:[%s2] sm:$0xff]
        %v1439 = vld [vmem:[%s2 + $0x8] sm:$0xff]
        %v1440 = vld [vmem:[%s2 + $0x10] sm:$0xff]
        %v1441 = vld [vmem:[%s2 + $0x18] sm:$0xff]
        %v1442 = vld [vmem:[%s2 + $0x20] sm:$0xff]
        %v1443 = vld [vmem:[%s2 + $0x28] sm:$0xff]
        %v1444 = vld [vmem:[%s2 + $0x30] sm:$0xff]
        %v1445 = vld [vmem:[%s2 + $0x38] sm:$0xff]
        %v1446 = vld [vmem:[%s2 + $0x40] sm:$0xff]
        %v1447 = vld [vmem:[%s2 + $0x48] sm:$0xff]
        %v1448 = vld [vmem:[%s2 + $0x50] sm:$0xff]
        %v1449 = vld [vmem:[%s2 + $0x58] sm:$0xff]
        %v1450 = vld [vmem:[%s2 + $0x60] sm:$0xff]
        %v1451 = vld [vmem:[%s2 + $0x68] sm:$0xff]
        %v1452 = vld [vmem:[%s2 + $0x70] sm:$0xff]
        %v1453 = vld [vmem:[%s2 + $0x78] sm:$0xff]
        %v1454 = vpack.c.bf16 %v1407, %v1406
        %v1455 = vpack.c.bf16 %v1409, %v1408
        %v1456 = vpack.c.bf16 %v1411, %v1410
        %v1457 = vpack.c.bf16 %v1413, %v1412
        %v1458 = vpack.c.bf16 %v1415, %v1414
        %v1459 = vpack.c.bf16 %v1417, %v1416
        %v1460 = vpack.c.bf16 %v1419, %v1418
        %v1461 = vpack.c.bf16 %v1421, %v1420
        %v1462 = vpack.c.bf16 %v1423, %v1422
        %v1463 = vpack.c.bf16 %v1425, %v1424
        %v1464 = vpack.c.bf16 %v1427, %v1426
        %v1465 = vpack.c.bf16 %v1429, %v1428
        %v1466 = vpack.c.bf16 %v1431, %v1430
        %v1467 = vpack.c.bf16 %v1433, %v1432
        %v1468 = vpack.c.bf16 %v1435, %v1434
        %v1469 = vpack.c.bf16 %v1437, %v1436
        %v1470 = vpack.c.bf16 %v199, %v198
        %v1471 = vpack.c.bf16 %v201, %v200
        %v1472 = vpack.c.bf16 %v203, %v202
        %v1473 = vpack.c.bf16 %v205, %v204
        %v1474 = vpack.c.bf16 %v207, %v206
        %v1475 = vpack.c.bf16 %v209, %v208
        %v1476 = vpack.c.bf16 %v211, %v210
        %v1477 = vpack.c.bf16 %v213, %v212
        %v1478 = vpack.c.bf16 %v215, %v214
        %v1479 = vpack.c.bf16 %v217, %v216
        %v1480 = vpack.c.bf16 %v219, %v218
        %v1481 = vpack.c.bf16 %v221, %v220
        %v1482 = vpack.c.bf16 %v223, %v222
        %v1483 = vpack.c.bf16 %v225, %v224
        %v1484 = vpack.c.bf16 %v227, %v226
        %v1485 = vpack.c.bf16 %v229, %v228
        %1486 = vxpose.xlu0.c.b16.start [1/8] %v1454, 128
        %1487 = vxpose.xlu0.c.b16.cont [2/8] %v1455, 128
        %1488 = vxpose.xlu0.c.b16.cont [3/8] %v1456, 128
        %1489 = vxpose.xlu0.c.b16.cont [4/8] %v1457, 128
        %1490 = vxpose.xlu0.c.b16.cont [5/8] %v1458, 128
        %1491 = vxpose.xlu0.c.b16.cont [6/8] %v1459, 128
        %1492 = vxpose.xlu0.c.b16.cont [7/8] %v1460, 128
        %1493 = vxpose.xlu0.c.b16.end [8/8] %v1461, 128
        %v1494 = vpop.trf.xlu0
        %v1495 = vpop.trf.xlu0
        %v1496 = vpop.trf.xlu0
        %v1497 = vpop.trf.xlu0
        %v1498 = vpop.trf.xlu0
        %v1499 = vpop.trf.xlu0
        %v1500 = vpop.trf.xlu0
        %v1501 = vpop.trf.xlu0
        %1502 = vxpose.xlu0.c.b16.start [1/8] %v1462, 128
        %1503 = vxpose.xlu0.c.b16.cont [2/8] %v1463, 128
        %1504 = vxpose.xlu0.c.b16.cont [3/8] %v1464, 128
        %1505 = vxpose.xlu0.c.b16.cont [4/8] %v1465, 128
        %1506 = vxpose.xlu0.c.b16.cont [5/8] %v1466, 128
        %1507 = vxpose.xlu0.c.b16.cont [6/8] %v1467, 128
        %1508 = vxpose.xlu0.c.b16.cont [7/8] %v1468, 128
        %1509 = vxpose.xlu0.c.b16.end [8/8] %v1469, 128
        %v1510 = vpop.trf.xlu0
        %v1511 = vpop.trf.xlu0
        %v1512 = vpop.trf.xlu0
        %v1513 = vpop.trf.xlu0
        %v1514 = vpop.trf.xlu0
        %v1515 = vpop.trf.xlu0
        %v1516 = vpop.trf.xlu0
        %v1517 = vpop.trf.xlu0
        %1518 = vmatprep.subr.bf16.mxu0 0
        %1519 = vmatpush1.bf16.msra.mxu0 %v1470
        %1520 = vmatprep.subr.bf16.mxu0 0
        %1521 = vmatpush1.bf16.msra.mxu0 %v1471
        %1522 = vmatprep.subr.bf16.mxu0 0
        %1523 = vmatpush1.bf16.msra.mxu0 %v1472
        %1524 = vmatprep.subr.bf16.mxu0 0
        %1525 = vmatpush1.bf16.msra.mxu0 %v1473
        %1526 = vmatprep.subr.bf16.mxu0 0
        %1527 = vmatpush1.bf16.msra.mxu0 %v1474
        %1528 = vmatprep.subr.bf16.mxu0 0
        %1529 = vmatpush1.bf16.msra.mxu0 %v1475
        %1530 = vmatprep.subr.bf16.mxu0 0
        %1531 = vmatpush1.bf16.msra.mxu0 %v1476
        %1532 = vmatprep.subr.bf16.mxu0 0
        %1533 = vmatpush1.bf16.msra.mxu0 %v1477
        %1534 = vmatprep.subr.bf16.mxu0 0
        %1535 = vmatpush1.bf16.msra.mxu0 %v1478
        %1536 = vmatprep.subr.bf16.mxu0 0
        %1537 = vmatpush1.bf16.msra.mxu0 %v1479
        %1538 = vmatprep.subr.bf16.mxu0 0
        %1539 = vmatpush1.bf16.msra.mxu0 %v1480
        %1540 = vmatprep.subr.bf16.mxu0 0
        %1541 = vmatpush1.bf16.msra.mxu0 %v1481
        %1542 = vmatprep.subr.bf16.mxu0 0
        %1543 = vmatpush1.bf16.msra.mxu0 %v1482
        %1544 = vmatprep.subr.bf16.mxu0 0
        %1545 = vmatpush1.bf16.msra.mxu0 %v1483
        %1546 = vmatprep.subr.bf16.mxu0 0
        %1547 = vmatpush1.bf16.msra.mxu0 %v1484
        %1548 = vmatprep.subr.bf16.mxu0 0
        %1549 = vmatpush1.bf16.msra.mxu0 %v1485
        %1550 = vmatprep.mubr.bf16.mxu0 %v1510
        %1551 = vmatmul.mubr.bf16.gmra.mrb[0].mxu0 %v1494
        %v1552 = vpop.f32.mrb[0].mxu0
        %v1553 = vadd.f32 0.0, %v1552
        %v1554 = vpop.f32.mrb[0].mxu0
        %v1555 = vpop.f32.mrb[0].mxu0
        %v1556 = vadd.f32 0.0, %v1555
        %v1557 = vpop.f32.mrb[0].mxu0
        %1558 = vmatprep.mubr.bf16.mxu0 %v1511
        %1559 = vmatmul.mubr.bf16.gmra.mrb[0].mxu0 %v1495
        %v1560 = vpop.f32.mrb[0].mxu0
        %v1561 = vadd.f32 0.0, %v1560
        %v1562 = vpop.f32.mrb[0].mxu0
        %v1563 = vpop.f32.mrb[0].mxu0
        %v1564 = vadd.f32 0.0, %v1563
        %v1565 = vpop.f32.mrb[0].mxu0
        %1566 = vmatprep.mubr.bf16.mxu0 %v1512
        %1567 = vmatmul.mubr.bf16.gmra.mrb[0].mxu0 %v1496
        %v1568 = vpop.f32.mrb[0].mxu0
        %v1569 = vadd.f32 0.0, %v1568
        %v1570 = vpop.f32.mrb[0].mxu0
        %v1571 = vpop.f32.mrb[0].mxu0
        %v1572 = vadd.f32 0.0, %v1571
        %v1573 = vpop.f32.mrb[0].mxu0
        %1574 = vmatprep.mubr.bf16.mxu0 %v1513
        %1575 = vmatmul.mubr.bf16.gmra.mrb[0].mxu0 %v1497
        %v1576 = vpop.f32.mrb[0].mxu0
        %v1577 = vadd.f32 0.0, %v1576
        %v1578 = vpop.f32.mrb[0].mxu0
        %v1579 = vpop.f32.mrb[0].mxu0
        %v1580 = vadd.f32 0.0, %v1579
        %v1581 = vpop.f32.mrb[0].mxu0
        %1582 = vmatprep.mubr.bf16.mxu0 %v1514
        %1583 = vmatmul.mubr.bf16.gmra.mrb[0].mxu0 %v1498
        %v1584 = vpop.f32.mrb[0].mxu0
        %v1585 = vadd.f32 0.0, %v1584
        %v1586 = vpop.f32.mrb[0].mxu0
        %v1587 = vpop.f32.mrb[0].mxu0
        %v1588 = vadd.f32 0.0, %v1587
        %v1589 = vpop.f32.mrb[0].mxu0
        %1590 = vmatprep.mubr.bf16.mxu0 %v1515
        %1591 = vmatmul.mubr.bf16.gmra.mrb[0].mxu0 %v1499
        %v1592 = vpop.f32.mrb[0].mxu0
        %v1593 = vadd.f32 0.0, %v1592
        %v1594 = vpop.f32.mrb[0].mxu0
        %v1595 = vpop.f32.mrb[0].mxu0
        %v1596 = vadd.f32 0.0, %v1595
        %v1597 = vpop.f32.mrb[0].mxu0
        %1598 = vmatprep.mubr.bf16.mxu0 %v1516
        %1599 = vmatmul.mubr.bf16.gmra.mrb[0].mxu0 %v1500
        %v1600 = vpop.f32.mrb[0].mxu0
        %v1601 = vadd.f32 0.0, %v1600
        %v1602 = vpop.f32.mrb[0].mxu0
        %v1603 = vpop.f32.mrb[0].mxu0
        %v1604 = vadd.f32 0.0, %v1603
        %v1605 = vpop.f32.mrb[0].mxu0
        %1606 = vmatprep.mubr.bf16.mxu0 %v1517
        %1607 = vmatmul.mubr.bf16.gmra.mrb[0].mxu0 %v1501
        %v1608 = vpop.f32.mrb[0].mxu0
        %v1609 = vadd.f32 0.0, %v1608
        %v1610 = vpop.f32.mrb[0].mxu0
        %v1611 = vpop.f32.mrb[0].mxu0
        %v1612 = vadd.f32 0.0, %v1611
        %v1613 = vpop.f32.mrb[0].mxu0
        %1614 = vdwg.mxu0
        %v1615 = vadd.f32 %v1438, %v1553
        %v1616 = vadd.f32 %v1439, %v1556
        %v1617 = vadd.f32 %v1440, %v1561
        %v1618 = vadd.f32 %v1441, %v1564
        %v1619 = vadd.f32 %v1442, %v1569
        %v1620 = vadd.f32 %v1443, %v1572
        %v1621 = vadd.f32 %v1444, %v1577
        %v1622 = vadd.f32 %v1445, %v1580
        %v1623 = vadd.f32 %v1446, %v1585
        %v1624 = vadd.f32 %v1447, %v1588
        %v1625 = vadd.f32 %v1448, %v1593
        %v1626 = vadd.f32 %v1449, %v1596
        %v1627 = vadd.f32 %v1450, %v1601
        %v1628 = vadd.f32 %v1451, %v1604
        %v1629 = vadd.f32 %v1452, %v1609
        %v1630 = vadd.f32 %v1453, %v1612
        %1631 = vst.msk [vmem:[%s2] sm:$0xff] %vm262, %v1615
        %1632 = vst.msk [vmem:[%s2 + $0x8] sm:$0xff] %vm262, %v1616
        %1633 = vst.msk [vmem:[%s2 + $0x10] sm:$0xff] %vm262, %v1617
        %1634 = vst.msk [vmem:[%s2 + $0x18] sm:$0xff] %vm262, %v1618
        %1635 = vst.msk [vmem:[%s2 + $0x20] sm:$0xff] %vm262, %v1619
        %1636 = vst.msk [vmem:[%s2 + $0x28] sm:$0xff] %vm262, %v1620
        %1637 = vst.msk [vmem:[%s2 + $0x30] sm:$0xff] %vm262, %v1621
        %1638 = vst.msk [vmem:[%s2 + $0x38] sm:$0xff] %vm262, %v1622
        %1639 = vst.msk [vmem:[%s2 + $0x40] sm:$0xff] %vm262, %v1623
        %1640 = vst.msk [vmem:[%s2 + $0x48] sm:$0xff] %vm262, %v1624
        %1641 = vst.msk [vmem:[%s2 + $0x50] sm:$0xff] %vm262, %v1625
        %1642 = vst.msk [vmem:[%s2 + $0x58] sm:$0xff] %vm262, %v1626
        %1643 = vst.msk [vmem:[%s2 + $0x60] sm:$0xff] %vm262, %v1627
        %1644 = vst.msk [vmem:[%s2 + $0x68] sm:$0xff] %vm262, %v1628
        %1645 = vst.msk [vmem:[%s2 + $0x70] sm:$0xff] %vm262, %v1629
        %1646 = vst.msk [vmem:[%s2 + $0x78] sm:$0xff] %vm262, %v1630
        %v1647 = vld [vmem:[%s3] sm:$0x1]
        %v1648 = vadd.f32 %v1406, %v1407
        %v1649 = vadd.f32 %v1648, %v1408
        %v1650 = vadd.f32 %v1649, %v1409
        %v1651 = vadd.f32 %v1650, %v1410
        %v1652 = vadd.f32 %v1651, %v1411
        %v1653 = vadd.f32 %v1652, %v1412
        %v1654 = vadd.f32 %v1653, %v1413
        %v1655 = vadd.f32 %v1654, %v1414
        %v1656 = vadd.f32 %v1655, %v1415
        %v1657 = vadd.f32 %v1656, %v1416
        %v1658 = vadd.f32 %v1657, %v1417
        %v1659 = vadd.f32 %v1658, %v1418
        %v1660 = vadd.f32 %v1659, %v1419
        %v1661 = vadd.f32 %v1660, %v1420
        %v1662 = vadd.f32 %v1661, %v1421
        %v1663 = vadd.f32 %v1662, %v1422
        %v1664 = vadd.f32 %v1663, %v1423
        %v1665 = vadd.f32 %v1664, %v1424
        %v1666 = vadd.f32 %v1665, %v1425
        %v1667 = vadd.f32 %v1666, %v1426
        %v1668 = vadd.f32 %v1667, %v1427
        %v1669 = vadd.f32 %v1668, %v1428
        %v1670 = vadd.f32 %v1669, %v1429
        %v1671 = vadd.f32 %v1670, %v1430
        %v1672 = vadd.f32 %v1671, %v1431
        %v1673 = vadd.f32 %v1672, %v1432
        %v1674 = vadd.f32 %v1673, %v1433
        %v1675 = vadd.f32 %v1674, %v1434
        %v1676 = vadd.f32 %v1675, %v1435
        %v1677 = vadd.f32 %v1676, %v1436
        %v1678 = vadd.f32 %v1677, %v1437
        %v1679 = vrot.slane %v1678, 4
        %v1680 = vadd.f32 %v1678, %v1679
        %v1681 = vrot.slane %v1680, 2
        %v1682 = vadd.f32 %v1680, %v1681
        %v1683 = vrot.slane %v1682, 1
        %v1684 = vadd.f32 %v1682, %v1683
        %v1685 = vadd.f32 %v1647, %v1684
        %1686 = vst [vmem:[%s3] sm:$0x1] %v1685
        // Predicated region
        $region37: #{memory_block_forward.2} parent=27 // pred_check
          %p1687 = pneg %p78
        $region38: #{memory_block_forward.2} parent=27 // pred_check_branch
          %1689 = sbr.rel (%p1687) target = $region40
        $region39: #{memory_block_forward.2} parent=27 // pred_region
          _
        $region40: #{memory_block_forward.2} parent=27 // pred_fallthru
          _
        // Predicated region
        $region41: #{memory_block_forward.2} parent=27 // pred_check
          %p1690 = pneg %p99
        $region42: #{memory_block_forward.2} parent=27 // pred_check_branch
          %1692 = sbr.rel (%p1690) target = $region44
        $region43: #{memory_block_forward.2} parent=27 // pred_region
          _
        $region44: #{memory_block_forward.2} parent=27 // pred_fallthru
          _
        // Predicated region
        $region45: #{memory_block_forward.2} parent=27 // pred_check
          %p1693 = pneg %p78
        $region46: #{memory_block_forward.2} parent=27 // pred_check_branch
          %1695 = sbr.rel (%p1693) target = $region48
        $region47: #{memory_block_forward.2} parent=27 // pred_region
          _
        $region48: #{memory_block_forward.2} parent=27 // pred_fallthru
          _
        // Predicated region
        $region49: #{memory_block_forward.2} parent=27 // pred_check
          %p1696 = pneg %p99
        $region50: #{memory_block_forward.2} parent=27 // pred_check_branch
          %1698 = sbr.rel (%p1696) target = $region52
        $region51: #{memory_block_forward.2} parent=27 // pred_region
          _
        $region52: #{memory_block_forward.2} parent=27 // pred_fallthru
          _
      $region28: #{memory_block_forward.2} parent=5 // pred_fallthru
        _
      %p1699 = scmp.le.s32.totalorder 2, %s13
      // Predicated region
      $region53: #{memory_block_forward.2} parent=5 // pred_check
        %p1700 = pneg %p1699
      $region54: #{memory_block_forward.2} parent=5 // pred_check_branch
        %1702 = sbr.rel (%p1700) target = $region56
      $region55: #{memory_block_forward.2} parent=5 // pred_region
        %s1703 = ssub.s32 %s13, 2
      $region56: #{memory_block_forward.2} parent=5 // pred_fallthru
        _
    $region6: #{memory_block_forward.2} parent=1 // loop_footer
      %s17 = sadd.s32 1, %s13
    $region7: #{memory_block_forward.2} parent=1 // loop_footer_branch
      %12 = sbr.rel target = $region3
    $region8: #{memory_block_forward.2} parent=1 // loop_exit
      _
    %1704 = vsyncpa [#allocation3], 1
    %s1705 = scalar_lea.sflag [#allocation3], 1
    %1706 = vsyncpa %s1705, 1

// kernel: memory_block_forward.3
$region0: #{memory_block_forward.3}
  #allocation0 [shape = 'u32[]', space=smem, size = 0x4, offset = 0x4, fixed_abs, tag = 'smem constant byte address 0x4 - core index']
  #allocation1 [shape = 'u32[144,128]{1,0:T(1,128)}', space=vmem, size = 0x12000, scoped, tag = 'internal scratch']
  %s0 = inlined_call_operand.vmem [shape: f32[512,32], index: 0, kind: input, shape index: {}]
  %s1 = inlined_call_operand.vmem [shape: bf16[32,128], index: 1, kind: input, shape index: {}]
  %s2 = inlined_call_operand.vmem [shape: bf16[128,32], index: 2, kind: input, shape index: {}]
  %s3 = inlined_call_operand.hbm [shape: f32[512,32], index: 3, kind: output, shape index: {0}]
  %s4 = inlined_call_operand.hbm [shape: f32[512,128], index: 4, kind: output, shape index: {1}]
  %5 = xla_tuple %s3, %s4
  %s6 = sld [smem:[#allocation0]]
  $region53: #{memory_block_forward.3} parent=0
    _
  %s8 = ssub.s32 1, %s6
  %s9 = scalar_select 0, %s8, %s6
  $region1: #{memory_block_forward.3} parent=0
    #allocation2 [shape = 'u8[262144]{0}', space=vmem, size = 0x40000, scoped, tag = 'output window, operand 0']
    #allocation3 [shape = 's32[2]{0}', space=sflag, size = 0x8, scoped, tag = 'scoped memory for memory_block_forward.3']
    #allocation4 [shape = 'u8[262144]{0}', space=vmem, size = 0x40000, scoped, tag = 'output window, operand 1']
    #allocation5 [shape = 's32[2]{0}', space=sflag, size = 0x8, scoped, tag = 'scoped memory for memory_block_forward.3']
    %10 = vsyncpa [#allocation3], 0
    %s11 = scalar_lea.sflag [#allocation3], 1
    %12 = vsyncpa %s11, 0
    %13 = vsyncpa [#allocation5], 0
    %s14 = scalar_lea.sflag [#allocation5], 1
    %15 = vsyncpa %s14, 0
    loop: start=0, step=1, limit=4
    $region2: #{memory_block_forward.3} parent=1 // loop_pre_header
      _
    $region3: #{memory_block_forward.3} parent=1 // loop_header
      %s17 = sphi 0, %s21
      %p18 = scmp.ge.s32.totalorder %s17, 4
      %s27 = sphi 0, %s29
      %s30 = sphi 0, %s27
      %s31 = sphi 0, %s30
      %s47 = sphi 0, %s31
      %s51 = sphi 0, %s51
      %s53 = sphi 0, %s51
      %s54 = sphi 0, %s53
      %s68 = sphi 0, %s54
      %s72 = sphi 0, %s72
      %s74 = sphi 0, %s72
      %s75 = sphi 0, %s74
      %s89 = sphi 0, %s75
      %s95 = sphi 0, %s97
      %s98 = sphi 0, %s95
      %s99 = sphi 0, %s98
      %s115 = sphi 0, %s99
      %s121 = sphi 0, %s123
      %s124 = sphi 0, %s121
      %s125 = sphi 0, %s124
      %s141 = sphi 0, %s125
    $region4: #{memory_block_forward.3} parent=1 // loop_header_branch
      %20 = sbr.rel (%p18) target = $region8
    $region5: #{memory_block_forward.3} parent=1 // loop_body
      %s22 = ssub.s32 %s17, 1
      %s23 = ssub.s32 %s17, 2
      %s24 = sadd.s32 %s17, 1
      %s25 = ssub.s32 %s17, %s24
      %p26 = scmp.eq.s32.totalorder %s25, 0
      %s28 = sadd.s32 %s27, 1
      %s29 = scalar_select %p26, %s27, %s28
      %p32 = pneg %p26
      %p33 = scmp.eq.s32.totalorder %s17, 1
      %p34 = por %p32, %p33
      %p35 = scmp.ne.s32.totalorder %s27, %s30
      %p36 = scmp.eq.s32.totalorder %s17, 0
      %p37 = por %p35, %p36
      %p38 = scmp.ne.s32.totalorder %s27, %s30
      %p39 = scmp.eq.s32.totalorder %s22, 1
      %p40 = por %p38, %p39
      %p41 = scmp.ne.s32.totalorder %s30, %s31
      %p42 = scmp.eq.s32.totalorder %s22, 0
      %p43 = por %p41, %p42
      %p44 = scmp.ne.s32.totalorder %s30, %s31
      %p45 = scmp.eq.s32.totalorder %s23, 1
      %p46 = por %p44, %p45
      %p48 = scmp.ne.s32.totalorder %s31, %s47
      %p49 = scmp.eq.s32.totalorder %s23, 0
      %p50 = por %p48, %p49
      %s52 = sadd.s32 %s51, 1
      %p55 = scmp.eq.s32.totalorder %s17, 1
      %p56 = scmp.ne.s32.totalorder %s51, %s53
      %p57 = scmp.eq.s32.totalorder %s17, 0
      %p58 = por %p56, %p57
      %p59 = scmp.ne.s32.totalorder %s51, %s53
      %p60 = scmp.eq.s32.totalorder %s22, 1
      %p61 = por %p59, %p60
      %p62 = scmp.ne.s32.totalorder %s53, %s54
      %p63 = scmp.eq.s32.totalorder %s22, 0
      %p64 = por %p62, %p63
      %p65 = scmp.ne.s32.totalorder %s53, %s54
      %p66 = scmp.eq.s32.totalorder %s23, 1
      %p67 = por %p65, %p66
      %p69 = scmp.ne.s32.totalorder %s54, %s68
      %p70 = scmp.eq.s32.totalorder %s23, 0
      %p71 = por %p69, %p70
      %s73 = sadd.s32 %s72, 1
      %p76 = scmp.eq.s32.totalorder %s17, 1
      %p77 = scmp.ne.s32.totalorder %s72, %s74
      %p78 = scmp.eq.s32.totalorder %s17, 0
      %p79 = por %p77, %p78
      %p80 = scmp.ne.s32.totalorder %s72, %s74
      %p81 = scmp.eq.s32.totalorder %s22, 1
      %p82 = por %p80, %p81
      %p83 = scmp.ne.s32.totalorder %s74, %s75
      %p84 = scmp.eq.s32.totalorder %s22, 0
      %p85 = por %p83, %p84
      %p86 = scmp.ne.s32.totalorder %s74, %s75
      %p87 = scmp.eq.s32.totalorder %s23, 1
      %p88 = por %p86, %p87
      %p90 = scmp.ne.s32.totalorder %s75, %s89
      %p91 = scmp.eq.s32.totalorder %s23, 0
      %p92 = por %p90, %p91
      %s93 = ssub.s32 %s17, %s24
      %p94 = scmp.eq.s32.totalorder %s93, 0
      %s96 = sadd.s32 %s95, 1
      %s97 = scalar_select %p94, %s95, %s96
      %p100 = pneg %p94
      %p101 = scmp.eq.s32.totalorder %s17, 1
      %p102 = por %p100, %p101
      %p103 = scmp.ne.s32.totalorder %s95, %s98
      %p104 = scmp.eq.s32.totalorder %s17, 0
      %p105 = por %p103, %p104
      %p106 = scmp.ne.s32.totalorder %s95, %s98
      %p107 = scmp.eq.s32.totalorder %s22, 1
      %p108 = por %p106, %p107
      %p109 = scmp.ne.s32.totalorder %s98, %s99
      %p110 = scmp.eq.s32.totalorder %s22, 0
      %p111 = por %p109, %p110
      %p112 = scmp.ne.s32.totalorder %s98, %s99
      %p113 = scmp.eq.s32.totalorder %s23, 1
      %p114 = por %p112, %p113
      %p116 = scmp.ne.s32.totalorder %s99, %s115
      %p117 = scmp.eq.s32.totalorder %s23, 0
      %p118 = por %p116, %p117
      %s119 = ssub.s32 %s17, %s24
      %p120 = scmp.eq.s32.totalorder %s119, 0
      %s122 = sadd.s32 %s121, 1
      %s123 = scalar_select %p120, %s121, %s122
      %p126 = pneg %p120
      %p127 = scmp.eq.s32.totalorder %s17, 1
      %p128 = por %p126, %p127
      %p129 = scmp.ne.s32.totalorder %s121, %s124
      %p130 = scmp.eq.s32.totalorder %s17, 0
      %p131 = por %p129, %p130
      %p132 = scmp.ne.s32.totalorder %s121, %s124
      %p133 = scmp.eq.s32.totalorder %s22, 1
      %p134 = por %p132, %p133
      %p135 = scmp.ne.s32.totalorder %s124, %s125
      %p136 = scmp.eq.s32.totalorder %s22, 0
      %p137 = por %p135, %p136
      %p138 = scmp.ne.s32.totalorder %s124, %s125
      %p139 = scmp.eq.s32.totalorder %s23, 1
      %p140 = por %p138, %p139
      %p142 = scmp.ne.s32.totalorder %s125, %s141
      %p143 = scmp.eq.s32.totalorder %s23, 0
      %p144 = por %p142, %p143
      %p145 = scmp.le.s32.totalorder 1, %s17
      %p146 = scmp.lt.s32.totalorder %s17, 3
      %p147 = pnand %p145, %p146
      %p148 = pneg %p147
      // Predicated region
      $region9: #{memory_block_forward.3} parent=5 // pred_check
        _
      $region10: #{memory_block_forward.3} parent=5 // pred_check_branch
        %150 = sbr.rel (%p147) target = $region12
      $region11: #{memory_block_forward.3} parent=5 // pred_region
        %s151 = ssub.s32 %s17, 1
        // Predicated region
        $region13: #{memory_block_forward.3} parent=11 // pred_check
          %p152 = pneg %p64
        $region14: #{memory_block_forward.3} parent=11 // pred_check_branch
          %154 = sbr.rel (%p152) target = $region16
        $region15: #{memory_block_forward.3} parent=11 // pred_region
          _
        $region16: #{memory_block_forward.3} parent=11 // pred_fallthru
          _
        // Predicated region
        $region17: #{memory_block_forward.3} parent=11 // pred_check
          %p155 = pneg %p85
        $region18: #{memory_block_forward.3} parent=11 // pred_check_branch
          %157 = sbr.rel (%p155) target = $region20
        $region19: #{memory_block_forward.3} parent=11 // pred_region
          _
        $region20: #{memory_block_forward.3} parent=11 // pred_fallthru
          _
      $region12: #{memory_block_forward.3} parent=5 // pred_fallthru
        _
      %p158 = scmp.lt.s32.totalorder %s17, 2
      // Predicated region
      $region21: #{memory_block_forward.3} parent=5 // pred_check
        %p159 = pneg %p158
      $region22: #{memory_block_forward.3} parent=5 // pred_check_branch
        %161 = sbr.rel (%p159) target = $region24
      $region23: #{memory_block_forward.3} parent=5 // pred_region
        // Predicated region
        $region25: #{memory_block_forward.3} parent=23 // pred_check
          %p162 = pneg %p37
        $region26: #{memory_block_forward.3} parent=23 // pred_check_branch
          %164 = sbr.rel (%p162) target = $region28
        $region27: #{memory_block_forward.3} parent=23 // pred_region
          %s165 = smul.u32 32, %s17
          %p166 = scmp.lt.s32.totalorder %s165, 63
          %s167 = scalar_select %p166, %s165, 63
          %s168 = smul.addr %s167, 8
          %s169 = scalar_lea.vmem %s0, %s168
          %s170 = smul.u32 32, %s17
        $region28: #{memory_block_forward.3} parent=23 // pred_fallthru
          _
      $region24: #{memory_block_forward.3} parent=5 // pred_fallthru
        _
      %p171 = scmp.le.s32.totalorder 1, %s17
      %p172 = scmp.lt.s32.totalorder %s17, 3
      %p173 = pnand %p171, %p172
      %p174 = pneg %p173
      // Predicated region
      $region29: #{memory_block_forward.3} parent=5 // pred_check
        _
      $region30: #{memory_block_forward.3} parent=5 // pred_check_branch
        %176 = sbr.rel (%p173) target = $region32
      $region31: #{memory_block_forward.3} parent=5 // pred_region
        %s177 = ssub.s32 %s17, 1
        %s178 = smul.u32 32, %s22
        %p179 = scmp.lt.s32.totalorder %s178, 63
        %s180 = scalar_select %p179, %s178, 63
        %s181 = smul.addr %s180, 8
        %s182 = scalar_lea.vmem %s0, %s181
        %p183 = pneg %p43
        %p184 = pneg %p40
        %p185 = pneg %p64
        %p186 = pneg %p61
        %p187 = pneg %p85
        %p188 = pneg %p82
        %p189 = pneg %p111
        %p190 = pneg %p108
        %s191 = sand.u32 %s98, 1
        %s192 = scalar_lea.sflag [#allocation3], %s191
        %s193 = sand.u32 %s98, 1
        %s194 = smul.addr %s193, 256
        %s195 = scalar_lea.vmem [#allocation2], %s194
        %p196 = pneg %p137
        %p197 = pneg %p134
        %s198 = sand.u32 %s124, 1
        %s199 = scalar_lea.sflag [#allocation5], %s198
        %s200 = sand.u32 %s124, 1
        %s201 = smul.addr %s200, 256
        %s202 = scalar_lea.vmem [#allocation4], %s201
        %s203 = smul.u32 32, %s22
        %p204 = scmp.lt.s32.totalorder %s203, 63
        %s205 = scalar_select %p204, %s203, 63
        %s206 = smul.addr %s205, 8
        %s207 = scalar_lea.vmem %s0, %s206
        %s208 = smul.u32 32, %s22
        %s209 = smul.u32 32, %s22
        %s210 = smul.u32 32, %s22
        %v212 = vld [vmem:[%s207] sm:$0xff]
        %v213 = vld [vmem:[%s207 + $0x8] sm:$0xff]
        %v214 = vld [vmem:[%s207 + $0x10] sm:$0xff]
        %v215 = vld [vmem:[%s207 + $0x18] sm:$0xff]
        %v216 = vld [vmem:[%s207 + $0x20] sm:$0xff]
        %v217 = vld [vmem:[%s207 + $0x28] sm:$0xff]
        %v218 = vld [vmem:[%s207 + $0x30] sm:$0xff]
        %v219 = vld [vmem:[%s207 + $0x38] sm:$0xff]
        %v220 = vld [vmem:[%s207 + $0x40] sm:$0xff]
        %v221 = vld [vmem:[%s207 + $0x48] sm:$0xff]
        %v222 = vld [vmem:[%s207 + $0x50] sm:$0xff]
        %v223 = vld [vmem:[%s207 + $0x58] sm:$0xff]
        %v224 = vld [vmem:[%s207 + $0x60] sm:$0xff]
        %v225 = vld [vmem:[%s207 + $0x68] sm:$0xff]
        %v226 = vld [vmem:[%s207 + $0x70] sm:$0xff]
        %v227 = vld [vmem:[%s207 + $0x78] sm:$0xff]
        %v228 = vld [vmem:[%s207 + $0x80] sm:$0xff]
        %v229 = vld [vmem:[%s207 + $0x88] sm:$0xff]
        %v230 = vld [vmem:[%s207 + $0x90] sm:$0xff]
        %v231 = vld [vmem:[%s207 + $0x98] sm:$0xff]
        %v232 = vld [vmem:[%s207 + $0xa0] sm:$0xff]
        %v233 = vld [vmem:[%s207 + $0xa8] sm:$0xff]
        %v234 = vld [vmem:[%s207 + $0xb0] sm:$0xff]
        %v235 = vld [vmem:[%s207 + $0xb8] sm:$0xff]
        %v236 = vld [vmem:[%s207 + $0xc0] sm:$0xff]
        %v237 = vld [vmem:[%s207 + $0xc8] sm:$0xff]
        %v238 = vld [vmem:[%s207 + $0xd0] sm:$0xff]
        %v239 = vld [vmem:[%s207 + $0xd8] sm:$0xff]
        %v240 = vld [vmem:[%s207 + $0xe0] sm:$0xff]
        %v241 = vld [vmem:[%s207 + $0xe8] sm:$0xff]
        %v242 = vld [vmem:[%s207 + $0xf0] sm:$0xff]
        %v243 = vld [vmem:[%s207 + $0xf8] sm:$0xff]
        %v244 = vmul.f32 %v212, %v212
        %v245 = vmul.f32 %v213, %v213
        %v246 = vmul.f32 %v214, %v214
        %v247 = vmul.f32 %v215, %v215
        %v248 = vmul.f32 %v216, %v216
        %v249 = vmul.f32 %v217, %v217
        %v250 = vmul.f32 %v218, %v218
        %v251 = vmul.f32 %v219, %v219
        %v252 = vmul.f32 %v220, %v220
        %v253 = vmul.f32 %v221, %v221
        %v254 = vmul.f32 %v222, %v222
        %v255 = vmul.f32 %v223, %v223
        %v256 = vmul.f32 %v224, %v224
        %v257 = vmul.f32 %v225, %v225
        %v258 = vmul.f32 %v226, %v226
        %v259 = vmul.f32 %v227, %v227
        %v260 = vmul.f32 %v228, %v228
        %v261 = vmul.f32 %v229, %v229
        %v262 = vmul.f32 %v230, %v230
        %v263 = vmul.f32 %v231, %v231
        %v264 = vmul.f32 %v232, %v232
        %v265 = vmul.f32 %v233, %v233
        %v266 = vmul.f32 %v234, %v234
        %v267 = vmul.f32 %v235, %v235
        %v268 = vmul.f32 %v236, %v236
        %v269 = vmul.f32 %v237, %v237
        %v270 = vmul.f32 %v238, %v238
        %v271 = vmul.f32 %v239, %v239
        %v272 = vmul.f32 %v240, %v240
        %v273 = vmul.f32 %v241, %v241
        %v274 = vmul.f32 %v242, %v242
        %v275 = vmul.f32 %v243, %v243
        %vm276 = vcmask 261120
        %v277 = vsel %vm276, %v244, 0.0
        %278 = vadd.xlane.f32.xlu0 %v277
        %v279 = vpop.xlane.xlu0 %278
        %v280 = vsel %vm276, %v245, 0.0
        %281 = vadd.xlane.f32.xlu0 %v280
        %v282 = vpop.xlane.xlu0 %281
        %v283 = vsel %vm276, %v246, 0.0
        %284 = vadd.xlane.f32.xlu0 %v283
        %v285 = vpop.xlane.xlu0 %284
        %v286 = vsel %vm276, %v247, 0.0
        %287 = vadd.xlane.f32.xlu0 %v286
        %v288 = vpop.xlane.xlu0 %287
        %v289 = vsel %vm276, %v248, 0.0
        %290 = vadd.xlane.f32.xlu0 %v289
        %v291 = vpop.xlane.xlu0 %290
        %v292 = vsel %vm276, %v249, 0.0
        %293 = vadd.xlane.f32.xlu0 %v292
        %v294 = vpop.xlane.xlu0 %293
        %v295 = vsel %vm276, %v250, 0.0
        %296 = vadd.xlane.f32.xlu0 %v295
        %v297 = vpop.xlane.xlu0 %296
        %v298 = vsel %vm276, %v251, 0.0
        %299 = vadd.xlane.f32.xlu0 %v298
        %v300 = vpop.xlane.xlu0 %299
        %v301 = vsel %vm276, %v252, 0.0
        %302 = vadd.xlane.f32.xlu0 %v301
        %v303 = vpop.xlane.xlu0 %302
        %v304 = vsel %vm276, %v253, 0.0
        %305 = vadd.xlane.f32.xlu0 %v304
        %v306 = vpop.xlane.xlu0 %305
        %v307 = vsel %vm276, %v254, 0.0
        %308 = vadd.xlane.f32.xlu0 %v307
        %v309 = vpop.xlane.xlu0 %308
        %v310 = vsel %vm276, %v255, 0.0
        %311 = vadd.xlane.f32.xlu0 %v310
        %v312 = vpop.xlane.xlu0 %311
        %v313 = vsel %vm276, %v256, 0.0
        %314 = vadd.xlane.f32.xlu0 %v313
        %v315 = vpop.xlane.xlu0 %314
        %v316 = vsel %vm276, %v257, 0.0
        %317 = vadd.xlane.f32.xlu0 %v316
        %v318 = vpop.xlane.xlu0 %317
        %v319 = vsel %vm276, %v258, 0.0
        %320 = vadd.xlane.f32.xlu0 %v319
        %v321 = vpop.xlane.xlu0 %320
        %v322 = vsel %vm276, %v259, 0.0
        %323 = vadd.xlane.f32.xlu0 %v322
        %v324 = vpop.xlane.xlu0 %323
        %v325 = vsel %vm276, %v260, 0.0
        %326 = vadd.xlane.f32.xlu0 %v325
        %v327 = vpop.xlane.xlu0 %326
        %v328 = vsel %vm276, %v261, 0.0
        %329 = vadd.xlane.f32.xlu0 %v328
        %v330 = vpop.xlane.xlu0 %329
        %v331 = vsel %vm276, %v262, 0.0
        %332 = vadd.xlane.f32.xlu0 %v331
        %v333 = vpop.xlane.xlu0 %332
        %v334 = vsel %vm276, %v263, 0.0
        %335 = vadd.xlane.f32.xlu0 %v334
        %v336 = vpop.xlane.xlu0 %335
        %v337 = vsel %vm276, %v264, 0.0
        %338 = vadd.xlane.f32.xlu0 %v337
        %v339 = vpop.xlane.xlu0 %338
        %v340 = vsel %vm276, %v265, 0.0
        %341 = vadd.xlane.f32.xlu0 %v340
        %v342 = vpop.xlane.xlu0 %341
        %v343 = vsel %vm276, %v266, 0.0
        %344 = vadd.xlane.f32.xlu0 %v343
        %v345 = vpop.xlane.xlu0 %344
        %v346 = vsel %vm276, %v267, 0.0
        %347 = vadd.xlane.f32.xlu0 %v346
        %v348 = vpop.xlane.xlu0 %347
        %v349 = vsel %vm276, %v268, 0.0
        %350 = vadd.xlane.f32.xlu0 %v349
        %v351 = vpop.xlane.xlu0 %350
        %v352 = vsel %vm276, %v269, 0.0
        %353 = vadd.xlane.f32.xlu0 %v352
        %v354 = vpop.xlane.xlu0 %353
        %v355 = vsel %vm276, %v270, 0.0
        %356 = vadd.xlane.f32.xlu0 %v355
        %v357 = vpop.xlane.xlu0 %356
        %v358 = vsel %vm276, %v271, 0.0
        %359 = vadd.xlane.f32.xlu0 %v358
        %v360 = vpop.xlane.xlu0 %359
        %v361 = vsel %vm276, %v272, 0.0
        %362 = vadd.xlane.f32.xlu0 %v361
        %v363 = vpop.xlane.xlu0 %362
        %v364 = vsel %vm276, %v273, 0.0
        %365 = vadd.xlane.f32.xlu0 %v364
        %v366 = vpop.xlane.xlu0 %365
        %v367 = vsel %vm276, %v274, 0.0
        %368 = vadd.xlane.f32.xlu0 %v367
        %v369 = vpop.xlane.xlu0 %368
        %v370 = vsel %vm276, %v275, 0.0
        %371 = vadd.xlane.f32.xlu0 %v370
        %v372 = vpop.xlane.xlu0 %371
        %v373 = vrsqrt.pop %v279
        %v374 = vmul.f32 %v279, %v373
        %vm375 = vcmp.eq.f32.partialorder %v279, inf
        %v376 = vsel %vm375, %v279, %v374
        %vm377 = vcmp.eq.f32.partialorder %v279, 0.0
        %v378 = vand.u32 %v279, 2147483648
        %v379 = vsel %vm377, %v378, %v376
        %v380 = vrsqrt.pop %v282
        %v381 = vmul.f32 %v282, %v380
        %vm382 = vcmp.eq.f32.partialorder %v282, inf
        %v383 = vsel %vm382, %v282, %v381
        %vm384 = vcmp.eq.f32.partialorder %v282, 0.0
        %v385 = vand.u32 %v282, 2147483648
        %v386 = vsel %vm384, %v385, %v383
        %v387 = vrsqrt.pop %v285
        %v388 = vmul.f32 %v285, %v387
        %vm389 = vcmp.eq.f32.partialorder %v285, inf
        %v390 = vsel %vm389, %v285, %v388
        %vm391 = vcmp.eq.f32.partialorder %v285, 0.0
        %v392 = vand.u32 %v285, 2147483648
        %v393 = vsel %vm391, %v392, %v390
        %v394 = vrsqrt.pop %v288
        %v395 = vmul.f32 %v288, %v394
        %vm396 = vcmp.eq.f32.partialorder %v288, inf
        %v397 = vsel %vm396, %v288, %v395
        %vm398 = vcmp.eq.f32.partialorder %v288, 0.0
        %v399 = vand.u32 %v288, 2147483648
        %v400 = vsel %vm398, %v399, %v397
        %v401 = vrsqrt.pop %v291
        %v402 = vmul.f32 %v291, %v401
        %vm403 = vcmp.eq.f32.partialorder %v291, inf
        %v404 = vsel %vm403, %v291, %v402
        %vm405 = vcmp.eq.f32.partialorder %v291, 0.0
        %v406 = vand.u32 %v291, 2147483648
        %v407 = vsel %vm405, %v406, %v404
        %v408 = vrsqrt.pop %v294
        %v409 = vmul.f32 %v294, %v408
        %vm410 = vcmp.eq.f32.partialorder %v294, inf
        %v411 = vsel %vm410, %v294, %v409
        %vm412 = vcmp.eq.f32.partialorder %v294, 0.0
        %v413 = vand.u32 %v294, 2147483648
        %v414 = vsel %vm412, %v413, %v411
        %v415 = vrsqrt.pop %v297
        %v416 = vmul.f32 %v297, %v415
        %vm417 = vcmp.eq.f32.partialorder %v297, inf
        %v418 = vsel %vm417, %v297, %v416
        %vm419 = vcmp.eq.f32.partialorder %v297, 0.0
        %v420 = vand.u32 %v297, 2147483648
        %v421 = vsel %vm419, %v420, %v418
        %v422 = vrsqrt.pop %v300
        %v423 = vmul.f32 %v300, %v422
        %vm424 = vcmp.eq.f32.partialorder %v300, inf
        %v425 = vsel %vm424, %v300, %v423
        %vm426 = vcmp.eq.f32.partialorder %v300, 0.0
        %v427 = vand.u32 %v300, 2147483648
        %v428 = vsel %vm426, %v427, %v425
        %v429 = vrsqrt.pop %v303
        %v430 = vmul.f32 %v303, %v429
        %vm431 = vcmp.eq.f32.partialorder %v303, inf
        %v432 = vsel %vm431, %v303, %v430
        %vm433 = vcmp.eq.f32.partialorder %v303, 0.0
        %v434 = vand.u32 %v303, 2147483648
        %v435 = vsel %vm433, %v434, %v432
        %v436 = vrsqrt.pop %v306
        %v437 = vmul.f32 %v306, %v436
        %vm438 = vcmp.eq.f32.partialorder %v306, inf
        %v439 = vsel %vm438, %v306, %v437
        %vm440 = vcmp.eq.f32.partialorder %v306, 0.0
        %v441 = vand.u32 %v306, 2147483648
        %v442 = vsel %vm440, %v441, %v439
        %v443 = vrsqrt.pop %v309
        %v444 = vmul.f32 %v309, %v443
        %vm445 = vcmp.eq.f32.partialorder %v309, inf
        %v446 = vsel %vm445, %v309, %v444
        %vm447 = vcmp.eq.f32.partialorder %v309, 0.0
        %v448 = vand.u32 %v309, 2147483648
        %v449 = vsel %vm447, %v448, %v446
        %v450 = vrsqrt.pop %v312
        %v451 = vmul.f32 %v312, %v450
        %vm452 = vcmp.eq.f32.partialorder %v312, inf
        %v453 = vsel %vm452, %v312, %v451
        %vm454 = vcmp.eq.f32.partialorder %v312, 0.0
        %v455 = vand.u32 %v312, 2147483648
        %v456 = vsel %vm454, %v455, %v453
        %v457 = vrsqrt.pop %v315
        %v458 = vmul.f32 %v315, %v457
        %vm459 = vcmp.eq.f32.partialorder %v315, inf
        %v460 = vsel %vm459, %v315, %v458
        %vm461 = vcmp.eq.f32.partialorder %v315, 0.0
        %v462 = vand.u32 %v315, 2147483648
        %v463 = vsel %vm461, %v462, %v460
        %v464 = vrsqrt.pop %v318
        %v465 = vmul.f32 %v318, %v464
        %vm466 = vcmp.eq.f32.partialorder %v318, inf
        %v467 = vsel %vm466, %v318, %v465
        %vm468 = vcmp.eq.f32.partialorder %v318, 0.0
        %v469 = vand.u32 %v318, 2147483648
        %v470 = vsel %vm468, %v469, %v467
        %v471 = vrsqrt.pop %v321
        %v472 = vmul.f32 %v321, %v471
        %vm473 = vcmp.eq.f32.partialorder %v321, inf
        %v474 = vsel %vm473, %v321, %v472
        %vm475 = vcmp.eq.f32.partialorder %v321, 0.0
        %v476 = vand.u32 %v321, 2147483648
        %v477 = vsel %vm475, %v476, %v474
        %v478 = vrsqrt.pop %v324
        %v479 = vmul.f32 %v324, %v478
        %vm480 = vcmp.eq.f32.partialorder %v324, inf
        %v481 = vsel %vm480, %v324, %v479
        %vm482 = vcmp.eq.f32.partialorder %v324, 0.0
        %v483 = vand.u32 %v324, 2147483648
        %v484 = vsel %vm482, %v483, %v481
        %v485 = vrsqrt.pop %v327
        %v486 = vmul.f32 %v327, %v485
        %vm487 = vcmp.eq.f32.partialorder %v327, inf
        %v488 = vsel %vm487, %v327, %v486
        %vm489 = vcmp.eq.f32.partialorder %v327, 0.0
        %v490 = vand.u32 %v327, 2147483648
        %v491 = vsel %vm489, %v490, %v488
        %v492 = vrsqrt.pop %v330
        %v493 = vmul.f32 %v330, %v492
        %vm494 = vcmp.eq.f32.partialorder %v330, inf
        %v495 = vsel %vm494, %v330, %v493
        %vm496 = vcmp.eq.f32.partialorder %v330, 0.0
        %v497 = vand.u32 %v330, 2147483648
        %v498 = vsel %vm496, %v497, %v495
        %v499 = vrsqrt.pop %v333
        %v500 = vmul.f32 %v333, %v499
        %vm501 = vcmp.eq.f32.partialorder %v333, inf
        %v502 = vsel %vm501, %v333, %v500
        %vm503 = vcmp.eq.f32.partialorder %v333, 0.0
        %v504 = vand.u32 %v333, 2147483648
        %v505 = vsel %vm503, %v504, %v502
        %v506 = vrsqrt.pop %v336
        %v507 = vmul.f32 %v336, %v506
        %vm508 = vcmp.eq.f32.partialorder %v336, inf
        %v509 = vsel %vm508, %v336, %v507
        %vm510 = vcmp.eq.f32.partialorder %v336, 0.0
        %v511 = vand.u32 %v336, 2147483648
        %v512 = vsel %vm510, %v511, %v509
        %v513 = vrsqrt.pop %v339
        %v514 = vmul.f32 %v339, %v513
        %vm515 = vcmp.eq.f32.partialorder %v339, inf
        %v516 = vsel %vm515, %v339, %v514
        %vm517 = vcmp.eq.f32.partialorder %v339, 0.0
        %v518 = vand.u32 %v339, 2147483648
        %v519 = vsel %vm517, %v518, %v516
        %v520 = vrsqrt.pop %v342
        %v521 = vmul.f32 %v342, %v520
        %vm522 = vcmp.eq.f32.partialorder %v342, inf
        %v523 = vsel %vm522, %v342, %v521
        %vm524 = vcmp.eq.f32.partialorder %v342, 0.0
        %v525 = vand.u32 %v342, 2147483648
        %v526 = vsel %vm524, %v525, %v523
        %v527 = vrsqrt.pop %v345
        %v528 = vmul.f32 %v345, %v527
        %vm529 = vcmp.eq.f32.partialorder %v345, inf
        %v530 = vsel %vm529, %v345, %v528
        %vm531 = vcmp.eq.f32.partialorder %v345, 0.0
        %v532 = vand.u32 %v345, 2147483648
        %v533 = vsel %vm531, %v532, %v530
        %v534 = vrsqrt.pop %v348
        %v535 = vmul.f32 %v348, %v534
        %vm536 = vcmp.eq.f32.partialorder %v348, inf
        %v537 = vsel %vm536, %v348, %v535
        %vm538 = vcmp.eq.f32.partialorder %v348, 0.0
        %v539 = vand.u32 %v348, 2147483648
        %v540 = vsel %vm538, %v539, %v537
        %v541 = vrsqrt.pop %v351
        %v542 = vmul.f32 %v351, %v541
        %vm543 = vcmp.eq.f32.partialorder %v351, inf
        %v544 = vsel %vm543, %v351, %v542
        %vm545 = vcmp.eq.f32.partialorder %v351, 0.0
        %v546 = vand.u32 %v351, 2147483648
        %v547 = vsel %vm545, %v546, %v544
        %v548 = vrsqrt.pop %v354
        %v549 = vmul.f32 %v354, %v548
        %vm550 = vcmp.eq.f32.partialorder %v354, inf
        %v551 = vsel %vm550, %v354, %v549
        %vm552 = vcmp.eq.f32.partialorder %v354, 0.0
        %v553 = vand.u32 %v354, 2147483648
        %v554 = vsel %vm552, %v553, %v551
        %v555 = vrsqrt.pop %v357
        %v556 = vmul.f32 %v357, %v555
        %vm557 = vcmp.eq.f32.partialorder %v357, inf
        %v558 = vsel %vm557, %v357, %v556
        %vm559 = vcmp.eq.f32.partialorder %v357, 0.0
        %v560 = vand.u32 %v357, 2147483648
        %v561 = vsel %vm559, %v560, %v558
        %v562 = vrsqrt.pop %v360
        %v563 = vmul.f32 %v360, %v562
        %vm564 = vcmp.eq.f32.partialorder %v360, inf
        %v565 = vsel %vm564, %v360, %v563
        %vm566 = vcmp.eq.f32.partialorder %v360, 0.0
        %v567 = vand.u32 %v360, 2147483648
        %v568 = vsel %vm566, %v567, %v565
        %v569 = vrsqrt.pop %v363
        %v570 = vmul.f32 %v363, %v569
        %vm571 = vcmp.eq.f32.partialorder %v363, inf
        %v572 = vsel %vm571, %v363, %v570
        %vm573 = vcmp.eq.f32.partialorder %v363, 0.0
        %v574 = vand.u32 %v363, 2147483648
        %v575 = vsel %vm573, %v574, %v572
        %v576 = vrsqrt.pop %v366
        %v577 = vmul.f32 %v366, %v576
        %vm578 = vcmp.eq.f32.partialorder %v366, inf
        %v579 = vsel %vm578, %v366, %v577
        %vm580 = vcmp.eq.f32.partialorder %v366, 0.0
        %v581 = vand.u32 %v366, 2147483648
        %v582 = vsel %vm580, %v581, %v579
        %v583 = vrsqrt.pop %v369
        %v584 = vmul.f32 %v369, %v583
        %vm585 = vcmp.eq.f32.partialorder %v369, inf
        %v586 = vsel %vm585, %v369, %v584
        %vm587 = vcmp.eq.f32.partialorder %v369, 0.0
        %v588 = vand.u32 %v369, 2147483648
        %v589 = vsel %vm587, %v588, %v586
        %v590 = vrsqrt.pop %v372
        %v591 = vmul.f32 %v372, %v590
        %vm592 = vcmp.eq.f32.partialorder %v372, inf
        %v593 = vsel %vm592, %v372, %v591
        %vm594 = vcmp.eq.f32.partialorder %v372, 0.0
        %v595 = vand.u32 %v372, 2147483648
        %v596 = vsel %vm594, %v595, %v593
        %v597 = vmax.f32 %v379, 1e-12
        %v598 = vmax.f32 %v386, 1e-12
        %v599 = vmax.f32 %v393, 1e-12
        %v600 = vmax.f32 %v400, 1e-12
        %v601 = vmax.f32 %v407, 1e-12
        %v602 = vmax.f32 %v414, 1e-12
        %v603 = vmax.f32 %v421, 1e-12
        %v604 = vmax.f32 %v428, 1e-12
        %v605 = vmax.f32 %v435, 1e-12
        %v606 = vmax.f32 %v442, 1e-12
        %v607 = vmax.f32 %v449, 1e-12
        %v608 = vmax.f32 %v456, 1e-12
        %v609 = vmax.f32 %v463, 1e-12
        %v610 = vmax.f32 %v470, 1e-12
        %v611 = vmax.f32 %v477, 1e-12
        %v612 = vmax.f32 %v484, 1e-12
        %v613 = vmax.f32 %v491, 1e-12
        %v614 = vmax.f32 %v498, 1e-12
        %v615 = vmax.f32 %v505, 1e-12
        %v616 = vmax.f32 %v512, 1e-12
        %v617 = vmax.f32 %v519, 1e-12
        %v618 = vmax.f32 %v526, 1e-12
        %v619 = vmax.f32 %v533, 1e-12
        %v620 = vmax.f32 %v540, 1e-12
        %v621 = vmax.f32 %v547, 1e-12
        %v622 = vmax.f32 %v554, 1e-12
        %v623 = vmax.f32 %v561, 1e-12
        %v624 = vmax.f32 %v568, 1e-12
        %v625 = vmax.f32 %v575, 1e-12
        %v626 = vmax.f32 %v582, 1e-12
        %v627 = vmax.f32 %v589, 1e-12
        %v628 = vmax.f32 %v596, 1e-12
        %v629 = vrcp.pop %v597
        %v630 = vmul.f32 1.0, %v629
        %v631 = vrcp.pop %v598
        %v632 = vmul.f32 1.0, %v631
        %v633 = vrcp.pop %v599
        %v634 = vmul.f32 1.0, %v633
        %v635 = vrcp.pop %v600
        %v636 = vmul.f32 1.0, %v635
        %v637 = vrcp.pop %v601
        %v638 = vmul.f32 1.0, %v637
        %v639 = vrcp.pop %v602
        %v640 = vmul.f32 1.0, %v639
        %v641 = vrcp.pop %v603
        %v642 = vmul.f32 1.0, %v641
        %v643 = vrcp.pop %v604
        %v644 = vmul.f32 1.0, %v643
        %v645 = vrcp.pop %v605
        %v646 = vmul.f32 1.0, %v645
        %v647 = vrcp.pop %v606
        %v648 = vmul.f32 1.0, %v647
        %v649 = vrcp.pop %v607
        %v650 = vmul.f32 1.0, %v649
        %v651 = vrcp.pop %v608
        %v652 = vmul.f32 1.0, %v651
        %v653 = vrcp.pop %v609
        %v654 = vmul.f32 1.0, %v653
        %v655 = vrcp.pop %v610
        %v656 = vmul.f32 1.0, %v655
        %v657 = vrcp.pop %v611
        %v658 = vmul.f32 1.0, %v657
        %v659 = vrcp.pop %v612
        %v660 = vmul.f32 1.0, %v659
        %v661 = vrcp.pop %v613
        %v662 = vmul.f32 1.0, %v661
        %v663 = vrcp.pop %v614
        %v664 = vmul.f32 1.0, %v663
        %v665 = vrcp.pop %v615
        %v666 = vmul.f32 1.0, %v665
        %v667 = vrcp.pop %v616
        %v668 = vmul.f32 1.0, %v667
        %v669 = vrcp.pop %v617
        %v670 = vmul.f32 1.0, %v669
        %v671 = vrcp.pop %v618
        %v672 = vmul.f32 1.0, %v671
        %v673 = vrcp.pop %v619
        %v674 = vmul.f32 1.0, %v673
        %v675 = vrcp.pop %v620
        %v676 = vmul.f32 1.0, %v675
        %v677 = vrcp.pop %v621
        %v678 = vmul.f32 1.0, %v677
        %v679 = vrcp.pop %v622
        %v680 = vmul.f32 1.0, %v679
        %v681 = vrcp.pop %v623
        %v682 = vmul.f32 1.0, %v681
        %v683 = vrcp.pop %v624
        %v684 = vmul.f32 1.0, %v683
        %v685 = vrcp.pop %v625
        %v686 = vmul.f32 1.0, %v685
        %v687 = vrcp.pop %v626
        %v688 = vmul.f32 1.0, %v687
        %v689 = vrcp.pop %v627
        %v690 = vmul.f32 1.0, %v689
        %v691 = vrcp.pop %v628
        %v692 = vmul.f32 1.0, %v691
        %v693 = vmul.f32 %v212, %v630
        %v694 = vmul.f32 %v213, %v632
        %v695 = vmul.f32 %v214, %v634
        %v696 = vmul.f32 %v215, %v636
        %v697 = vmul.f32 %v216, %v638
        %v698 = vmul.f32 %v217, %v640
        %v699 = vmul.f32 %v218, %v642
        %v700 = vmul.f32 %v219, %v644
        %v701 = vmul.f32 %v220, %v646
        %v702 = vmul.f32 %v221, %v648
        %v703 = vmul.f32 %v222, %v650
        %v704 = vmul.f32 %v223, %v652
        %v705 = vmul.f32 %v224, %v654
        %v706 = vmul.f32 %v225, %v656
        %v707 = vmul.f32 %v226, %v658
        %v708 = vmul.f32 %v227, %v660
        %v709 = vmul.f32 %v228, %v662
        %v710 = vmul.f32 %v229, %v664
        %v711 = vmul.f32 %v230, %v666
        %v712 = vmul.f32 %v231, %v668
        %v713 = vmul.f32 %v232, %v670
        %v714 = vmul.f32 %v233, %v672
        %v715 = vmul.f32 %v234, %v674
        %v716 = vmul.f32 %v235, %v676
        %v717 = vmul.f32 %v236, %v678
        %v718 = vmul.f32 %v237, %v680
        %v719 = vmul.f32 %v238, %v682
        %v720 = vmul.f32 %v239, %v684
        %v721 = vmul.f32 %v240, %v686
        %v722 = vmul.f32 %v241, %v688
        %v723 = vmul.f32 %v242, %v690
        %v724 = vmul.f32 %v243, %v692
        %v725 = vpack.c.bf16 %v694, %v693
        %v726 = vpack.c.bf16 %v696, %v695
        %v727 = vpack.c.bf16 %v698, %v697
        %v728 = vpack.c.bf16 %v700, %v699
        %v729 = vpack.c.bf16 %v702, %v701
        %v730 = vpack.c.bf16 %v704, %v703
        %v731 = vpack.c.bf16 %v706, %v705
        %v732 = vpack.c.bf16 %v708, %v707
        %v733 = vpack.c.bf16 %v710, %v709
        %v734 = vpack.c.bf16 %v712, %v711
        %v735 = vpack.c.bf16 %v714, %v713
        %v736 = vpack.c.bf16 %v716, %v715
        %v737 = vpack.c.bf16 %v718, %v717
        %v738 = vpack.c.bf16 %v720, %v719
        %v739 = vpack.c.bf16 %v722, %v721
        %v740 = vpack.c.bf16 %v724, %v723
        %v741 = vld [vmem:[%s1] sm:$0xf]
        %v742 = vld [vmem:[%s1 + $0x4] sm:$0xf]
        %v743 = vld [vmem:[%s1 + $0x8] sm:$0xf]
        %v744 = vld [vmem:[%s1 + $0xc] sm:$0xf]
        %v749 = vunpack.c.l.b16 %v741
        %v750 = vunpack.c.l.b16 %v742
        %v751 = vunpack.c.l.b16 %v743
        %v752 = vunpack.c.l.b16 %v744
        %v753 = vpack.c.b16 %v750, %v749
        %v754 = vpack.c.b16 %v752, %v751
        %v758 = vsel %vm276, %v725, 0
        %v761 = vsel %vm276, %v726, 0
        %v764 = vsel %vm276, %v727, 0
        %v767 = vsel %vm276, %v728, 0
        %v770 = vsel %vm276, %v729, 0
        %v773 = vsel %vm276, %v730, 0
        %v776 = vsel %vm276, %v731, 0
        %v779 = vsel %vm276, %v732, 0
        %v782 = vsel %vm276, %v733, 0
        %v785 = vsel %vm276, %v734, 0
        %v788 = vsel %vm276, %v735, 0
        %v791 = vsel %vm276, %v736, 0
        %v794 = vsel %vm276, %v737, 0
        %v797 = vsel %vm276, %v738, 0
        %v800 = vsel %vm276, %v739, 0
        %v803 = vsel %vm276, %v740, 0
        %805 = vmatprep.subr.bf16.mxu0 0
        %806 = vmatpush1.bf16.msra.mxu0 %v753
        %807 = vmatprep.subr.bf16.mxu0 0
        %808 = vmatpush1.bf16.msra.mxu0 %v754
        %809 = vmatprep.subr.bf16.mxu0 0
        %810 = vmatpush1.bf16.msra.mxu0 0
        %811 = vmatprep.subr.bf16.mxu0 0
        %812 = vmatpush1.bf16.msra.mxu0 0
        %813 = vmatprep.subr.bf16.mxu0 0
        %814 = vmatpush1.bf16.msra.mxu0 0
        %815 = vmatprep.subr.bf16.mxu0 0
        %816 = vmatpush1.bf16.msra.mxu0 0
        %817 = vmatprep.subr.bf16.mxu0 0
        %818 = vmatpush1.bf16.msra.mxu0 0
        %819 = vmatprep.subr.bf16.mxu0 0
        %820 = vmatpush1.bf16.msra.mxu0 0
        %821 = vmatprep.subr.bf16.mxu0 0
        %822 = vmatpush1.bf16.msra.mxu0 0
        %823 = vmatprep.subr.bf16.mxu0 0
        %824 = vmatpush1.bf16.msra.mxu0 0
        %825 = vmatprep.subr.bf16.mxu0 0
        %826 = vmatpush1.bf16.msra.mxu0 0
        %827 = vmatprep.subr.bf16.mxu0 0
        %828 = vmatpush1.bf16.msra.mxu0 0
        %829 = vmatprep.subr.bf16.mxu0 0
        %830 = vmatpush1.bf16.msra.mxu0 0
        %831 = vmatprep.subr.bf16.mxu0 0
        %832 = vmatpush1.bf16.msra.mxu0 0
        %833 = vmatprep.subr.bf16.mxu0 0
        %834 = vmatpush1.bf16.msra.mxu0 0
        %835 = vmatprep.subr.bf16.mxu0 0
        %836 = vmatpush1.bf16.msra.mxu0 0
        %837 = vmatprep.mubr.bf16.mxu0 0
        %838 = vmatmul.mubr.bf16.gmra.mrb[0].mxu0 %v758
        %v839 = vpop.f32.mrb[0].mxu0
        %v840 = vadd.f32 0.0, %v839
        %v841 = vpop.f32.mrb[0].mxu0
        %v842 = vpop.f32.mrb[0].mxu0
        %v843 = vadd.f32 0.0, %v842
        %v844 = vpop.f32.mrb[0].mxu0
        %845 = vmatprep.mubr.bf16.mxu0 0
        %846 = vmatmul.mubr.bf16.gmra.mrb[0].mxu0 %v761
        %v847 = vpop.f32.mrb[0].mxu0
        %v848 = vadd.f32 0.0, %v847
        %v849 = vpop.f32.mrb[0].mxu0
        %v850 = vpop.f32.mrb[0].mxu0
        %v851 = vadd.f32 0.0, %v850
        %v852 = vpop.f32.mrb[0].mxu0
        %853 = vmatprep.mubr.bf16.mxu0 0
        %854 = vmatmul.mubr.bf16.gmra.mrb[0].mxu0 %v764
        %v855 = vpop.f32.mrb[0].mxu0
        %v856 = vadd.f32 0.0, %v855
        %v857 = vpop.f32.mrb[0].mxu0
        %v858 = vpop.f32.mrb[0].mxu0
        %v859 = vadd.f32 0.0, %v858
        %v860 = vpop.f32.mrb[0].mxu0
        %861 = vmatprep.mubr.bf16.mxu0 0
        %862 = vmatmul.mubr.bf16.gmra.mrb[0].mxu0 %v767
        %v863 = vpop.f32.mrb[0].mxu0
        %v864 = vadd.f32 0.0, %v863
        %v865 = vpop.f32.mrb[0].mxu0
        %v866 = vpop.f32.mrb[0].mxu0
        %v867 = vadd.f32 0.0, %v866
        %v868 = vpop.f32.mrb[0].mxu0
        %869 = vmatprep.mubr.bf16.mxu0 0
        %870 = vmatmul.mubr.bf16.gmra.mrb[0].mxu0 %v770
        %v871 = vpop.f32.mrb[0].mxu0
        %v872 = vadd.f32 0.0, %v871
        %v873 = vpop.f32.mrb[0].mxu0
        %v874 = vpop.f32.mrb[0].mxu0
        %v875 = vadd.f32 0.0, %v874
        %v876 = vpop.f32.mrb[0].mxu0
        %877 = vmatprep.mubr.bf16.mxu0 0
        %878 = vmatmul.mubr.bf16.gmra.mrb[0].mxu0 %v773
        %v879 = vpop.f32.mrb[0].mxu0
        %v880 = vadd.f32 0.0, %v879
        %v881 = vpop.f32.mrb[0].mxu0
        %v882 = vpop.f32.mrb[0].mxu0
        %v883 = vadd.f32 0.0, %v882
        %v884 = vpop.f32.mrb[0].mxu0
        %885 = vmatprep.mubr.bf16.mxu0 0
        %886 = vmatmul.mubr.bf16.gmra.mrb[0].mxu0 %v776
        %v887 = vpop.f32.mrb[0].mxu0
        %v888 = vadd.f32 0.0, %v887
        %v889 = vpop.f32.mrb[0].mxu0
        %v890 = vpop.f32.mrb[0].mxu0
        %v891 = vadd.f32 0.0, %v890
        %v892 = vpop.f32.mrb[0].mxu0
        %893 = vmatprep.mubr.bf16.mxu0 0
        %894 = vmatmul.mubr.bf16.gmra.mrb[0].mxu0 %v779
        %v895 = vpop.f32.mrb[0].mxu0
        %v896 = vadd.f32 0.0, %v895
        %v897 = vpop.f32.mrb[0].mxu0
        %v898 = vpop.f32.mrb[0].mxu0
        %v899 = vadd.f32 0.0, %v898
        %v900 = vpop.f32.mrb[0].mxu0
        %901 = vmatprep.mubr.bf16.mxu0 0
        %902 = vmatmul.mubr.bf16.gmra.mrb[0].mxu0 %v782
        %v903 = vpop.f32.mrb[0].mxu0
        %v904 = vadd.f32 0.0, %v903
        %v905 = vpop.f32.mrb[0].mxu0
        %v906 = vpop.f32.mrb[0].mxu0
        %v907 = vadd.f32 0.0, %v906
        %v908 = vpop.f32.mrb[0].mxu0
        %909 = vmatprep.mubr.bf16.mxu0 0
        %910 = vmatmul.mubr.bf16.gmra.mrb[0].mxu0 %v785
        %v911 = vpop.f32.mrb[0].mxu0
        %v912 = vadd.f32 0.0, %v911
        %v913 = vpop.f32.mrb[0].mxu0
        %v914 = vpop.f32.mrb[0].mxu0
        %v915 = vadd.f32 0.0, %v914
        %v916 = vpop.f32.mrb[0].mxu0
        %917 = vmatprep.mubr.bf16.mxu0 0
        %918 = vmatmul.mubr.bf16.gmra.mrb[0].mxu0 %v788
        %v919 = vpop.f32.mrb[0].mxu0
        %v920 = vadd.f32 0.0, %v919
        %v921 = vpop.f32.mrb[0].mxu0
        %v922 = vpop.f32.mrb[0].mxu0
        %v923 = vadd.f32 0.0, %v922
        %v924 = vpop.f32.mrb[0].mxu0
        %925 = vmatprep.mubr.bf16.mxu0 0
        %926 = vmatmul.mubr.bf16.gmra.mrb[0].mxu0 %v791
        %v927 = vpop.f32.mrb[0].mxu0
        %v928 = vadd.f32 0.0, %v927
        %v929 = vpop.f32.mrb[0].mxu0
        %v930 = vpop.f32.mrb[0].mxu0
        %v931 = vadd.f32 0.0, %v930
        %v932 = vpop.f32.mrb[0].mxu0
        %933 = vmatprep.mubr.bf16.mxu0 0
        %934 = vmatmul.mubr.bf16.gmra.mrb[0].mxu0 %v794
        %v935 = vpop.f32.mrb[0].mxu0
        %v936 = vadd.f32 0.0, %v935
        %v937 = vpop.f32.mrb[0].mxu0
        %v938 = vpop.f32.mrb[0].mxu0
        %v939 = vadd.f32 0.0, %v938
        %v940 = vpop.f32.mrb[0].mxu0
        %941 = vmatprep.mubr.bf16.mxu0 0
        %942 = vmatmul.mubr.bf16.gmra.mrb[0].mxu0 %v797
        %v943 = vpop.f32.mrb[0].mxu0
        %v944 = vadd.f32 0.0, %v943
        %v945 = vpop.f32.mrb[0].mxu0
        %v946 = vpop.f32.mrb[0].mxu0
        %v947 = vadd.f32 0.0, %v946
        %v948 = vpop.f32.mrb[0].mxu0
        %949 = vmatprep.mubr.bf16.mxu0 0
        %950 = vmatmul.mubr.bf16.gmra.mrb[0].mxu0 %v800
        %v951 = vpop.f32.mrb[0].mxu0
        %v952 = vadd.f32 0.0, %v951
        %v953 = vpop.f32.mrb[0].mxu0
        %v954 = vpop.f32.mrb[0].mxu0
        %v955 = vadd.f32 0.0, %v954
        %v956 = vpop.f32.mrb[0].mxu0
        %957 = vmatprep.mubr.bf16.mxu0 0
        %958 = vmatmul.mubr.bf16.gmra.mrb[0].mxu0 %v803
        %v959 = vpop.f32.mrb[0].mxu0
        %v960 = vadd.f32 0.0, %v959
        %v961 = vpop.f32.mrb[0].mxu0
        %v962 = vpop.f32.mrb[0].mxu0
        %v963 = vadd.f32 0.0, %v962
        %v964 = vpop.f32.mrb[0].mxu0
        %965 = vdwg.mxu0
        %966 = vst [vmem:[%s202] sm:$0xff] %v840
        %967 = vst [vmem:[%s202 + $0x8] sm:$0xff] %v843
        %968 = vst [vmem:[%s202 + $0x10] sm:$0xff] %v848
        %969 = vst [vmem:[%s202 + $0x18] sm:$0xff] %v851
        %970 = vst [vmem:[%s202 + $0x20] sm:$0xff] %v856
        %971 = vst [vmem:[%s202 + $0x28] sm:$0xff] %v859
        %972 = vst [vmem:[%s202 + $0x30] sm:$0xff] %v864
        %973 = vst [vmem:[%s202 + $0x38] sm:$0xff] %v867
        %974 = vst [vmem:[%s202 + $0x40] sm:$0xff] %v872
        %975 = vst [vmem:[%s202 + $0x48] sm:$0xff] %v875
        %976 = vst [vmem:[%s202 + $0x50] sm:$0xff] %v880
        %977 = vst [vmem:[%s202 + $0x58] sm:$0xff] %v883
        %978 = vst [vmem:[%s202 + $0x60] sm:$0xff] %v888
        %979 = vst [vmem:[%s202 + $0x68] sm:$0xff] %v891
        %980 = vst [vmem:[%s202 + $0x70] sm:$0xff] %v896
        %981 = vst [vmem:[%s202 + $0x78] sm:$0xff] %v899
        %982 = vst [vmem:[%s202 + $0x80] sm:$0xff] %v904
        %983 = vst [vmem:[%s202 + $0x88] sm:$0xff] %v907
        %984 = vst [vmem:[%s202 + $0x90] sm:$0xff] %v912
        %985 = vst [vmem:[%s202 + $0x98] sm:$0xff] %v915
        %986 = vst [vmem:[%s202 + $0xa0] sm:$0xff] %v920
        %987 = vst [vmem:[%s202 + $0xa8] sm:$0xff] %v923
        %988 = vst [vmem:[%s202 + $0xb0] sm:$0xff] %v928
        %989 = vst [vmem:[%s202 + $0xb8] sm:$0xff] %v931
        %990 = vst [vmem:[%s202 + $0xc0] sm:$0xff] %v936
        %991 = vst [vmem:[%s202 + $0xc8] sm:$0xff] %v939
        %992 = vst [vmem:[%s202 + $0xd0] sm:$0xff] %v944
        %993 = vst [vmem:[%s202 + $0xd8] sm:$0xff] %v947
        %994 = vst [vmem:[%s202 + $0xe0] sm:$0xff] %v952
        %995 = vst [vmem:[%s202 + $0xe8] sm:$0xff] %v955
        %996 = vst [vmem:[%s202 + $0xf0] sm:$0xff] %v960
        %997 = vst [vmem:[%s202 + $0xf8] sm:$0xff] %v963
        %998 = vmax.xlane.f32.xlu0 %v840
        %v999 = vpop.xlane.xlu0 %998
        %1000 = vmax.xlane.f32.xlu0 %v843
        %v1001 = vpop.xlane.xlu0 %1000
        %1002 = vmax.xlane.f32.xlu0 %v848
        %v1003 = vpop.xlane.xlu0 %1002
        %1004 = vmax.xlane.f32.xlu0 %v851
        %v1005 = vpop.xlane.xlu0 %1004
        %1006 = vmax.xlane.f32.xlu0 %v856
        %v1007 = vpop.xlane.xlu0 %1006
        %1008 = vmax.xlane.f32.xlu0 %v859
        %v1009 = vpop.xlane.xlu0 %1008
        %1010 = vmax.xlane.f32.xlu0 %v864
        %v1011 = vpop.xlane.xlu0 %1010
        %1012 = vmax.xlane.f32.xlu0 %v867
        %v1013 = vpop.xlane.xlu0 %1012
        %1014 = vmax.xlane.f32.xlu0 %v872
        %v1015 = vpop.xlane.xlu0 %1014
        %1016 = vmax.xlane.f32.xlu0 %v875
        %v1017 = vpop.xlane.xlu0 %1016
        %1018 = vmax.xlane.f32.xlu0 %v880
        %v1019 = vpop.xlane.xlu0 %1018
        %1020 = vmax.xlane.f32.xlu0 %v883
        %v1021 = vpop.xlane.xlu0 %1020
        %1022 = vmax.xlane.f32.xlu0 %v888
        %v1023 = vpop.xlane.xlu0 %1022
        %1024 = vmax.xlane.f32.xlu0 %v891
        %v1025 = vpop.xlane.xlu0 %1024
        %1026 = vmax.xlane.f32.xlu0 %v896
        %v1027 = vpop.xlane.xlu0 %1026
        %1028 = vmax.xlane.f32.xlu0 %v899
        %v1029 = vpop.xlane.xlu0 %1028
        %1030 = vmax.xlane.f32.xlu0 %v904
        %v1031 = vpop.xlane.xlu0 %1030
        %1032 = vmax.xlane.f32.xlu0 %v907
        %v1033 = vpop.xlane.xlu0 %1032
        %1034 = vmax.xlane.f32.xlu0 %v912
        %v1035 = vpop.xlane.xlu0 %1034
        %1036 = vmax.xlane.f32.xlu0 %v915
        %v1037 = vpop.xlane.xlu0 %1036
        %1038 = vmax.xlane.f32.xlu0 %v920
        %v1039 = vpop.xlane.xlu0 %1038
        %1040 = vmax.xlane.f32.xlu0 %v923
        %v1041 = vpop.xlane.xlu0 %1040
        %1042 = vmax.xlane.f32.xlu0 %v928
        %v1043 = vpop.xlane.xlu0 %1042
        %1044 = vmax.xlane.f32.xlu0 %v931
        %v1045 = vpop.xlane.xlu0 %1044
        %1046 = vmax.xlane.f32.xlu0 %v936
        %v1047 = vpop.xlane.xlu0 %1046
        %1048 = vmax.xlane.f32.xlu0 %v939
        %v1049 = vpop.xlane.xlu0 %1048
        %1050 = vmax.xlane.f32.xlu0 %v944
        %v1051 = vpop.xlane.xlu0 %1050
        %1052 = vmax.xlane.f32.xlu0 %v947
        %v1053 = vpop.xlane.xlu0 %1052
        %1054 = vmax.xlane.f32.xlu0 %v952
        %v1055 = vpop.xlane.xlu0 %1054
        %1056 = vmax.xlane.f32.xlu0 %v955
        %v1057 = vpop.xlane.xlu0 %1056
        %1058 = vmax.xlane.f32.xlu0 %v960
        %v1059 = vpop.xlane.xlu0 %1058
        %1060 = vmax.xlane.f32.xlu0 %v963
        %v1061 = vpop.xlane.xlu0 %1060
        %v1062 = vsub.f32 %v840, %v999
        %v1063 = vsub.f32 %v843, %v1001
        %v1064 = vsub.f32 %v848, %v1003
        %v1065 = vsub.f32 %v851, %v1005
        %v1066 = vsub.f32 %v856, %v1007
        %v1067 = vsub.f32 %v859, %v1009
        %v1068 = vsub.f32 %v864, %v1011
        %v1069 = vsub.f32 %v867, %v1013
        %v1070 = vsub.f32 %v872, %v1015
        %v1071 = vsub.f32 %v875, %v1017
        %v1072 = vsub.f32 %v880, %v1019
        %v1073 = vsub.f32 %v883, %v1021
        %v1074 = vsub.f32 %v888, %v1023
        %v1075 = vsub.f32 %v891, %v1025
        %v1076 = vsub.f32 %v896, %v1027
        %v1077 = vsub.f32 %v899, %v1029
        %v1078 = vsub.f32 %v904, %v1031
        %v1079 = vsub.f32 %v907, %v1033
        %v1080 = vsub.f32 %v912, %v1035
        %v1081 = vsub.f32 %v915, %v1037
        %v1082 = vsub.f32 %v920, %v1039
        %v1083 = vsub.f32 %v923, %v1041
        %v1084 = vsub.f32 %v928, %v1043
        %v1085 = vsub.f32 %v931, %v1045
        %v1086 = vsub.f32 %v936, %v1047
        %v1087 = vsub.f32 %v939, %v1049
        %v1088 = vsub.f32 %v944, %v1051
        %v1089 = vsub.f32 %v947, %v1053
        %v1090 = vsub.f32 %v952, %v1055
        %v1091 = vsub.f32 %v955, %v1057
        %v1092 = vsub.f32 %v960, %v1059
        %v1093 = vsub.f32 %v963, %v1061
        %v1094 = vmul.f32 %v1062, 1.442695
        %v1095 = vpow.pop %v1094
        %v1096 = vmul.f32 %v1063, 1.442695
        %v1097 = vpow.pop %v1096
        %v1098 = vmul.f32 %v1064, 1.442695
        %v1099 = vpow.pop %v1098
        %v1100 = vmul.f32 %v1065, 1.442695
        %v1101 = vpow.pop %v1100
        %v1102 = vmul.f32 %v1066, 1.442695
        %v1103 = vpow.pop %v1102
        %v1104 = vmul.f32 %v1067, 1.442695
        %v1105 = vpow.pop %v1104
        %v1106 = vmul.f32 %v1068, 1.442695
        %v1107 = vpow.pop %v1106
        %v1108 = vmul.f32 %v1069, 1.442695
        %v1109 = vpow.pop %v1108
        %v1110 = vmul.f32 %v1070, 1.442695
        %v1111 = vpow.pop %v1110
        %v1112 = vmul.f32 %v1071, 1.442695
        %v1113 = vpow.pop %v1112
        %v1114 = vmul.f32 %v1072, 1.442695
        %v1115 = vpow.pop %v1114
        %v1116 = vmul.f32 %v1073, 1.442695
        %v1117 = vpow.pop %v1116
        %v1118 = vmul.f32 %v1074, 1.442695
        %v1119 = vpow.pop %v1118
        %v1120 = vmul.f32 %v1075, 1.442695
        %v1121 = vpow.pop %v1120
        %v1122 = vmul.f32 %v1076, 1.442695
        %v1123 = vpow.pop %v1122
        %v1124 = vmul.f32 %v1077, 1.442695
        %v1125 = vpow.pop %v1124
        %v1126 = vmul.f32 %v1078, 1.442695
        %v1127 = vpow.pop %v1126
        %v1128 = vmul.f32 %v1079, 1.442695
        %v1129 = vpow.pop %v1128
        %v1130 = vmul.f32 %v1080, 1.442695
        %v1131 = vpow.pop %v1130
        %v1132 = vmul.f32 %v1081, 1.442695
        %v1133 = vpow.pop %v1132
        %v1134 = vmul.f32 %v1082, 1.442695
        %v1135 = vpow.pop %v1134
        %v1136 = vmul.f32 %v1083, 1.442695
        %v1137 = vpow.pop %v1136
        %v1138 = vmul.f32 %v1084, 1.442695
        %v1139 = vpow.pop %v1138
        %v1140 = vmul.f32 %v1085, 1.442695
        %v1141 = vpow.pop %v1140
        %v1142 = vmul.f32 %v1086, 1.442695
        %v1143 = vpow.pop %v1142
        %v1144 = vmul.f32 %v1087, 1.442695
        %v1145 = vpow.pop %v1144
        %v1146 = vmul.f32 %v1088, 1.442695
        %v1147 = vpow.pop %v1146
        %v1148 = vmul.f32 %v1089, 1.442695
        %v1149 = vpow.pop %v1148
        %v1150 = vmul.f32 %v1090, 1.442695
        %v1151 = vpow.pop %v1150
        %v1152 = vmul.f32 %v1091, 1.442695
        %v1153 = vpow.pop %v1152
        %v1154 = vmul.f32 %v1092, 1.442695
        %v1155 = vpow.pop %v1154
        %v1156 = vmul.f32 %v1093, 1.442695
        %v1157 = vpow.pop %v1156
        %1158 = vadd.xlane.f32.xlu0 %v1095
        %v1159 = vpop.xlane.xlu0 %1158
        %1160 = vadd.xlane.f32.xlu0 %v1097
        %v1161 = vpop.xlane.xlu0 %1160
        %1162 = vadd.xlane.f32.xlu0 %v1099
        %v1163 = vpop.xlane.xlu0 %1162
        %1164 = vadd.xlane.f32.xlu0 %v1101
        %v1165 = vpop.xlane.xlu0 %1164
        %1166 = vadd.xlane.f32.xlu0 %v1103
        %v1167 = vpop.xlane.xlu0 %1166
        %1168 = vadd.xlane.f32.xlu0 %v1105
        %v1169 = vpop.xlane.xlu0 %1168
        %1170 = vadd.xlane.f32.xlu0 %v1107
        %v1171 = vpop.xlane.xlu0 %1170
        %1172 = vadd.xlane.f32.xlu0 %v1109
        %v1173 = vpop.xlane.xlu0 %1172
        %1174 = vadd.xlane.f32.xlu0 %v1111
        %v1175 = vpop.xlane.xlu0 %1174
        %1176 = vadd.xlane.f32.xlu0 %v1113
        %v1177 = vpop.xlane.xlu0 %1176
        %1178 = vadd.xlane.f32.xlu0 %v1115
        %v1179 = vpop.xlane.xlu0 %1178
        %1180 = vadd.xlane.f32.xlu0 %v1117
        %v1181 = vpop.xlane.xlu0 %1180
        %1182 = vadd.xlane.f32.xlu0 %v1119
        %v1183 = vpop.xlane.xlu0 %1182
        %1184 = vadd.xlane.f32.xlu0 %v1121
        %v1185 = vpop.xlane.xlu0 %1184
        %1186 = vadd.xlane.f32.xlu0 %v1123
        %v1187 = vpop.xlane.xlu0 %1186
        %1188 = vadd.xlane.f32.xlu0 %v1125
        %v1189 = vpop.xlane.xlu0 %1188
        %1190 = vadd.xlane.f32.xlu0 %v1127
        %v1191 = vpop.xlane.xlu0 %1190
        %1192 = vadd.xlane.f32.xlu0 %v1129
        %v1193 = vpop.xlane.xlu0 %1192
        %1194 = vadd.xlane.f32.xlu0 %v1131
        %v1195 = vpop.xlane.xlu0 %1194
        %1196 = vadd.xlane.f32.xlu0 %v1133
        %v1197 = vpop.xlane.xlu0 %1196
        %1198 = vadd.xlane.f32.xlu0 %v1135
        %v1199 = vpop.xlane.xlu0 %1198
        %1200 = vadd.xlane.f32.xlu0 %v1137
        %v1201 = vpop.xlane.xlu0 %1200
        %1202 = vadd.xlane.f32.xlu0 %v1139
        %v1203 = vpop.xlane.xlu0 %1202
        %1204 = vadd.xlane.f32.xlu0 %v1141
        %v1205 = vpop.xlane.xlu0 %1204
        %1206 = vadd.xlane.f32.xlu0 %v1143
        %v1207 = vpop.xlane.xlu0 %1206
        %1208 = vadd.xlane.f32.xlu0 %v1145
        %v1209 = vpop.xlane.xlu0 %1208
        %1210 = vadd.xlane.f32.xlu0 %v1147
        %v1211 = vpop.xlane.xlu0 %1210
        %1212 = vadd.xlane.f32.xlu0 %v1149
        %v1213 = vpop.xlane.xlu0 %1212
        %1214 = vadd.xlane.f32.xlu0 %v1151
        %v1215 = vpop.xlane.xlu0 %1214
        %1216 = vadd.xlane.f32.xlu0 %v1153
        %v1217 = vpop.xlane.xlu0 %1216
        %1218 = vadd.xlane.f32.xlu0 %v1155
        %v1219 = vpop.xlane.xlu0 %1218
        %1220 = vadd.xlane.f32.xlu0 %v1157
        %v1221 = vpop.xlane.xlu0 %1220
        %v1222 = vrcp.pop %v1159
        %v1223 = vmul.f32 %v1095, %v1222
        %v1224 = vrcp.pop %v1161
        %v1225 = vmul.f32 %v1097, %v1224
        %v1226 = vrcp.pop %v1163
        %v1227 = vmul.f32 %v1099, %v1226
        %v1228 = vrcp.pop %v1165
        %v1229 = vmul.f32 %v1101, %v1228
        %v1230 = vrcp.pop %v1167
        %v1231 = vmul.f32 %v1103, %v1230
        %v1232 = vrcp.pop %v1169
        %v1233 = vmul.f32 %v1105, %v1232
        %v1234 = vrcp.pop %v1171
        %v1235 = vmul.f32 %v1107, %v1234
        %v1236 = vrcp.pop %v1173
        %v1237 = vmul.f32 %v1109, %v1236
        %v1238 = vrcp.pop %v1175
        %v1239 = vmul.f32 %v1111, %v1238
        %v1240 = vrcp.pop %v1177
        %v1241 = vmul.f32 %v1113, %v1240
        %v1242 = vrcp.pop %v1179
        %v1243 = vmul.f32 %v1115, %v1242
        %v1244 = vrcp.pop %v1181
        %v1245 = vmul.f32 %v1117, %v1244
        %v1246 = vrcp.pop %v1183
        %v1247 = vmul.f32 %v1119, %v1246
        %v1248 = vrcp.pop %v1185
        %v1249 = vmul.f32 %v1121, %v1248
        %v1250 = vrcp.pop %v1187
        %v1251 = vmul.f32 %v1123, %v1250
        %v1252 = vrcp.pop %v1189
        %v1253 = vmul.f32 %v1125, %v1252
        %v1254 = vrcp.pop %v1191
        %v1255 = vmul.f32 %v1127, %v1254
        %v1256 = vrcp.pop %v1193
        %v1257 = vmul.f32 %v1129, %v1256
        %v1258 = vrcp.pop %v1195
        %v1259 = vmul.f32 %v1131, %v1258
        %v1260 = vrcp.pop %v1197
        %v1261 = vmul.f32 %v1133, %v1260
        %v1262 = vrcp.pop %v1199
        %v1263 = vmul.f32 %v1135, %v1262
        %v1264 = vrcp.pop %v1201
        %v1265 = vmul.f32 %v1137, %v1264
        %v1266 = vrcp.pop %v1203
        %v1267 = vmul.f32 %v1139, %v1266
        %v1268 = vrcp.pop %v1205
        %v1269 = vmul.f32 %v1141, %v1268
        %v1270 = vrcp.pop %v1207
        %v1271 = vmul.f32 %v1143, %v1270
        %v1272 = vrcp.pop %v1209
        %v1273 = vmul.f32 %v1145, %v1272
        %v1274 = vrcp.pop %v1211
        %v1275 = vmul.f32 %v1147, %v1274
        %v1276 = vrcp.pop %v1213
        %v1277 = vmul.f32 %v1149, %v1276
        %v1278 = vrcp.pop %v1215
        %v1279 = vmul.f32 %v1151, %v1278
        %v1280 = vrcp.pop %v1217
        %v1281 = vmul.f32 %v1153, %v1280
        %v1282 = vrcp.pop %v1219
        %v1283 = vmul.f32 %v1155, %v1282
        %v1284 = vrcp.pop %v1221
        %v1285 = vmul.f32 %v1157, %v1284
        %v1286 = vpack.c.bf16 %v1225, %v1223
        %v1287 = vpack.c.bf16 %v1229, %v1227
        %v1288 = vpack.c.bf16 %v1233, %v1231
        %v1289 = vpack.c.bf16 %v1237, %v1235
        %v1290 = vpack.c.bf16 %v1241, %v1239
        %v1291 = vpack.c.bf16 %v1245, %v1243
        %v1292 = vpack.c.bf16 %v1249, %v1247
        %v1293 = vpack.c.bf16 %v1253, %v1251
        %v1294 = vpack.c.bf16 %v1257, %v1255
        %v1295 = vpack.c.bf16 %v1261, %v1259
        %v1296 = vpack.c.bf16 %v1265, %v1263
        %v1297 = vpack.c.bf16 %v1269, %v1267
        %v1298 = vpack.c.bf16 %v1273, %v1271
        %v1299 = vpack.c.bf16 %v1277, %v1275
        %v1300 = vpack.c.bf16 %v1281, %v1279
        %v1301 = vpack.c.bf16 %v1285, %v1283
        %v1302 = vld [vmem:[%s2] sm:$0xf]
        %v1303 = vld [vmem:[%s2 + $0x4] sm:$0xf]
        %v1304 = vld [vmem:[%s2 + $0x8] sm:$0xf]
        %v1305 = vld [vmem:[%s2 + $0xc] sm:$0xf]
        %v1306 = vld [vmem:[%s2 + $0x10] sm:$0xf]
        %v1307 = vld [vmem:[%s2 + $0x14] sm:$0xf]
        %v1308 = vld [vmem:[%s2 + $0x18] sm:$0xf]
        %v1309 = vld [vmem:[%s2 + $0x1c] sm:$0xf]
        %v1310 = vld [vmem:[%s2 + $0x20] sm:$0xf]
        %v1311 = vld [vmem:[%s2 + $0x24] sm:$0xf]
        %v1312 = vld [vmem:[%s2 + $0x28] sm:$0xf]
        %v1313 = vld [vmem:[%s2 + $0x2c] sm:$0xf]
        %v1314 = vld [vmem:[%s2 + $0x30] sm:$0xf]
        %v1315 = vld [vmem:[%s2 + $0x34] sm:$0xf]
        %v1316 = vld [vmem:[%s2 + $0x38] sm:$0xf]
        %v1317 = vld [vmem:[%s2 + $0x3c] sm:$0xf]
        %v1334 = vunpack.c.l.b16 %v1302
        %v1335 = vunpack.c.l.b16 %v1303
        %v1336 = vunpack.c.l.b16 %v1304
        %v1337 = vunpack.c.l.b16 %v1305
        %v1338 = vunpack.c.l.b16 %v1306
        %v1339 = vunpack.c.l.b16 %v1307
        %v1340 = vunpack.c.l.b16 %v1308
        %v1341 = vunpack.c.l.b16 %v1309
        %v1342 = vunpack.c.l.b16 %v1310
        %v1343 = vunpack.c.l.b16 %v1311
        %v1344 = vunpack.c.l.b16 %v1312
        %v1345 = vunpack.c.l.b16 %v1313
        %v1346 = vunpack.c.l.b16 %v1314
        %v1347 = vunpack.c.l.b16 %v1315
        %v1348 = vunpack.c.l.b16 %v1316
        %v1349 = vunpack.c.l.b16 %v1317
        %v1350 = vpack.c.b16 %v1335, %v1334
        %v1351 = vpack.c.b16 %v1337, %v1336
        %v1352 = vpack.c.b16 %v1339, %v1338
        %v1353 = vpack.c.b16 %v1341, %v1340
        %v1354 = vpack.c.b16 %v1343, %v1342
        %v1355 = vpack.c.b16 %v1345, %v1344
        %v1356 = vpack.c.b16 %v1347, %v1346
        %v1357 = vpack.c.b16 %v1349, %v1348
        %1366 = vmatprep.subr.bf16.mxu0 0
        %1367 = vmatpush1.bf16.msra.mxu0 %v1350
        %1368 = vmatprep.subr.bf16.mxu0 0
        %1369 = vmatpush1.bf16.msra.mxu0 %v1351
        %1370 = vmatprep.subr.bf16.mxu0 0
        %1371 = vmatpush1.bf16.msra.mxu0 %v1352
        %1372 = vmatprep.subr.bf16.mxu0 0
        %1373 = vmatpush1.bf16.msra.mxu0 %v1353
        %1374 = vmatprep.subr.bf16.mxu0 0
        %1375 = vmatpush1.bf16.msra.mxu0 %v1354
        %1376 = vmatprep.subr.bf16.mxu0 0
        %1377 = vmatpush1.bf16.msra.mxu0 %v1355
        %1378 = vmatprep.subr.bf16.mxu0 0
        %1379 = vmatpush1.bf16.msra.mxu0 %v1356
        %1380 = vmatprep.subr.bf16.mxu0 0
        %1381 = vmatpush1.bf16.msra.mxu0 %v1357
        %1382 = vmatprep.subr.bf16.mxu0 0
        %1383 = vmatpush1.bf16.msra.mxu0 0
        %1384 = vmatprep.subr.bf16.mxu0 0
        %1385 = vmatpush1.bf16.msra.mxu0 0
        %1386 = vmatprep.subr.bf16.mxu0 0
        %1387 = vmatpush1.bf16.msra.mxu0 0
        %1388 = vmatprep.subr.bf16.mxu0 0
        %1389 = vmatpush1.bf16.msra.mxu0 0
        %1390 = vmatprep.subr.bf16.mxu0 0
        %1391 = vmatpush1.bf16.msra.mxu0 0
        %1392 = vmatprep.subr.bf16.mxu0 0
        %1393 = vmatpush1.bf16.msra.mxu0 0
        %1394 = vmatprep.subr.bf16.mxu0 0
        %1395 = vmatpush1.bf16.msra.mxu0 0
        %1396 = vmatprep.subr.bf16.mxu0 0
        %1397 = vmatpush1.bf16.msra.mxu0 0
        %1398 = vmatprep.mubr.bf16.mxu0 0
        %1399 = vmatmul.mubr.bf16.gmra.mrb[0].mxu0 %v1286
        %v1400 = vpop.f32.mrb[0].mxu0
        %v1401 = vadd.f32 0.0, %v1400
        %v1402 = vpop.f32.mrb[0].mxu0
        %v1403 = vpop.f32.mrb[0].mxu0
        %v1404 = vadd.f32 0.0, %v1403
        %v1405 = vpop.f32.mrb[0].mxu0
        %1406 = vmatprep.mubr.bf16.mxu0 0
        %1407 = vmatmul.mubr.bf16.gmra.mrb[0].mxu0 %v1287
        %v1408 = vpop.f32.mrb[0].mxu0
        %v1409 = vadd.f32 0.0, %v1408
        %v1410 = vpop.f32.mrb[0].mxu0
        %v1411 = vpop.f32.mrb[0].mxu0
        %v1412 = vadd.f32 0.0, %v1411
        %v1413 = vpop.f32.mrb[0].mxu0
        %1414 = vmatprep.mubr.bf16.mxu0 0
        %1415 = vmatmul.mubr.bf16.gmra.mrb[0].mxu0 %v1288
        %v1416 = vpop.f32.mrb[0].mxu0
        %v1417 = vadd.f32 0.0, %v1416
        %v1418 = vpop.f32.mrb[0].mxu0
        %v1419 = vpop.f32.mrb[0].mxu0
        %v1420 = vadd.f32 0.0, %v1419
        %v1421 = vpop.f32.mrb[0].mxu0
        %1422 = vmatprep.mubr.bf16.mxu0 0
        %1423 = vmatmul.mubr.bf16.gmra.mrb[0].mxu0 %v1289
        %v1424 = vpop.f32.mrb[0].mxu0
        %v1425 = vadd.f32 0.0, %v1424
        %v1426 = vpop.f32.mrb[0].mxu0
        %v1427 = vpop.f32.mrb[0].mxu0
        %v1428 = vadd.f32 0.0, %v1427
        %v1429 = vpop.f32.mrb[0].mxu0
        %1430 = vmatprep.mubr.bf16.mxu0 0
        %1431 = vmatmul.mubr.bf16.gmra.mrb[0].mxu0 %v1290
        %v1432 = vpop.f32.mrb[0].mxu0
        %v1433 = vadd.f32 0.0, %v1432
        %v1434 = vpop.f32.mrb[0].mxu0
        %v1435 = vpop.f32.mrb[0].mxu0
        %v1436 = vadd.f32 0.0, %v1435
        %v1437 = vpop.f32.mrb[0].mxu0
        %1438 = vmatprep.mubr.bf16.mxu0 0
        %1439 = vmatmul.mubr.bf16.gmra.mrb[0].mxu0 %v1291
        %v1440 = vpop.f32.mrb[0].mxu0
        %v1441 = vadd.f32 0.0, %v1440
        %v1442 = vpop.f32.mrb[0].mxu0
        %v1443 = vpop.f32.mrb[0].mxu0
        %v1444 = vadd.f32 0.0, %v1443
        %v1445 = vpop.f32.mrb[0].mxu0
        %1446 = vmatprep.mubr.bf16.mxu0 0
        %1447 = vmatmul.mubr.bf16.gmra.mrb[0].mxu0 %v1292
        %v1448 = vpop.f32.mrb[0].mxu0
        %v1449 = vadd.f32 0.0, %v1448
        %v1450 = vpop.f32.mrb[0].mxu0
        %v1451 = vpop.f32.mrb[0].mxu0
        %v1452 = vadd.f32 0.0, %v1451
        %v1453 = vpop.f32.mrb[0].mxu0
        %1454 = vmatprep.mubr.bf16.mxu0 0
        %1455 = vmatmul.mubr.bf16.gmra.mrb[0].mxu0 %v1293
        %v1456 = vpop.f32.mrb[0].mxu0
        %v1457 = vadd.f32 0.0, %v1456
        %v1458 = vpop.f32.mrb[0].mxu0
        %v1459 = vpop.f32.mrb[0].mxu0
        %v1460 = vadd.f32 0.0, %v1459
        %v1461 = vpop.f32.mrb[0].mxu0
        %1462 = vmatprep.mubr.bf16.mxu0 0
        %1463 = vmatmul.mubr.bf16.gmra.mrb[0].mxu0 %v1294
        %v1464 = vpop.f32.mrb[0].mxu0
        %v1465 = vadd.f32 0.0, %v1464
        %v1466 = vpop.f32.mrb[0].mxu0
        %v1467 = vpop.f32.mrb[0].mxu0
        %v1468 = vadd.f32 0.0, %v1467
        %v1469 = vpop.f32.mrb[0].mxu0
        %1470 = vmatprep.mubr.bf16.mxu0 0
        %1471 = vmatmul.mubr.bf16.gmra.mrb[0].mxu0 %v1295
        %v1472 = vpop.f32.mrb[0].mxu0
        %v1473 = vadd.f32 0.0, %v1472
        %v1474 = vpop.f32.mrb[0].mxu0
        %v1475 = vpop.f32.mrb[0].mxu0
        %v1476 = vadd.f32 0.0, %v1475
        %v1477 = vpop.f32.mrb[0].mxu0
        %1478 = vmatprep.mubr.bf16.mxu0 0
        %1479 = vmatmul.mubr.bf16.gmra.mrb[0].mxu0 %v1296
        %v1480 = vpop.f32.mrb[0].mxu0
        %v1481 = vadd.f32 0.0, %v1480
        %v1482 = vpop.f32.mrb[0].mxu0
        %v1483 = vpop.f32.mrb[0].mxu0
        %v1484 = vadd.f32 0.0, %v1483
        %v1485 = vpop.f32.mrb[0].mxu0
        %1486 = vmatprep.mubr.bf16.mxu0 0
        %1487 = vmatmul.mubr.bf16.gmra.mrb[0].mxu0 %v1297
        %v1488 = vpop.f32.mrb[0].mxu0
        %v1489 = vadd.f32 0.0, %v1488
        %v1490 = vpop.f32.mrb[0].mxu0
        %v1491 = vpop.f32.mrb[0].mxu0
        %v1492 = vadd.f32 0.0, %v1491
        %v1493 = vpop.f32.mrb[0].mxu0
        %1494 = vmatprep.mubr.bf16.mxu0 0
        %1495 = vmatmul.mubr.bf16.gmra.mrb[0].mxu0 %v1298
        %v1496 = vpop.f32.mrb[0].mxu0
        %v1497 = vadd.f32 0.0, %v1496
        %v1498 = vpop.f32.mrb[0].mxu0
        %v1499 = vpop.f32.mrb[0].mxu0
        %v1500 = vadd.f32 0.0, %v1499
        %v1501 = vpop.f32.mrb[0].mxu0
        %1502 = vmatprep.mubr.bf16.mxu0 0
        %1503 = vmatmul.mubr.bf16.gmra.mrb[0].mxu0 %v1299
        %v1504 = vpop.f32.mrb[0].mxu0
        %v1505 = vadd.f32 0.0, %v1504
        %v1506 = vpop.f32.mrb[0].mxu0
        %v1507 = vpop.f32.mrb[0].mxu0
        %v1508 = vadd.f32 0.0, %v1507
        %v1509 = vpop.f32.mrb[0].mxu0
        %1510 = vmatprep.mubr.bf16.mxu0 0
        %1511 = vmatmul.mubr.bf16.gmra.mrb[0].mxu0 %v1300
        %v1512 = vpop.f32.mrb[0].mxu0
        %v1513 = vadd.f32 0.0, %v1512
        %v1514 = vpop.f32.mrb[0].mxu0
        %v1515 = vpop.f32.mrb[0].mxu0
        %v1516 = vadd.f32 0.0, %v1515
        %v1517 = vpop.f32.mrb[0].mxu0
        %1518 = vmatprep.mubr.bf16.mxu0 0
        %1519 = vmatmul.mubr.bf16.gmra.mrb[0].mxu0 %v1301
        %v1520 = vpop.f32.mrb[0].mxu0
        %v1521 = vadd.f32 0.0, %v1520
        %v1522 = vpop.f32.mrb[0].mxu0
        %v1523 = vpop.f32.mrb[0].mxu0
        %v1524 = vadd.f32 0.0, %v1523
        %v1525 = vpop.f32.mrb[0].mxu0
        %1526 = vdwg.mxu0
        %1527 = vst.msk [vmem:[%s195] sm:$0xff] %vm276, %v1401
        %1528 = vst.msk [vmem:[%s195 + $0x8] sm:$0xff] %vm276, %v1404
        %1529 = vst.msk [vmem:[%s195 + $0x10] sm:$0xff] %vm276, %v1409
        %1530 = vst.msk [vmem:[%s195 + $0x18] sm:$0xff] %vm276, %v1412
        %1531 = vst.msk [vmem:[%s195 + $0x20] sm:$0xff] %vm276, %v1417
        %1532 = vst.msk [vmem:[%s195 + $0x28] sm:$0xff] %vm276, %v1420
        %1533 = vst.msk [vmem:[%s195 + $0x30] sm:$0xff] %vm276, %v1425
        %1534 = vst.msk [vmem:[%s195 + $0x38] sm:$0xff] %vm276, %v1428
        %1535 = vst.msk [vmem:[%s195 + $0x40] sm:$0xff] %vm276, %v1433
        %1536 = vst.msk [vmem:[%s195 + $0x48] sm:$0xff] %vm276, %v1436
        %1537 = vst.msk [vmem:[%s195 + $0x50] sm:$0xff] %vm276, %v1441
        %1538 = vst.msk [vmem:[%s195 + $0x58] sm:$0xff] %vm276, %v1444
        %1539 = vst.msk [vmem:[%s195 + $0x60] sm:$0xff] %vm276, %v1449
        %1540 = vst.msk [vmem:[%s195 + $0x68] sm:$0xff] %vm276, %v1452
        %1541 = vst.msk [vmem:[%s195 + $0x70] sm:$0xff] %vm276, %v1457
        %1542 = vst.msk [vmem:[%s195 + $0x78] sm:$0xff] %vm276, %v1460
        %1543 = vst.msk [vmem:[%s195 + $0x80] sm:$0xff] %vm276, %v1465
        %1544 = vst.msk [vmem:[%s195 + $0x88] sm:$0xff] %vm276, %v1468
        %1545 = vst.msk [vmem:[%s195 + $0x90] sm:$0xff] %vm276, %v1473
        %1546 = vst.msk [vmem:[%s195 + $0x98] sm:$0xff] %vm276, %v1476
        %1547 = vst.msk [vmem:[%s195 + $0xa0] sm:$0xff] %vm276, %v1481
        %1548 = vst.msk [vmem:[%s195 + $0xa8] sm:$0xff] %vm276, %v1484
        %1549 = vst.msk [vmem:[%s195 + $0xb0] sm:$0xff] %vm276, %v1489
        %1550 = vst.msk [vmem:[%s195 + $0xb8] sm:$0xff] %vm276, %v1492
        %1551 = vst.msk [vmem:[%s195 + $0xc0] sm:$0xff] %vm276, %v1497
        %1552 = vst.msk [vmem:[%s195 + $0xc8] sm:$0xff] %vm276, %v1500
        %1553 = vst.msk [vmem:[%s195 + $0xd0] sm:$0xff] %vm276, %v1505
        %1554 = vst.msk [vmem:[%s195 + $0xd8] sm:$0xff] %vm276, %v1508
        %1555 = vst.msk [vmem:[%s195 + $0xe0] sm:$0xff] %vm276, %v1513
        %1556 = vst.msk [vmem:[%s195 + $0xe8] sm:$0xff] %vm276, %v1516
        %1557 = vst.msk [vmem:[%s195 + $0xf0] sm:$0xff] %vm276, %v1521
        %1558 = vst.msk [vmem:[%s195 + $0xf8] sm:$0xff] %vm276, %v1524
        %s1559 = sand.u32 %s98, 1
        %s1560 = scalar_lea.sflag [#allocation3], %s1559
        %s1561 = sand.u32 %s98, 1
        %s1562 = smul.addr %s1561, 256
        %s1563 = scalar_lea.vmem [#allocation2], %s1562
        %s1564 = sand.u32 %s124, 1
        %s1565 = scalar_lea.sflag [#allocation5], %s1564
        %s1566 = sand.u32 %s124, 1
        %s1567 = smul.addr %s1566, 256
        %s1568 = scalar_lea.vmem [#allocation4], %s1567
        // Predicated region
        $region33: #{memory_block_forward.3} parent=31 // pred_check
          %p1569 = pneg %p108
        $region34: #{memory_block_forward.3} parent=31 // pred_check_branch
          %1571 = sbr.rel (%p1569) target = $region36
        $region35: #{memory_block_forward.3} parent=31 // pred_region
          %s1572 = smul.u32 32, %s22
          %s1574 = ssub.s32 4096, 4096
          %1575 = vsyncadd %s1560, %s1574
          %s1576 = smul.addr %s1572, 128
          %s1577 = scalar_lea.hbm %s3, %s1576
          %s1578 = sshll.u32 %s1563, 4
          %s1579 = int_to_ptr.vmem [resolvable:$true] %s1578
          %1584 = dma.vmem_to_hbm [thread:$0]  %s1579, 4096, %s1577, %s1560, 128, 128, 8
        $region36: #{memory_block_forward.3} parent=31 // pred_fallthru
          _
        // Predicated region
        $region37: #{memory_block_forward.3} parent=31 // pred_check
          %p1585 = pneg %p134
        $region38: #{memory_block_forward.3} parent=31 // pred_check_branch
          %1587 = sbr.rel (%p1585) target = $region40
        $region39: #{memory_block_forward.3} parent=31 // pred_region
          %s1588 = smul.u32 32, %s22
          %s1590 = ssub.s32 4096, 4096
          %1591 = vsyncadd %s1565, %s1590
          %s1592 = smul.addr %s1588, 128
          %s1593 = scalar_lea.hbm %s4, %s1592
          %s1594 = sshll.u32 %s1568, 4
          %s1595 = int_to_ptr.vmem [resolvable:$true] %s1594
          %1600 = dma.vmem_to_hbm [thread:$0]  %s1595, 4096, %s1593, %s1565, 128, 128, 8
        $region40: #{memory_block_forward.3} parent=31 // pred_fallthru
          _
      $region32: #{memory_block_forward.3} parent=5 // pred_fallthru
        _
      %p1601 = scmp.le.s32.totalorder 2, %s17
      // Predicated region
      $region41: #{memory_block_forward.3} parent=5 // pred_check
        %p1602 = pneg %p1601
      $region42: #{memory_block_forward.3} parent=5 // pred_check_branch
        %1604 = sbr.rel (%p1602) target = $region44
      $region43: #{memory_block_forward.3} parent=5 // pred_region
        %s1605 = ssub.s32 %s17, 2
        // Predicated region
        $region45: #{memory_block_forward.3} parent=43 // pred_check
          %p1606 = pneg %p114
        $region46: #{memory_block_forward.3} parent=43 // pred_check_branch
          %1608 = sbr.rel (%p1606) target = $region48
        $region47: #{memory_block_forward.3} parent=43 // pred_region
          %s1609 = sand.u32 %s99, 1
          %s1610 = scalar_lea.sflag [#allocation3], %s1609
          %s1611 = sand.u32 %s99, 1
          %s1612 = smul.addr %s1611, 256
          %s1613 = scalar_lea.vmem [#allocation2], %s1612
          %1614 = dma.done %s1610, 4096
        $region48: #{memory_block_forward.3} parent=43 // pred_fallthru
          _
        // Predicated region
        $region49: #{memory_block_forward.3} parent=43 // pred_check
          %p1615 = pneg %p140
        $region50: #{memory_block_forward.3} parent=43 // pred_check_branch
          %1617 = sbr.rel (%p1615) target = $region52
        $region51: #{memory_block_forward.3} parent=43 // pred_region
          %s1618 = sand.u32 %s125, 1
          %s1619 = scalar_lea.sflag [#allocation5], %s1618
          %s1620 = sand.u32 %s125, 1
          %s1621 = smul.addr %s1620, 256
          %s1622 = scalar_lea.vmem [#allocation4], %s1621
          %1623 = dma.done %s1619, 4096
        $region52: #{memory_block_forward.3} parent=43 // pred_fallthru
          _
      $region44: #{memory_block_forward.3} parent=5 // pred_fallthru
        _
    $region6: #{memory_block_forward.3} parent=1 // loop_footer
      %s21 = sadd.s32 1, %s17
    $region7: #{memory_block_forward.3} parent=1 // loop_footer_branch
      %16 = sbr.rel target = $region3
    $region8: #{memory_block_forward.3} parent=1 // loop_exit
      _
    %1624 = vsyncpa [#allocation3], 1
    %s1625 = scalar_lea.sflag [#allocation3], 1
    %1626 = vsyncpa %s1625, 1
    %1627 = vsyncpa [#allocation5], 1
    %s1628 = scalar_lea.sflag [#allocation5], 1
    %1629 = vsyncpa %s1628, 1

</llo_original>
